<compile_context>
chip_gen: v5e
topology: v5e:2x2
jax: 0.10.0
libtpu: 0.0.40
codegen_flags: <defaults>
</compile_context>

<pallas_src>
import functools

import jax
import jax.numpy as jnp
from jax import lax
from jax.experimental import pallas as pl
from jax.experimental.pallas import tpu as pltpu

LN_EPS = 1e-5          # nn.LayerNorm default
NEG_MASK = -1e30       # finite "minus infinity" for attention masking


def _round_up(x, m):
    return ((x + m - 1) // m) * m


def _layer_norm(x, g, b):
    mu = jnp.mean(x, axis=-1, keepdims=True)
    var = jnp.mean((x - mu) ** 2, axis=-1, keepdims=True)
    return (x - mu) * lax.rsqrt(var + LN_EPS) * g + b


# --------------------------- fully fused model kernel -------------------------
def fused_kernel(cat_ref, cont_ref, pad_ref,
                 cpw_ref, cpb_ref, cpg_ref, cpbe_ref,
                 ctw_ref, ctb_ref, ctg_ref, ctbe_ref,
                 wqkv_ref, bqkv_ref, wo_ref, bo_ref,
                 g1_ref, be1_ref, fw1_ref, fb1_ref, fw2_ref, fb2_ref,
                 g2_ref, be2_ref,
                 wih_ref, whh_ref, blstm_ref, fcw_ref, fcb_ref,
                 o_ref,
                 xseq_ref, gx_ref,
                 *, S, H, nH, Dh, Hp, n_layers):
    f32 = jnp.float32
    bf16 = jnp.bfloat16

    # ---- categorical / continuous projections + LayerNorm (per-batch program) ----
    cate = jnp.dot(cat_ref[...].astype(bf16), cpw_ref[...],
                   preferred_element_type=f32) + cpb_ref[...]
    cate = _layer_norm(cate, cpg_ref[...], cpbe_ref[...])
    conte = jnp.dot(cont_ref[...].astype(bf16), ctw_ref[...],
                    preferred_element_type=f32) + ctb_ref[...]
    conte = _layer_norm(conte, ctg_ref[...], ctbe_ref[...])
    embed = jnp.concatenate([cate, conte], axis=-1)            # (S, H) f32

    # ---- fused QKV projection: ONE MXU dot; softmax scale pre-folded into q cols ----
    qkv = jnp.dot(embed.astype(bf16), wqkv_ref[...],
                  preferred_element_type=f32) + bqkv_ref[...]  # (S, 3H)
    qkv_b = qkv.astype(bf16)

    # ---- all-heads attention: batched einsums + single softmax pass ----
    q_h = jnp.stack([qkv_b[:, h * Dh:(h + 1) * Dh] for h in range(nH)], axis=0)
    k_h = jnp.stack([qkv_b[:, H + h * Dh:H + (h + 1) * Dh] for h in range(nH)], axis=0)
    v_h = jnp.stack([qkv_b[:, 2 * H + h * Dh:2 * H + (h + 1) * Dh] for h in range(nH)],
                    axis=0)                                    # each (nH, S, Dh)

    row = lax.broadcasted_iota(jnp.int32, (S, S), 0)
    col = lax.broadcasted_iota(jnp.int32, (S, S), 1)
    causal = (col > row).reshape(1, S, S)                      # strict upper triangle
    padded = pad_ref[...] > 0.5                                # (1, 1, S) 1.0 -> padded key
    masked = jnp.logical_or(causal, padded)                    # (1, S, S)

    s = jnp.einsum('hqd,hkd->hqk', q_h, k_h,
                   preferred_element_type=f32)                 # (nH, S, S)
    s = jnp.where(masked, NEG_MASK, s)
    m = jnp.max(s, axis=-1, keepdims=True)
    e = jnp.exp(s - m)
    p = e * pl.reciprocal(jnp.sum(e, axis=-1, keepdims=True), approx=True)
    ctx = jnp.einsum('hqk,hkd->hqd', p.astype(bf16), v_h,
                     preferred_element_type=f32)               # (nH, S, Dh)
    attn = jnp.concatenate([ctx[h] for h in range(nH)], axis=-1)   # (S, H)
    attn = jnp.dot(attn.astype(bf16), wo_ref[...],
                   preferred_element_type=f32) + bo_ref[...]

    # ---- residuals: ln1(embed + attn) -> FFN -> ln2(embed + ffn) ----
    x1 = _layer_norm(embed + attn, g1_ref[...], be1_ref[...])
    hmid = jnp.maximum(
        jnp.dot(x1.astype(bf16), fw1_ref[...], preferred_element_type=f32) + fb1_ref[...],
        0.0)
    ff = jnp.dot(hmid.astype(bf16), fw2_ref[...],
                 preferred_element_type=f32) + fb2_ref[...]
    out = _layer_norm(embed + ff, g2_ref[...], be2_ref[...])   # (S, H) f32

    # ---- LSTM (gates padded to Hp lanes) + fc + sigmoid, all VMEM-resident ----
    if Hp > H:
        out_p = jnp.concatenate([out, jnp.zeros((S, Hp - H), f32)], axis=-1)
    else:
        out_p = out
    xseq_ref[...] = out_p                                      # (S, Hp)

    fcw = fcw_ref[...]                                         # (1, Hp)
    fcb = fcb_ref[...]                                         # (1, 1)
    lane_iota = lax.broadcasted_iota(jnp.int32, (1, S), 1)
    logits_row = jnp.zeros((1, S), f32)

    for l in range(n_layers):
        is_last = (l == n_layers - 1)
        # hoisted input projection: one matmul per layer over the whole sequence
        gx_ref[...] = jnp.dot(xseq_ref[...].astype(bf16), wih_ref[l],
                              preferred_element_type=f32) + blstm_ref[l]   # (S, 4Hp)
        whh_l = whh_ref[l]                                     # (Hp, 4Hp) bf16, hoisted

        def step(t, carry, _whh=whh_l, _is_last=is_last):
            h, c, lrow = carry
            gx_t = gx_ref[pl.ds(t, 1), :]                      # (1, 4Hp)
            # single fused recurrent gate matmul, gate slices are lane-tile aligned
            pre = gx_t + jnp.dot(h.astype(bf16), _whh, preferred_element_type=f32)
            i_g = jax.nn.sigmoid(pre[:, 0:Hp])
            f_g = jax.nn.sigmoid(pre[:, Hp:2 * Hp])
            g_g = jnp.tanh(pre[:, 2 * Hp:3 * Hp])
            o_g = jax.nn.sigmoid(pre[:, 3 * Hp:4 * Hp])
            c = f_g * c + i_g * g_g
            h = o_g * jnp.tanh(c)
            if not _is_last:
                xseq_ref[pl.ds(t, 1), :] = h                   # feeds the next layer
                return h, c, lrow
            # last layer: fc as VPU multiply + lane reduce, no transpose
            logit = jnp.sum(h * fcw, axis=-1, keepdims=True) + fcb        # (1, 1)
            lrow = jnp.where(lane_iota == t, logit, lrow)
            return h, c, lrow

        h0 = jnp.zeros((1, Hp), f32)
        c0 = jnp.zeros((1, Hp), f32)
        _, _, logits_row = lax.fori_loop(0, S, step, (h0, c0, logits_row),
                                         unroll=min(S, 8))

    o_ref[...] = jax.nn.sigmoid(logits_row).reshape(1, 1, S)


def fused_forward(embed_cat, cont, pad, kp, *, B, S, H, nH, Dh, Hp, n_layers):
    weights = (kp['cpw'], kp['cpb'], kp['cpg'], kp['cpbe'],
               kp['ctw'], kp['ctb'], kp['ctg'], kp['ctbe'],
               kp['wqkv'], kp['bqkv'], kp['wo'], kp['bo'],
               kp['g1'], kp['be1'], kp['fw1'], kp['fb1'], kp['fw2'], kp['fb2'],
               kp['g2'], kp['be2'],
               kp['wih'], kp['whh'], kp['blstm'], kp['fcw'], kp['fcb'])

    def const_spec(x):
        zeros = (0,) * x.ndim
        return pl.BlockSpec(x.shape, lambda b, _z=zeros: _z)   # resident across grid

    in_specs = [
        pl.BlockSpec((S, embed_cat.shape[1]), lambda b: (b, 0)),
        pl.BlockSpec((S, cont.shape[1]), lambda b: (b, 0)),
        pl.BlockSpec((1, 1, S), lambda b: (b, 0, 0)),
    ] + [const_spec(w) for w in weights]

    kernel = functools.partial(fused_kernel, S=S, H=H, nH=nH, Dh=Dh, Hp=Hp,
                               n_layers=n_layers)
    out = pl.pallas_call(
        kernel,
        grid=(B,),
        out_shape=jax.ShapeDtypeStruct((B, 1, S), jnp.float32),
        in_specs=in_specs,
        out_specs=pl.BlockSpec((1, 1, S), lambda b: (b, 0, 0)),
        scratch_shapes=[pltpu.VMEM((S, Hp), jnp.float32),
                        pltpu.VMEM((S, 4 * Hp), jnp.float32)],
        compiler_params=pltpu.CompilerParams(
            dimension_semantics=("parallel",),
            vmem_limit_bytes=32 * 1024 * 1024),
    )(embed_cat, cont, pad, *weights)
    return out


# ------------------------------ parameters ------------------------------------
def init_params(key, args):
    H = args['hidden_dim']
    d3 = H // 3
    ks = iter(jax.random.split(key, 64))

    def lin(fi, fo, scale=0.05):
        w = jax.random.normal(next(ks), (fi, fo), jnp.float32) * scale
        b = jax.random.normal(next(ks), (fo,), jnp.float32) * scale
        return w, b

    def layernorm(dim):
        return jnp.ones((dim,), jnp.float32), jnp.zeros((dim,), jnp.float32)

    def emb(n, d):
        return jax.random.normal(next(ks), (n, d), jnp.float32) * 0.05

    p = {}
    p['emb_interaction'] = emb(3, d3)
    p['emb_test'] = emb(args['n_test'] + 1, d3)
    p['emb_question'] = emb(args['n_questions'] + 1, d3)
    p['emb_tag'] = emb(args['n_tag'] + 1, d3)
    p['emb_big'] = emb(args['n_big_features'] + 1, d3)
    p['comb_proj'] = lin(d3 * args['n_cate'], H // 2) + layernorm(H // 2)
    p['cont_embed'] = lin(args['n_cont'], H // 2) + layernorm(H // 2)
    p['query'] = lin(H, H)
    p['key'] = lin(H, H)
    p['value'] = lin(H, H)
    # nn.MultiheadAttention internal in_proj (split into q/k/v) + out_proj
    p['attn_wq'], p['attn_bq'] = lin(H, H)
    p['attn_wk'], p['attn_bk'] = lin(H, H)
    p['attn_wv'], p['attn_bv'] = lin(H, H)
    p['attn_wo'], p['attn_bo'] = lin(H, H)
    p['ln1'] = layernorm(H)
    p['ln2'] = layernorm(H)
    p['ffn'] = lin(H, H) + lin(H, H)   # (w1, b1, w2, b2)
    layers = []
    for _ in range(args['n_layers']):
        wih = jax.random.normal(next(ks), (H, 4 * H), jnp.float32) * 0.05
        whh = jax.random.normal(next(ks), (H, 4 * H), jnp.float32) * 0.05
        b_ih = jax.random.normal(next(ks), (4 * H,), jnp.float32) * 0.05
        b_hh = jax.random.normal(next(ks), (4 * H,), jnp.float32) * 0.05
        layers.append((wih, whh, b_ih + b_hh))
    p['lstm'] = layers
    p['fc'] = lin(H, 1)
    return p


def prepare_params(params, args):
    """Host-side algebraic fusion / repacking into kernel-ready layouts."""
    H = args['hidden_dim']
    nH = args['n_heads']
    Hp = _round_up(H, 128)
    bf16 = jnp.bfloat16

    def row(b):
        return b.reshape(1, -1)

    kp = {}
    cw, cb, cg, cbe = params['comb_proj']
    kp['cpw'], kp['cpb'], kp['cpg'], kp['cpbe'] = cw.astype(bf16), row(cb), row(cg), row(cbe)
    tw, tb, tg, tbe = params['cont_embed']
    kp['ctw'], kp['ctb'], kp['ctg'], kp['ctbe'] = tw.astype(bf16), row(tb), row(tg), row(tbe)

    # fuse (x@W1+b1)@W2+b2 = x@(W1@W2) + (b1@W2 + b2)  (query/key/value ∘ MHA in-proj)
    def fuse(lin1, w2, b2):
        w1, b1 = lin1
        return w1 @ w2, b1 @ w2 + b2

    scale = 1.0 / ((H // nH) ** 0.5)
    wq, bq = fuse(params['query'], params['attn_wq'], params['attn_bq'])
    wk, bk = fuse(params['key'], params['attn_wk'], params['attn_bk'])
    wv, bv = fuse(params['value'], params['attn_wv'], params['attn_bv'])
    wq, bq = wq * scale, bq * scale                       # fold softmax scale into q
    kp['wqkv'] = jnp.concatenate([wq, wk, wv], axis=1).astype(bf16)       # (H, 3H)
    kp['bqkv'] = jnp.concatenate([bq, bk, bv], axis=0).reshape(1, 3 * H)

    kp['wo'], kp['bo'] = params['attn_wo'].astype(bf16), row(params['attn_bo'])
    kp['g1'], kp['be1'] = row(params['ln1'][0]), row(params['ln1'][1])
    kp['g2'], kp['be2'] = row(params['ln2'][0]), row(params['ln2'][1])
    w1, b1, w2, b2 = params['ffn']
    kp['fw1'], kp['fb1'] = w1.astype(bf16), row(b1)
    kp['fw2'], kp['fb2'] = w2.astype(bf16), row(b2)

    # LSTM: gate weights (PyTorch order i, f, g, o) padded to 128-lane boundaries so
    # a single (·,Hp)@(Hp,4Hp) matmul per step gives lane-tile-aligned gate slices.
    wih_list, whh_list, b_list = [], [], []
    for (wih, whh, b) in params['lstm']:
        wih_p = jnp.zeros((Hp, 4 * Hp), jnp.float32)
        whh_p = jnp.zeros((Hp, 4 * Hp), jnp.float32)
        b_p = jnp.zeros((1, 4 * Hp), jnp.float32)
        for g in range(4):
            wih_p = wih_p.at[:H, g * Hp:g * Hp + H].set(wih[:, g * H:(g + 1) * H])
            whh_p = whh_p.at[:H, g * Hp:g * Hp + H].set(whh[:, g * H:(g + 1) * H])
            b_p = b_p.at[0, g * Hp:g * Hp + H].set(b[g * H:(g + 1) * H])
        wih_list.append(wih_p.astype(bf16))
        whh_list.append(whh_p.astype(bf16))
        b_list.append(b_p)
    kp['wih'] = jnp.stack(wih_list)      # (L, Hp, 4Hp) bf16
    kp['whh'] = jnp.stack(whh_list)      # (L, Hp, 4Hp) bf16
    kp['blstm'] = jnp.stack(b_list)      # (L, 1, 4Hp) f32

    fw, fb = params['fc']                # (H, 1), (1,)
    kp['fcw'] = jnp.zeros((1, Hp), jnp.float32).at[0, :H].set(fw[:, 0])
    kp['fcb'] = fb.reshape(1, 1)
    return kp


# ------------------------------- forward --------------------------------------
def custom_last_query_forward(params, args, cate_inputs, cont_features, kparams=None):
    if kparams is None:
        kparams = prepare_params(params, args)
    test, question, tag, _correct, mask, interaction, big_features, _index = cate_inputs
    B, S = interaction.shape
    H = args['hidden_dim']
    nH = args['n_heads']
    Dh = H // nH
    Hp = _round_up(H, 128)

    # Embedding lookups (plain-JAX gathers) + concat, same order as the module.
    e_int = params['emb_interaction'][interaction]
    e_test = params['emb_test'][test]
    e_q = params['emb_question'][question]
    e_tag = params['emb_tag'][tag]
    e_big = params['emb_big'][big_features]
    embed_cat = jnp.concatenate([e_int, e_test, e_q, e_big, e_tag], axis=2)
    embed_cat = embed_cat.reshape(B * S, -1)
    cont = cont_features.reshape(B * S, -1).astype(jnp.float32)
    pad = (mask == 0).astype(jnp.float32).reshape(B, 1, S)     # 1.0 -> padded key

    out = fused_forward(embed_cat, cont, pad, kparams,
                        B=B, S=S, H=H, nH=nH, Dh=Dh, Hp=Hp,
                        n_layers=args['n_layers'])
    return out.reshape(B, S)


if __name__ == "__main__":
    args = dict(hidden_dim=48, n_heads=4, n_layers=1, n_test=10, n_questions=20,
                n_tag=15, n_big_features=7, n_cate=5, n_cont=6)
    B, S = 2, 8

    params = init_params(jax.random.PRNGKey(0), args)
    kparams = prepare_params(params, args)

    kk = jax.random.split(jax.random.PRNGKey(0), 8)
    interaction = jax.random.randint(kk[0], (B, S), 0, 3)
    test = jax.random.randint(kk[1], (B, S), 0, args['n_test'] + 1)
    question = jax.random.randint(kk[2], (B, S), 0, args['n_questions'] + 1)
    tag = jax.random.randint(kk[3], (B, S), 0, args['n_tag'] + 1)
    big = jax.random.randint(kk[4], (B, S), 0, args['n_big_features'] + 1)
    correct = jax.random.randint(kk[5], (B, S), 0, 2)
    index = jnp.arange(B * S, dtype=jnp.int32).reshape(B, S)
    # valid positions first, padding (mask==0) at the tail of batch 1
    mask = jnp.ones((B, S), jnp.int32).at[1, 6:].set(0)
    cont = jax.random.normal(kk[6], (B, S, args['n_cont']), jnp.float32)

    cate_inputs = (test, question, tag, correct, mask, interaction, big, index)
    preds = custom_last_query_forward(params, args, cate_inputs, cont, kparams)
    preds = jax.block_until_ready(preds)

    assert preds.shape == (B, S)
    assert bool(jnp.all(jnp.isfinite(preds)))
    assert bool(jnp.all((preds >= 0.0) & (preds <= 1.0)))
    print("KERNEL_OK")
</pallas_src>

<mosaic_0001>
module attributes {stable_mosaic.version = 11 : i64} {
  func.func @fused_kernel(%arg0: i32, %arg1: memref<8x80xf32, #tpu.memory_space<vmem>>, %arg2: memref<8x6xf32, #tpu.memory_space<vmem>>, %arg3: memref<1x1x8xf32, #tpu.memory_space<vmem>>, %arg4: memref<80x24xbf16, #tpu.memory_space<vmem>>, %arg5: memref<1x24xf32, #tpu.memory_space<vmem>>, %arg6: memref<1x24xf32, #tpu.memory_space<vmem>>, %arg7: memref<1x24xf32, #tpu.memory_space<vmem>>, %arg8: memref<6x24xbf16, #tpu.memory_space<vmem>>, %arg9: memref<1x24xf32, #tpu.memory_space<vmem>>, %arg10: memref<1x24xf32, #tpu.memory_space<vmem>>, %arg11: memref<1x24xf32, #tpu.memory_space<vmem>>, %arg12: memref<48x144xbf16, #tpu.memory_space<vmem>>, %arg13: memref<1x144xf32, #tpu.memory_space<vmem>>, %arg14: memref<48x48xbf16, #tpu.memory_space<vmem>>, %arg15: memref<1x48xf32, #tpu.memory_space<vmem>>, %arg16: memref<1x48xf32, #tpu.memory_space<vmem>>, %arg17: memref<1x48xf32, #tpu.memory_space<vmem>>, %arg18: memref<48x48xbf16, #tpu.memory_space<vmem>>, %arg19: memref<1x48xf32, #tpu.memory_space<vmem>>, %arg20: memref<48x48xbf16, #tpu.memory_space<vmem>>, %arg21: memref<1x48xf32, #tpu.memory_space<vmem>>, %arg22: memref<1x48xf32, #tpu.memory_space<vmem>>, %arg23: memref<1x48xf32, #tpu.memory_space<vmem>>, %arg24: memref<1x128x512xbf16, #tpu.memory_space<vmem>>, %arg25: memref<1x128x512xbf16, #tpu.memory_space<vmem>>, %arg26: memref<1x1x512xf32, #tpu.memory_space<vmem>>, %arg27: memref<1x128xf32, #tpu.memory_space<vmem>>, %arg28: memref<1x1xf32, #tpu.memory_space<vmem>>, %arg29: memref<1x1x8xf32, #tpu.memory_space<vmem>>, %arg30: memref<8x128xf32, #tpu.memory_space<vmem>>, %arg31: memref<8x512xf32, #tpu.memory_space<vmem>>) attributes {dimension_semantics = [#tpu.dimension_semantics<parallel>], iteration_bounds = array<i64: 2>, scalar_prefetch = 0 : i64, scratch_operands = 2 : i64, tpu.core_type = #tpu.core_type<tc>, window_params = [{transform_indices = @transform_0, window_bounds = array<i64: 8, 80>}, {transform_indices = @transform_1, window_bounds = array<i64: 8, 6>}, {transform_indices = @transform_2, window_bounds = array<i64: 1, 1, 8>}, {pipeline_mode = #tpu.pipeline_mode<synchronous>, transform_indices = @transform_3, window_bounds = array<i64: 80, 24>}, {pipeline_mode = #tpu.pipeline_mode<synchronous>, transform_indices = @transform_4, window_bounds = array<i64: 1, 24>}, {pipeline_mode = #tpu.pipeline_mode<synchronous>, transform_indices = @transform_5, window_bounds = array<i64: 1, 24>}, {pipeline_mode = #tpu.pipeline_mode<synchronous>, transform_indices = @transform_6, window_bounds = array<i64: 1, 24>}, {pipeline_mode = #tpu.pipeline_mode<synchronous>, transform_indices = @transform_7, window_bounds = array<i64: 6, 24>}, {pipeline_mode = #tpu.pipeline_mode<synchronous>, transform_indices = @transform_8, window_bounds = array<i64: 1, 24>}, {pipeline_mode = #tpu.pipeline_mode<synchronous>, transform_indices = @transform_9, window_bounds = array<i64: 1, 24>}, {pipeline_mode = #tpu.pipeline_mode<synchronous>, transform_indices = @transform_10, window_bounds = array<i64: 1, 24>}, {pipeline_mode = #tpu.pipeline_mode<synchronous>, transform_indices = @transform_11, window_bounds = array<i64: 48, 144>}, {pipeline_mode = #tpu.pipeline_mode<synchronous>, transform_indices = @transform_12, window_bounds = array<i64: 1, 144>}, {pipeline_mode = #tpu.pipeline_mode<synchronous>, transform_indices = @transform_13, window_bounds = array<i64: 48, 48>}, {pipeline_mode = #tpu.pipeline_mode<synchronous>, transform_indices = @transform_14, window_bounds = array<i64: 1, 48>}, {pipeline_mode = #tpu.pipeline_mode<synchronous>, transform_indices = @transform_15, window_bounds = array<i64: 1, 48>}, {pipeline_mode = #tpu.pipeline_mode<synchronous>, transform_indices = @transform_16, window_bounds = array<i64: 1, 48>}, {pipeline_mode = #tpu.pipeline_mode<synchronous>, transform_indices = @transform_17, window_bounds = array<i64: 48, 48>}, {pipeline_mode = #tpu.pipeline_mode<synchronous>, transform_indices = @transform_18, window_bounds = array<i64: 1, 48>}, {pipeline_mode = #tpu.pipeline_mode<synchronous>, transform_indices = @transform_19, window_bounds = array<i64: 48, 48>}, {pipeline_mode = #tpu.pipeline_mode<synchronous>, transform_indices = @transform_20, window_bounds = array<i64: 1, 48>}, {pipeline_mode = #tpu.pipeline_mode<synchronous>, transform_indices = @transform_21, window_bounds = array<i64: 1, 48>}, {pipeline_mode = #tpu.pipeline_mode<synchronous>, transform_indices = @transform_22, window_bounds = array<i64: 1, 48>}, {pipeline_mode = #tpu.pipeline_mode<synchronous>, transform_indices = @transform_23, window_bounds = array<i64: 1, 128, 512>}, {pipeline_mode = #tpu.pipeline_mode<synchronous>, transform_indices = @transform_24, window_bounds = array<i64: 1, 128, 512>}, {pipeline_mode = #tpu.pipeline_mode<synchronous>, transform_indices = @transform_25, window_bounds = array<i64: 1, 1, 512>}, {pipeline_mode = #tpu.pipeline_mode<synchronous>, transform_indices = @transform_26, window_bounds = array<i64: 1, 128>}, {pipeline_mode = #tpu.pipeline_mode<synchronous>, transform_indices = @transform_27, window_bounds = array<i64: 1, 1>}, {transform_indices = @transform_28, window_bounds = array<i64: 1, 1, 8>}]} {
    %c0 = arith.constant 0 : index
    %c0_0 = arith.constant 0 : index
    %0 = vector.load %arg1[%c0, %c0_0] : memref<8x80xf32, #tpu.memory_space<vmem>>, vector<8x80xf32>
    %1 = arith.truncf %0 : vector<8x80xf32> to vector<8x80xbf16>
    %c0_1 = arith.constant 0 : index
    %c0_2 = arith.constant 0 : index
    %2 = vector.load %arg4[%c0_1, %c0_2] : memref<80x24xbf16, #tpu.memory_space<vmem>>, vector<80x24xbf16>
    %cst = arith.constant dense<0.000000e+00> : vector<8x24xf32>
    %3 = tpu.matmul %1, %2, %cst {dimension_numbers = #tpu.dot_dimension_numbers<[1], [0], [0], [1], [0, 0, 1, 1], [], []>} : vector<8x80xbf16>, vector<80x24xbf16>, vector<8x24xf32> -> vector<8x24xf32>
    %c0_3 = arith.constant 0 : index
    %c0_4 = arith.constant 0 : index
    %4 = vector.load %arg5[%c0_3, %c0_4] : memref<1x24xf32, #tpu.memory_space<vmem>>, vector<1x24xf32>
    %5 = vector.broadcast %4 : vector<1x24xf32> to vector<8x24xf32>
    %6 = arith.addf %3, %5 : vector<8x24xf32>
    %c0_5 = arith.constant 0 : index
    %c0_6 = arith.constant 0 : index
    %7 = vector.load %arg6[%c0_5, %c0_6] : memref<1x24xf32, #tpu.memory_space<vmem>>, vector<1x24xf32>
    %c0_7 = arith.constant 0 : index
    %c0_8 = arith.constant 0 : index
    %8 = vector.load %arg7[%c0_7, %c0_8] : memref<1x24xf32, #tpu.memory_space<vmem>>, vector<1x24xf32>
    %cst_9 = arith.constant dense<0.000000e+00> : vector<8xf32>
    %9 = vector.multi_reduction <add>, %6, %cst_9 [1] : vector<8x24xf32> to vector<8xf32>
    %10 = vector.shape_cast %9 : vector<8xf32> to vector<8x1xf32>
    %cst_10 = arith.constant 2.400000e+01 : f32
    %11 = vector.broadcast %cst_10 : f32 to vector<8x1xf32>
    %12 = arith.divf %10, %11 : vector<8x1xf32>
    %13 = vector.broadcast %12 : vector<8x1xf32> to vector<8x24xf32>
    %14 = arith.subf %6, %13 : vector<8x24xf32>
    %15 = arith.mulf %14, %14 : vector<8x24xf32>
    %cst_11 = arith.constant dense<0.000000e+00> : vector<8xf32>
    %16 = vector.multi_reduction <add>, %15, %cst_11 [1] : vector<8x24xf32> to vector<8xf32>
    %17 = vector.shape_cast %16 : vector<8xf32> to vector<8x1xf32>
    %cst_12 = arith.constant 2.400000e+01 : f32
    %18 = vector.broadcast %cst_12 : f32 to vector<8x1xf32>
    %19 = arith.divf %17, %18 : vector<8x1xf32>
    %20 = vector.broadcast %12 : vector<8x1xf32> to vector<8x24xf32>
    %21 = arith.subf %6, %20 : vector<8x24xf32>
    %cst_13 = arith.constant 9.99999974E-6 : f32
    %22 = vector.broadcast %cst_13 : f32 to vector<8x1xf32>
    %23 = arith.addf %19, %22 : vector<8x1xf32>
    %24 = math.rsqrt %23 : vector<8x1xf32>
    %25 = vector.broadcast %24 : vector<8x1xf32> to vector<8x24xf32>
    %26 = arith.mulf %21, %25 : vector<8x24xf32>
    %27 = vector.broadcast %7 : vector<1x24xf32> to vector<8x24xf32>
    %28 = arith.mulf %26, %27 : vector<8x24xf32>
    %29 = vector.broadcast %8 : vector<1x24xf32> to vector<8x24xf32>
    %30 = arith.addf %28, %29 : vector<8x24xf32>
    %c0_14 = arith.constant 0 : index
    %c0_15 = arith.constant 0 : index
    %31 = vector.load %arg2[%c0_14, %c0_15] : memref<8x6xf32, #tpu.memory_space<vmem>>, vector<8x6xf32>
    %32 = arith.truncf %31 : vector<8x6xf32> to vector<8x6xbf16>
    %c0_16 = arith.constant 0 : index
    %c0_17 = arith.constant 0 : index
    %33 = vector.load %arg8[%c0_16, %c0_17] : memref<6x24xbf16, #tpu.memory_space<vmem>>, vector<6x24xbf16>
    %cst_18 = arith.constant dense<0.000000e+00> : vector<8x24xf32>
    %34 = tpu.matmul %32, %33, %cst_18 {dimension_numbers = #tpu.dot_dimension_numbers<[1], [0], [0], [1], [0, 0, 1, 1], [], []>} : vector<8x6xbf16>, vector<6x24xbf16>, vector<8x24xf32> -> vector<8x24xf32>
    %c0_19 = arith.constant 0 : index
    %c0_20 = arith.constant 0 : index
    %35 = vector.load %arg9[%c0_19, %c0_20] : memref<1x24xf32, #tpu.memory_space<vmem>>, vector<1x24xf32>
    %36 = vector.broadcast %35 : vector<1x24xf32> to vector<8x24xf32>
    %37 = arith.addf %34, %36 : vector<8x24xf32>
    %c0_21 = arith.constant 0 : index
    %c0_22 = arith.constant 0 : index
    %38 = vector.load %arg10[%c0_21, %c0_22] : memref<1x24xf32, #tpu.memory_space<vmem>>, vector<1x24xf32>
    %c0_23 = arith.constant 0 : index
    %c0_24 = arith.constant 0 : index
    %39 = vector.load %arg11[%c0_23, %c0_24] : memref<1x24xf32, #tpu.memory_space<vmem>>, vector<1x24xf32>
    %cst_25 = arith.constant dense<0.000000e+00> : vector<8xf32>
    %40 = vector.multi_reduction <add>, %37, %cst_25 [1] : vector<8x24xf32> to vector<8xf32>
    %41 = vector.shape_cast %40 : vector<8xf32> to vector<8x1xf32>
    %cst_26 = arith.constant 2.400000e+01 : f32
    %42 = vector.broadcast %cst_26 : f32 to vector<8x1xf32>
    %43 = arith.divf %41, %42 : vector<8x1xf32>
    %44 = vector.broadcast %43 : vector<8x1xf32> to vector<8x24xf32>
    %45 = arith.subf %37, %44 : vector<8x24xf32>
    %46 = arith.mulf %45, %45 : vector<8x24xf32>
    %cst_27 = arith.constant dense<0.000000e+00> : vector<8xf32>
    %47 = vector.multi_reduction <add>, %46, %cst_27 [1] : vector<8x24xf32> to vector<8xf32>
    %48 = vector.shape_cast %47 : vector<8xf32> to vector<8x1xf32>
    %cst_28 = arith.constant 2.400000e+01 : f32
    %49 = vector.broadcast %cst_28 : f32 to vector<8x1xf32>
    %50 = arith.divf %48, %49 : vector<8x1xf32>
    %51 = vector.broadcast %43 : vector<8x1xf32> to vector<8x24xf32>
    %52 = arith.subf %37, %51 : vector<8x24xf32>
    %cst_29 = arith.constant 9.99999974E-6 : f32
    %53 = vector.broadcast %cst_29 : f32 to vector<8x1xf32>
    %54 = arith.addf %50, %53 : vector<8x1xf32>
    %55 = math.rsqrt %54 : vector<8x1xf32>
    %56 = vector.broadcast %55 : vector<8x1xf32> to vector<8x24xf32>
    %57 = arith.mulf %52, %56 : vector<8x24xf32>
    %58 = vector.broadcast %38 : vector<1x24xf32> to vector<8x24xf32>
    %59 = arith.mulf %57, %58 : vector<8x24xf32>
    %60 = vector.broadcast %39 : vector<1x24xf32> to vector<8x24xf32>
    %61 = arith.addf %59, %60 : vector<8x24xf32>
    %62 = tpu.concatenate %30, %61 in 1 : vector<8x24xf32>, vector<8x24xf32> -> vector<8x48xf32>
    %63 = arith.truncf %62 : vector<8x48xf32> to vector<8x48xbf16>
    %c0_30 = arith.constant 0 : index
    %c0_31 = arith.constant 0 : index
    %64 = vector.load %arg12[%c0_30, %c0_31] : memref<48x144xbf16, #tpu.memory_space<vmem>>, vector<48x144xbf16>
    %cst_32 = arith.constant dense<0.000000e+00> : vector<8x144xf32>
    %65 = tpu.matmul %63, %64, %cst_32 {dimension_numbers = #tpu.dot_dimension_numbers<[1], [0], [0], [1], [0, 0, 1, 1], [], []>} : vector<8x48xbf16>, vector<48x144xbf16>, vector<8x144xf32> -> vector<8x144xf32>
    %c0_33 = arith.constant 0 : index
    %c0_34 = arith.constant 0 : index
    %66 = vector.load %arg13[%c0_33, %c0_34] : memref<1x144xf32, #tpu.memory_space<vmem>>, vector<1x144xf32>
    %67 = vector.broadcast %66 : vector<1x144xf32> to vector<8x144xf32>
    %68 = arith.addf %65, %67 : vector<8x144xf32>
    %69 = arith.truncf %68 : vector<8x144xf32> to vector<8x144xbf16>
    %70 = vector.extract_strided_slice %69 {offsets = [0, 0], sizes = [8, 12], strides = [1, 1]} : vector<8x144xbf16> to vector<8x12xbf16>
    %71 = vector.extract_strided_slice %69 {offsets = [0, 12], sizes = [8, 12], strides = [1, 1]} : vector<8x144xbf16> to vector<8x12xbf16>
    %72 = vector.extract_strided_slice %69 {offsets = [0, 24], sizes = [8, 12], strides = [1, 1]} : vector<8x144xbf16> to vector<8x12xbf16>
    %73 = vector.extract_strided_slice %69 {offsets = [0, 36], sizes = [8, 12], strides = [1, 1]} : vector<8x144xbf16> to vector<8x12xbf16>
    %74 = vector.shape_cast %70 : vector<8x12xbf16> to vector<1x8x12xbf16>
    %75 = vector.shape_cast %71 : vector<8x12xbf16> to vector<1x8x12xbf16>
    %76 = vector.shape_cast %72 : vector<8x12xbf16> to vector<1x8x12xbf16>
    %77 = vector.shape_cast %73 : vector<8x12xbf16> to vector<1x8x12xbf16>
    %78 = tpu.concatenate %74, %75, %76, %77 in 0 : vector<1x8x12xbf16>, vector<1x8x12xbf16>, vector<1x8x12xbf16>, vector<1x8x12xbf16> -> vector<4x8x12xbf16>
    %79 = vector.extract_strided_slice %69 {offsets = [0, 48], sizes = [8, 12], strides = [1, 1]} : vector<8x144xbf16> to vector<8x12xbf16>
    %80 = vector.extract_strided_slice %69 {offsets = [0, 60], sizes = [8, 12], strides = [1, 1]} : vector<8x144xbf16> to vector<8x12xbf16>
    %81 = vector.extract_strided_slice %69 {offsets = [0, 72], sizes = [8, 12], strides = [1, 1]} : vector<8x144xbf16> to vector<8x12xbf16>
    %82 = vector.extract_strided_slice %69 {offsets = [0, 84], sizes = [8, 12], strides = [1, 1]} : vector<8x144xbf16> to vector<8x12xbf16>
    %83 = vector.shape_cast %79 : vector<8x12xbf16> to vector<1x8x12xbf16>
    %84 = vector.shape_cast %80 : vector<8x12xbf16> to vector<1x8x12xbf16>
    %85 = vector.shape_cast %81 : vector<8x12xbf16> to vector<1x8x12xbf16>
    %86 = vector.shape_cast %82 : vector<8x12xbf16> to vector<1x8x12xbf16>
    %87 = tpu.concatenate %83, %84, %85, %86 in 0 : vector<1x8x12xbf16>, vector<1x8x12xbf16>, vector<1x8x12xbf16>, vector<1x8x12xbf16> -> vector<4x8x12xbf16>
    %88 = vector.extract_strided_slice %69 {offsets = [0, 96], sizes = [8, 12], strides = [1, 1]} : vector<8x144xbf16> to vector<8x12xbf16>
    %89 = vector.extract_strided_slice %69 {offsets = [0, 108], sizes = [8, 12], strides = [1, 1]} : vector<8x144xbf16> to vector<8x12xbf16>
    %90 = vector.extract_strided_slice %69 {offsets = [0, 120], sizes = [8, 12], strides = [1, 1]} : vector<8x144xbf16> to vector<8x12xbf16>
    %91 = vector.extract_strided_slice %69 {offsets = [0, 132], sizes = [8, 12], strides = [1, 1]} : vector<8x144xbf16> to vector<8x12xbf16>
    %92 = vector.shape_cast %88 : vector<8x12xbf16> to vector<1x8x12xbf16>
    %93 = vector.shape_cast %89 : vector<8x12xbf16> to vector<1x8x12xbf16>
    %94 = vector.shape_cast %90 : vector<8x12xbf16> to vector<1x8x12xbf16>
    %95 = vector.shape_cast %91 : vector<8x12xbf16> to vector<1x8x12xbf16>
    %96 = tpu.concatenate %92, %93, %94, %95 in 0 : vector<1x8x12xbf16>, vector<1x8x12xbf16>, vector<1x8x12xbf16>, vector<1x8x12xbf16> -> vector<4x8x12xbf16>
    %97 = tpu.iota {dimensions = array<i32: 0>} : vector<8x8xi32>
    %98 = tpu.iota {dimensions = array<i32: 1>} : vector<8x8xi32>
    %99 = arith.cmpi sgt, %98, %97 : vector<8x8xi32>
    %100 = vector.shape_cast %99 : vector<8x8xi1> to vector<1x8x8xi1>
    %c0_35 = arith.constant 0 : index
    %c0_36 = arith.constant 0 : index
    %c0_37 = arith.constant 0 : index
    %101 = vector.load %arg3[%c0_35, %c0_36, %c0_37] : memref<1x1x8xf32, #tpu.memory_space<vmem>>, vector<1x1x8xf32>
    %cst_38 = arith.constant 5.000000e-01 : f32
    %102 = vector.broadcast %cst_38 : f32 to vector<1x1x8xf32>
    %103 = arith.cmpf ogt, %101, %102 : vector<1x1x8xf32>
    %104 = vector.broadcast %103 : vector<1x1x8xi1> to vector<1x8x8xi1>
    %105 = arith.ori %100, %104 : vector<1x8x8xi1>
    "tpu.trace_start"() <{level = 10 : i32, message = "hqd,hkd->hqk"}> : () -> ()
    %cst_39 = arith.constant dense<0.000000e+00> : vector<4x8x8xf32>
    %106 = tpu.matmul %78, %87, %cst_39 {dimension_numbers = #tpu.dot_dimension_numbers<[2], [2], [1], [1], [0, 0, 0, 1, 1, 1], [0], [0]>} : vector<4x8x12xbf16>, vector<4x8x12xbf16>, vector<4x8x8xf32> -> vector<4x8x8xf32>
    %cst_40 = arith.constant -1.000000e+30 : f32
    "tpu.trace_stop"() : () -> ()
    %107 = vector.shape_cast %105 : vector<1x8x8xi1> to vector<1x8x8xi1>
    %108 = vector.broadcast %107 : vector<1x8x8xi1> to vector<4x8x8xi1>
    %109 = vector.broadcast %cst_40 : f32 to vector<4x8x8xf32>
    %110 = arith.select %108, %109, %106 : vector<4x8x8xi1>, vector<4x8x8xf32>
    %cst_41 = arith.constant dense<0xFF800000> : vector<4x8xf32>
    %111 = vector.multi_reduction <maximumf>, %110, %cst_41 [2] : vector<4x8x8xf32> to vector<4x8xf32>
    %112 = vector.shape_cast %111 : vector<4x8xf32> to vector<4x8x1xf32>
    %113 = vector.broadcast %112 : vector<4x8x1xf32> to vector<4x8x8xf32>
    %114 = arith.subf %110, %113 : vector<4x8x8xf32>
    %115 = math.exp %114 : vector<4x8x8xf32>
    %cst_42 = arith.constant dense<0.000000e+00> : vector<4x8xf32>
    %116 = vector.multi_reduction <add>, %115, %cst_42 [2] : vector<4x8x8xf32> to vector<4x8xf32>
    %117 = vector.shape_cast %116 : vector<4x8xf32> to vector<4x8x1xf32>
    %118 = tpu.reciprocal %117 {approx = true} : vector<4x8x1xf32> -> vector<4x8x1xf32>
    %119 = vector.broadcast %118 : vector<4x8x1xf32> to vector<4x8x8xf32>
    %120 = arith.mulf %115, %119 : vector<4x8x8xf32>
    %121 = arith.truncf %120 : vector<4x8x8xf32> to vector<4x8x8xbf16>
    "tpu.trace_start"() <{level = 10 : i32, message = "hqk,hkd->hqd"}> : () -> ()
    %cst_43 = arith.constant dense<0.000000e+00> : vector<4x8x12xf32>
    %122 = tpu.matmul %121, %96, %cst_43 {dimension_numbers = #tpu.dot_dimension_numbers<[2], [1], [1], [2], [0, 0, 0, 1, 1, 2], [0], [0]>} : vector<4x8x8xbf16>, vector<4x8x12xbf16>, vector<4x8x12xf32> -> vector<4x8x12xf32>
    "tpu.trace_stop"() : () -> ()
    %123 = vector.extract_strided_slice %122 {offsets = [0, 0, 0], sizes = [1, 8, 12], strides = [1, 1, 1]} : vector<4x8x12xf32> to vector<1x8x12xf32>
    %124 = vector.shape_cast %123 : vector<1x8x12xf32> to vector<8x12xf32>
    %125 = vector.extract_strided_slice %122 {offsets = [1, 0, 0], sizes = [1, 8, 12], strides = [1, 1, 1]} : vector<4x8x12xf32> to vector<1x8x12xf32>
    %126 = vector.shape_cast %125 : vector<1x8x12xf32> to vector<8x12xf32>
    %127 = vector.extract_strided_slice %122 {offsets = [2, 0, 0], sizes = [1, 8, 12], strides = [1, 1, 1]} : vector<4x8x12xf32> to vector<1x8x12xf32>
    %128 = vector.shape_cast %127 : vector<1x8x12xf32> to vector<8x12xf32>
    %129 = vector.extract_strided_slice %122 {offsets = [3, 0, 0], sizes = [1, 8, 12], strides = [1, 1, 1]} : vector<4x8x12xf32> to vector<1x8x12xf32>
    %130 = vector.shape_cast %129 : vector<1x8x12xf32> to vector<8x12xf32>
    %131 = tpu.concatenate %124, %126, %128, %130 in 1 : vector<8x12xf32>, vector<8x12xf32>, vector<8x12xf32>, vector<8x12xf32> -> vector<8x48xf32>
    %132 = arith.truncf %131 : vector<8x48xf32> to vector<8x48xbf16>
    %c0_44 = arith.constant 0 : index
    %c0_45 = arith.constant 0 : index
    %133 = vector.load %arg14[%c0_44, %c0_45] : memref<48x48xbf16, #tpu.memory_space<vmem>>, vector<48x48xbf16>
    %cst_46 = arith.constant dense<0.000000e+00> : vector<8x48xf32>
    %134 = tpu.matmul %132, %133, %cst_46 {dimension_numbers = #tpu.dot_dimension_numbers<[1], [0], [0], [1], [0, 0, 1, 1], [], []>} : vector<8x48xbf16>, vector<48x48xbf16>, vector<8x48xf32> -> vector<8x48xf32>
    %c0_47 = arith.constant 0 : index
    %c0_48 = arith.constant 0 : index
    %135 = vector.load %arg15[%c0_47, %c0_48] : memref<1x48xf32, #tpu.memory_space<vmem>>, vector<1x48xf32>
    %136 = vector.broadcast %135 : vector<1x48xf32> to vector<8x48xf32>
    %137 = arith.addf %134, %136 : vector<8x48xf32>
    %138 = arith.addf %62, %137 : vector<8x48xf32>
    %c0_49 = arith.constant 0 : index
    %c0_50 = arith.constant 0 : index
    %139 = vector.load %arg16[%c0_49, %c0_50] : memref<1x48xf32, #tpu.memory_space<vmem>>, vector<1x48xf32>
    %c0_51 = arith.constant 0 : index
    %c0_52 = arith.constant 0 : index
    %140 = vector.load %arg17[%c0_51, %c0_52] : memref<1x48xf32, #tpu.memory_space<vmem>>, vector<1x48xf32>
    %cst_53 = arith.constant dense<0.000000e+00> : vector<8xf32>
    %141 = vector.multi_reduction <add>, %138, %cst_53 [1] : vector<8x48xf32> to vector<8xf32>
    %142 = vector.shape_cast %141 : vector<8xf32> to vector<8x1xf32>
    %cst_54 = arith.constant 4.800000e+01 : f32
    %143 = vector.broadcast %cst_54 : f32 to vector<8x1xf32>
    %144 = arith.divf %142, %143 : vector<8x1xf32>
    %145 = vector.broadcast %144 : vector<8x1xf32> to vector<8x48xf32>
    %146 = arith.subf %138, %145 : vector<8x48xf32>
    %147 = arith.mulf %146, %146 : vector<8x48xf32>
    %cst_55 = arith.constant dense<0.000000e+00> : vector<8xf32>
    %148 = vector.multi_reduction <add>, %147, %cst_55 [1] : vector<8x48xf32> to vector<8xf32>
    %149 = vector.shape_cast %148 : vector<8xf32> to vector<8x1xf32>
    %cst_56 = arith.constant 4.800000e+01 : f32
    %150 = vector.broadcast %cst_56 : f32 to vector<8x1xf32>
    %151 = arith.divf %149, %150 : vector<8x1xf32>
    %152 = vector.broadcast %144 : vector<8x1xf32> to vector<8x48xf32>
    %153 = arith.subf %138, %152 : vector<8x48xf32>
    %cst_57 = arith.constant 9.99999974E-6 : f32
    %154 = vector.broadcast %cst_57 : f32 to vector<8x1xf32>
    %155 = arith.addf %151, %154 : vector<8x1xf32>
    %156 = math.rsqrt %155 : vector<8x1xf32>
    %157 = vector.broadcast %156 : vector<8x1xf32> to vector<8x48xf32>
    %158 = arith.mulf %153, %157 : vector<8x48xf32>
    %159 = vector.broadcast %139 : vector<1x48xf32> to vector<8x48xf32>
    %160 = arith.mulf %158, %159 : vector<8x48xf32>
    %161 = vector.broadcast %140 : vector<1x48xf32> to vector<8x48xf32>
    %162 = arith.addf %160, %161 : vector<8x48xf32>
    %163 = arith.truncf %162 : vector<8x48xf32> to vector<8x48xbf16>
    %c0_58 = arith.constant 0 : index
    %c0_59 = arith.constant 0 : index
    %164 = vector.load %arg18[%c0_58, %c0_59] : memref<48x48xbf16, #tpu.memory_space<vmem>>, vector<48x48xbf16>
    %cst_60 = arith.constant dense<0.000000e+00> : vector<8x48xf32>
    %165 = tpu.matmul %163, %164, %cst_60 {dimension_numbers = #tpu.dot_dimension_numbers<[1], [0], [0], [1], [0, 0, 1, 1], [], []>} : vector<8x48xbf16>, vector<48x48xbf16>, vector<8x48xf32> -> vector<8x48xf32>
    %c0_61 = arith.constant 0 : index
    %c0_62 = arith.constant 0 : index
    %166 = vector.load %arg19[%c0_61, %c0_62] : memref<1x48xf32, #tpu.memory_space<vmem>>, vector<1x48xf32>
    %167 = vector.broadcast %166 : vector<1x48xf32> to vector<8x48xf32>
    %168 = arith.addf %165, %167 : vector<8x48xf32>
    %cst_63 = arith.constant 0.000000e+00 : f32
    %169 = vector.broadcast %cst_63 : f32 to vector<8x48xf32>
    %170 = arith.maximumf %168, %169 : vector<8x48xf32>
    %171 = arith.truncf %170 : vector<8x48xf32> to vector<8x48xbf16>
    %c0_64 = arith.constant 0 : index
    %c0_65 = arith.constant 0 : index
    %172 = vector.load %arg20[%c0_64, %c0_65] : memref<48x48xbf16, #tpu.memory_space<vmem>>, vector<48x48xbf16>
    %cst_66 = arith.constant dense<0.000000e+00> : vector<8x48xf32>
    %173 = tpu.matmul %171, %172, %cst_66 {dimension_numbers = #tpu.dot_dimension_numbers<[1], [0], [0], [1], [0, 0, 1, 1], [], []>} : vector<8x48xbf16>, vector<48x48xbf16>, vector<8x48xf32> -> vector<8x48xf32>
    %c0_67 = arith.constant 0 : index
    %c0_68 = arith.constant 0 : index
    %174 = vector.load %arg21[%c0_67, %c0_68] : memref<1x48xf32, #tpu.memory_space<vmem>>, vector<1x48xf32>
    %175 = vector.broadcast %174 : vector<1x48xf32> to vector<8x48xf32>
    %176 = arith.addf %173, %175 : vector<8x48xf32>
    %177 = arith.addf %62, %176 : vector<8x48xf32>
    %c0_69 = arith.constant 0 : index
    %c0_70 = arith.constant 0 : index
    %178 = vector.load %arg22[%c0_69, %c0_70] : memref<1x48xf32, #tpu.memory_space<vmem>>, vector<1x48xf32>
    %c0_71 = arith.constant 0 : index
    %c0_72 = arith.constant 0 : index
    %179 = vector.load %arg23[%c0_71, %c0_72] : memref<1x48xf32, #tpu.memory_space<vmem>>, vector<1x48xf32>
    %cst_73 = arith.constant dense<0.000000e+00> : vector<8xf32>
    %180 = vector.multi_reduction <add>, %177, %cst_73 [1] : vector<8x48xf32> to vector<8xf32>
    %181 = vector.shape_cast %180 : vector<8xf32> to vector<8x1xf32>
    %cst_74 = arith.constant 4.800000e+01 : f32
    %182 = vector.broadcast %cst_74 : f32 to vector<8x1xf32>
    %183 = arith.divf %181, %182 : vector<8x1xf32>
    %184 = vector.broadcast %183 : vector<8x1xf32> to vector<8x48xf32>
    %185 = arith.subf %177, %184 : vector<8x48xf32>
    %186 = arith.mulf %185, %185 : vector<8x48xf32>
    %cst_75 = arith.constant dense<0.000000e+00> : vector<8xf32>
    %187 = vector.multi_reduction <add>, %186, %cst_75 [1] : vector<8x48xf32> to vector<8xf32>
    %188 = vector.shape_cast %187 : vector<8xf32> to vector<8x1xf32>
    %cst_76 = arith.constant 4.800000e+01 : f32
    %189 = vector.broadcast %cst_76 : f32 to vector<8x1xf32>
    %190 = arith.divf %188, %189 : vector<8x1xf32>
    %191 = vector.broadcast %183 : vector<8x1xf32> to vector<8x48xf32>
    %192 = arith.subf %177, %191 : vector<8x48xf32>
    %cst_77 = arith.constant 9.99999974E-6 : f32
    %193 = vector.broadcast %cst_77 : f32 to vector<8x1xf32>
    %194 = arith.addf %190, %193 : vector<8x1xf32>
    %195 = math.rsqrt %194 : vector<8x1xf32>
    %196 = vector.broadcast %195 : vector<8x1xf32> to vector<8x48xf32>
    %197 = arith.mulf %192, %196 : vector<8x48xf32>
    %198 = vector.broadcast %178 : vector<1x48xf32> to vector<8x48xf32>
    %199 = arith.mulf %197, %198 : vector<8x48xf32>
    %200 = vector.broadcast %179 : vector<1x48xf32> to vector<8x48xf32>
    %201 = arith.addf %199, %200 : vector<8x48xf32>
    %cst_78 = arith.constant 0.000000e+00 : f32
    %202 = vector.broadcast %cst_78 : f32 to vector<8x80xf32>
    %203 = tpu.concatenate %201, %202 in 1 : vector<8x48xf32>, vector<8x80xf32> -> vector<8x128xf32>
    %c0_79 = arith.constant 0 : index
    %c0_80 = arith.constant 0 : index
    %204 = vector.load %arg30[%c0_79, %c0_80] : memref<8x128xf32, #tpu.memory_space<vmem>>, vector<8x128xf32>
    tpu.vector_store %arg30[%c0_79, %c0_80], %203 {strides = array<i32>} : memref<8x128xf32, #tpu.memory_space<vmem>>, vector<8x128xf32>,
    %c0_81 = arith.constant 0 : index
    %c0_82 = arith.constant 0 : index
    %205 = vector.load %arg27[%c0_81, %c0_82] : memref<1x128xf32, #tpu.memory_space<vmem>>, vector<1x128xf32>
    %c0_83 = arith.constant 0 : index
    %c0_84 = arith.constant 0 : index
    %206 = vector.load %arg28[%c0_83, %c0_84] : memref<1x1xf32, #tpu.memory_space<vmem>>, vector<1x1xf32>
    %207 = tpu.iota {dimensions = array<i32: 1>} : vector<1x8xi32>
    %cst_85 = arith.constant 0.000000e+00 : f32
    %208 = vector.broadcast %cst_85 : f32 to vector<1x8xf32>
    %c0_86 = arith.constant 0 : index
    %c0_87 = arith.constant 0 : index
    %209 = vector.load %arg30[%c0_86, %c0_87] : memref<8x128xf32, #tpu.memory_space<vmem>>, vector<8x128xf32>
    %210 = arith.truncf %209 : vector<8x128xf32> to vector<8x128xbf16>
    %c0_88 = arith.constant 0 : index
    %c0_89 = arith.constant 0 : index
    %c0_90 = arith.constant 0 : index
    %211 = vector.load %arg24[%c0_88, %c0_89, %c0_90] : memref<1x128x512xbf16, #tpu.memory_space<vmem>>, vector<1x128x512xbf16>
    %212 = vector.shape_cast %211 : vector<1x128x512xbf16> to vector<128x512xbf16>
    %cst_91 = arith.constant dense<0.000000e+00> : vector<8x512xf32>
    %213 = tpu.matmul %210, %212, %cst_91 {dimension_numbers = #tpu.dot_dimension_numbers<[1], [0], [0], [1], [0, 0, 1, 1], [], []>} : vector<8x128xbf16>, vector<128x512xbf16>, vector<8x512xf32> -> vector<8x512xf32>
    %c0_92 = arith.constant 0 : index
    %c0_93 = arith.constant 0 : index
    %c0_94 = arith.constant 0 : index
    %214 = vector.load %arg26[%c0_92, %c0_93, %c0_94] : memref<1x1x512xf32, #tpu.memory_space<vmem>>, vector<1x1x512xf32>
    %215 = vector.shape_cast %214 : vector<1x1x512xf32> to vector<1x512xf32>
    %216 = vector.broadcast %215 : vector<1x512xf32> to vector<8x512xf32>
    %217 = arith.addf %213, %216 : vector<8x512xf32>
    %c0_95 = arith.constant 0 : index
    %c0_96 = arith.constant 0 : index
    %218 = vector.load %arg31[%c0_95, %c0_96] : memref<8x512xf32, #tpu.memory_space<vmem>>, vector<8x512xf32>
    tpu.vector_store %arg31[%c0_95, %c0_96], %217 {strides = array<i32>} : memref<8x512xf32, #tpu.memory_space<vmem>>, vector<8x512xf32>,
    %c0_97 = arith.constant 0 : index
    %c0_98 = arith.constant 0 : index
    %c0_99 = arith.constant 0 : index
    %219 = vector.load %arg25[%c0_97, %c0_98, %c0_99] : memref<1x128x512xbf16, #tpu.memory_space<vmem>>, vector<1x128x512xbf16>
    %220 = vector.shape_cast %219 : vector<1x128x512xbf16> to vector<128x512xbf16>
    %cst_100 = arith.constant 0.000000e+00 : f32
    %221 = vector.broadcast %cst_100 : f32 to vector<1x128xf32>
    %cst_101 = arith.constant 0.000000e+00 : f32
    %222 = vector.broadcast %cst_101 : f32 to vector<1x128xf32>
    %c0_i32 = arith.constant 0 : i32
    %223 = arith.index_cast %c0_i32 : i32 to index
    %c0_102 = arith.constant 0 : index
    %224 = vector.load %arg31[%223, %c0_102] : memref<8x512xf32, #tpu.memory_space<vmem>>, vector<1x512xf32>
    %225 = arith.truncf %221 : vector<1x128xf32> to vector<1x128xbf16>
    %cst_103 = arith.constant dense<0.000000e+00> : vector<1x512xf32>
    %226 = tpu.matmul %225, %220, %cst_103 {dimension_numbers = #tpu.dot_dimension_numbers<[1], [0], [0], [1], [0, 0, 1, 1], [], []>} : vector<1x128xbf16>, vector<128x512xbf16>, vector<1x512xf32> -> vector<1x512xf32>
    %227 = arith.addf %224, %226 : vector<1x512xf32>
    %228 = vector.extract_strided_slice %227 {offsets = [0, 0], sizes = [1, 128], strides = [1, 1]} : vector<1x512xf32> to vector<1x128xf32>
    %229 = arith.negf %228 : vector<1x128xf32>
    %230 = math.exp %229 : vector<1x128xf32>
    %cst_104 = arith.constant 1.000000e+00 : f32
    %231 = vector.broadcast %cst_104 : f32 to vector<1x128xf32>
    %232 = arith.addf %231, %230 : vector<1x128xf32>
    %233 = arith.divf %231, %232 : vector<1x128xf32>
    %234 = vector.extract_strided_slice %227 {offsets = [0, 128], sizes = [1, 128], strides = [1, 1]} : vector<1x512xf32> to vector<1x128xf32>
    %235 = arith.negf %234 : vector<1x128xf32>
    %236 = math.exp %235 : vector<1x128xf32>
    %cst_105 = arith.constant 1.000000e+00 : f32
    %237 = vector.broadcast %cst_105 : f32 to vector<1x128xf32>
    %238 = arith.addf %237, %236 : vector<1x128xf32>
    %239 = arith.divf %237, %238 : vector<1x128xf32>
    %240 = vector.extract_strided_slice %227 {offsets = [0, 256], sizes = [1, 128], strides = [1, 1]} : vector<1x512xf32> to vector<1x128xf32>
    %241 = math.tanh %240 : vector<1x128xf32>
    %242 = vector.extract_strided_slice %227 {offsets = [0, 384], sizes = [1, 128], strides = [1, 1]} : vector<1x512xf32> to vector<1x128xf32>
    %243 = arith.negf %242 : vector<1x128xf32>
    %244 = math.exp %243 : vector<1x128xf32>
    %cst_106 = arith.constant 1.000000e+00 : f32
    %245 = vector.broadcast %cst_106 : f32 to vector<1x128xf32>
    %246 = arith.addf %245, %244 : vector<1x128xf32>
    %247 = arith.divf %245, %246 : vector<1x128xf32>
    %248 = arith.mulf %239, %222 : vector<1x128xf32>
    %249 = arith.mulf %233, %241 : vector<1x128xf32>
    %250 = arith.addf %248, %249 : vector<1x128xf32>
    %251 = math.tanh %250 : vector<1x128xf32>
    %252 = arith.mulf %247, %251 : vector<1x128xf32>
    %253 = arith.mulf %252, %205 : vector<1x128xf32>
    %cst_107 = arith.constant dense<0.000000e+00> : vector<1xf32>
    %254 = vector.multi_reduction <add>, %253, %cst_107 [1] : vector<1x128xf32> to vector<1xf32>
    %255 = vector.shape_cast %254 : vector<1xf32> to vector<1x1xf32>
    %256 = arith.addf %255, %206 : vector<1x1xf32>
    %257 = vector.broadcast %c0_i32 : i32 to vector<1x8xi32>
    %258 = arith.cmpi eq, %207, %257 : vector<1x8xi32>
    %259 = vector.shape_cast %256 : vector<1x1xf32> to vector<1x1xf32>
    %260 = vector.broadcast %259 : vector<1x1xf32> to vector<1x8xf32>
    %261 = arith.select %258, %260, %208 : vector<1x8xi1>, vector<1x8xf32>
    %c1_i32 = arith.constant 1 : i32
    %262 = arith.index_cast %c1_i32 : i32 to index
    %c0_108 = arith.constant 0 : index
    %263 = vector.load %arg31[%262, %c0_108] : memref<8x512xf32, #tpu.memory_space<vmem>>, vector<1x512xf32>
    %264 = arith.truncf %252 : vector<1x128xf32> to vector<1x128xbf16>
    %cst_109 = arith.constant dense<0.000000e+00> : vector<1x512xf32>
    %265 = tpu.matmul %264, %220, %cst_109 {dimension_numbers = #tpu.dot_dimension_numbers<[1], [0], [0], [1], [0, 0, 1, 1], [], []>} : vector<1x128xbf16>, vector<128x512xbf16>, vector<1x512xf32> -> vector<1x512xf32>
    %266 = arith.addf %263, %265 : vector<1x512xf32>
    %267 = vector.extract_strided_slice %266 {offsets = [0, 0], sizes = [1, 128], strides = [1, 1]} : vector<1x512xf32> to vector<1x128xf32>
    %268 = arith.negf %267 : vector<1x128xf32>
    %269 = math.exp %268 : vector<1x128xf32>
    %cst_110 = arith.constant 1.000000e+00 : f32
    %270 = vector.broadcast %cst_110 : f32 to vector<1x128xf32>
    %271 = arith.addf %270, %269 : vector<1x128xf32>
    %272 = arith.divf %270, %271 : vector<1x128xf32>
    %273 = vector.extract_strided_slice %266 {offsets = [0, 128], sizes = [1, 128], strides = [1, 1]} : vector<1x512xf32> to vector<1x128xf32>
    %274 = arith.negf %273 : vector<1x128xf32>
    %275 = math.exp %274 : vector<1x128xf32>
    %cst_111 = arith.constant 1.000000e+00 : f32
    %276 = vector.broadcast %cst_111 : f32 to vector<1x128xf32>
    %277 = arith.addf %276, %275 : vector<1x128xf32>
    %278 = arith.divf %276, %277 : vector<1x128xf32>
    %279 = vector.extract_strided_slice %266 {offsets = [0, 256], sizes = [1, 128], strides = [1, 1]} : vector<1x512xf32> to vector<1x128xf32>
    %280 = math.tanh %279 : vector<1x128xf32>
    %281 = vector.extract_strided_slice %266 {offsets = [0, 384], sizes = [1, 128], strides = [1, 1]} : vector<1x512xf32> to vector<1x128xf32>
    %282 = arith.negf %281 : vector<1x128xf32>
    %283 = math.exp %282 : vector<1x128xf32>
    %cst_112 = arith.constant 1.000000e+00 : f32
    %284 = vector.broadcast %cst_112 : f32 to vector<1x128xf32>
    %285 = arith.addf %284, %283 : vector<1x128xf32>
    %286 = arith.divf %284, %285 : vector<1x128xf32>
    %287 = arith.mulf %278, %250 : vector<1x128xf32>
    %288 = arith.mulf %272, %280 : vector<1x128xf32>
    %289 = arith.addf %287, %288 : vector<1x128xf32>
    %290 = math.tanh %289 : vector<1x128xf32>
    %291 = arith.mulf %286, %290 : vector<1x128xf32>
    %292 = arith.mulf %291, %205 : vector<1x128xf32>
    %cst_113 = arith.constant dense<0.000000e+00> : vector<1xf32>
    %293 = vector.multi_reduction <add>, %292, %cst_113 [1] : vector<1x128xf32> to vector<1xf32>
    %294 = vector.shape_cast %293 : vector<1xf32> to vector<1x1xf32>
    %295 = arith.addf %294, %206 : vector<1x1xf32>
    %296 = vector.broadcast %c1_i32 : i32 to vector<1x8xi32>
    %297 = arith.cmpi eq, %207, %296 : vector<1x8xi32>
    %298 = vector.shape_cast %295 : vector<1x1xf32> to vector<1x1xf32>
    %299 = vector.broadcast %298 : vector<1x1xf32> to vector<1x8xf32>
    %300 = arith.select %297, %299, %261 : vector<1x8xi1>, vector<1x8xf32>
    %c2_i32 = arith.constant 2 : i32
    %301 = arith.index_cast %c2_i32 : i32 to index
    %c0_114 = arith.constant 0 : index
    %302 = vector.load %arg31[%301, %c0_114] : memref<8x512xf32, #tpu.memory_space<vmem>>, vector<1x512xf32>
    %303 = arith.truncf %291 : vector<1x128xf32> to vector<1x128xbf16>
    %cst_115 = arith.constant dense<0.000000e+00> : vector<1x512xf32>
    %304 = tpu.matmul %303, %220, %cst_115 {dimension_numbers = #tpu.dot_dimension_numbers<[1], [0], [0], [1], [0, 0, 1, 1], [], []>} : vector<1x128xbf16>, vector<128x512xbf16>, vector<1x512xf32> -> vector<1x512xf32>
    %305 = arith.addf %302, %304 : vector<1x512xf32>
    %306 = vector.extract_strided_slice %305 {offsets = [0, 0], sizes = [1, 128], strides = [1, 1]} : vector<1x512xf32> to vector<1x128xf32>
    %307 = arith.negf %306 : vector<1x128xf32>
    %308 = math.exp %307 : vector<1x128xf32>
    %cst_116 = arith.constant 1.000000e+00 : f32
    %309 = vector.broadcast %cst_116 : f32 to vector<1x128xf32>
    %310 = arith.addf %309, %308 : vector<1x128xf32>
    %311 = arith.divf %309, %310 : vector<1x128xf32>
    %312 = vector.extract_strided_slice %305 {offsets = [0, 128], sizes = [1, 128], strides = [1, 1]} : vector<1x512xf32> to vector<1x128xf32>
    %313 = arith.negf %312 : vector<1x128xf32>
    %314 = math.exp %313 : vector<1x128xf32>
    %cst_117 = arith.constant 1.000000e+00 : f32
    %315 = vector.broadcast %cst_117 : f32 to vector<1x128xf32>
    %316 = arith.addf %315, %314 : vector<1x128xf32>
    %317 = arith.divf %315, %316 : vector<1x128xf32>
    %318 = vector.extract_strided_slice %305 {offsets = [0, 256], sizes = [1, 128], strides = [1, 1]} : vector<1x512xf32> to vector<1x128xf32>
    %319 = math.tanh %318 : vector<1x128xf32>
    %320 = vector.extract_strided_slice %305 {offsets = [0, 384], sizes = [1, 128], strides = [1, 1]} : vector<1x512xf32> to vector<1x128xf32>
    %321 = arith.negf %320 : vector<1x128xf32>
    %322 = math.exp %321 : vector<1x128xf32>
    %cst_118 = arith.constant 1.000000e+00 : f32
    %323 = vector.broadcast %cst_118 : f32 to vector<1x128xf32>
    %324 = arith.addf %323, %322 : vector<1x128xf32>
    %325 = arith.divf %323, %324 : vector<1x128xf32>
    %326 = arith.mulf %317, %289 : vector<1x128xf32>
    %327 = arith.mulf %311, %319 : vector<1x128xf32>
    %328 = arith.addf %326, %327 : vector<1x128xf32>
    %329 = math.tanh %328 : vector<1x128xf32>
    %330 = arith.mulf %325, %329 : vector<1x128xf32>
    %331 = arith.mulf %330, %205 : vector<1x128xf32>
    %cst_119 = arith.constant dense<0.000000e+00> : vector<1xf32>
    %332 = vector.multi_reduction <add>, %331, %cst_119 [1] : vector<1x128xf32> to vector<1xf32>
    %333 = vector.shape_cast %332 : vector<1xf32> to vector<1x1xf32>
    %334 = arith.addf %333, %206 : vector<1x1xf32>
    %335 = vector.broadcast %c2_i32 : i32 to vector<1x8xi32>
    %336 = arith.cmpi eq, %207, %335 : vector<1x8xi32>
    %337 = vector.shape_cast %334 : vector<1x1xf32> to vector<1x1xf32>
    %338 = vector.broadcast %337 : vector<1x1xf32> to vector<1x8xf32>
    %339 = arith.select %336, %338, %300 : vector<1x8xi1>, vector<1x8xf32>
    %c3_i32 = arith.constant 3 : i32
    %340 = arith.index_cast %c3_i32 : i32 to index
    %c0_120 = arith.constant 0 : index
    %341 = vector.load %arg31[%340, %c0_120] : memref<8x512xf32, #tpu.memory_space<vmem>>, vector<1x512xf32>
    %342 = arith.truncf %330 : vector<1x128xf32> to vector<1x128xbf16>
    %cst_121 = arith.constant dense<0.000000e+00> : vector<1x512xf32>
    %343 = tpu.matmul %342, %220, %cst_121 {dimension_numbers = #tpu.dot_dimension_numbers<[1], [0], [0], [1], [0, 0, 1, 1], [], []>} : vector<1x128xbf16>, vector<128x512xbf16>, vector<1x512xf32> -> vector<1x512xf32>
    %344 = arith.addf %341, %343 : vector<1x512xf32>
    %345 = vector.extract_strided_slice %344 {offsets = [0, 0], sizes = [1, 128], strides = [1, 1]} : vector<1x512xf32> to vector<1x128xf32>
    %346 = arith.negf %345 : vector<1x128xf32>
    %347 = math.exp %346 : vector<1x128xf32>
    %cst_122 = arith.constant 1.000000e+00 : f32
    %348 = vector.broadcast %cst_122 : f32 to vector<1x128xf32>
    %349 = arith.addf %348, %347 : vector<1x128xf32>
    %350 = arith.divf %348, %349 : vector<1x128xf32>
    %351 = vector.extract_strided_slice %344 {offsets = [0, 128], sizes = [1, 128], strides = [1, 1]} : vector<1x512xf32> to vector<1x128xf32>
    %352 = arith.negf %351 : vector<1x128xf32>
    %353 = math.exp %352 : vector<1x128xf32>
    %cst_123 = arith.constant 1.000000e+00 : f32
    %354 = vector.broadcast %cst_123 : f32 to vector<1x128xf32>
    %355 = arith.addf %354, %353 : vector<1x128xf32>
    %356 = arith.divf %354, %355 : vector<1x128xf32>
    %357 = vector.extract_strided_slice %344 {offsets = [0, 256], sizes = [1, 128], strides = [1, 1]} : vector<1x512xf32> to vector<1x128xf32>
    %358 = math.tanh %357 : vector<1x128xf32>
    %359 = vector.extract_strided_slice %344 {offsets = [0, 384], sizes = [1, 128], strides = [1, 1]} : vector<1x512xf32> to vector<1x128xf32>
    %360 = arith.negf %359 : vector<1x128xf32>
    %361 = math.exp %360 : vector<1x128xf32>
    %cst_124 = arith.constant 1.000000e+00 : f32
    %362 = vector.broadcast %cst_124 : f32 to vector<1x128xf32>
    %363 = arith.addf %362, %361 : vector<1x128xf32>
    %364 = arith.divf %362, %363 : vector<1x128xf32>
    %365 = arith.mulf %356, %328 : vector<1x128xf32>
    %366 = arith.mulf %350, %358 : vector<1x128xf32>
    %367 = arith.addf %365, %366 : vector<1x128xf32>
    %368 = math.tanh %367 : vector<1x128xf32>
    %369 = arith.mulf %364, %368 : vector<1x128xf32>
    %370 = arith.mulf %369, %205 : vector<1x128xf32>
    %cst_125 = arith.constant dense<0.000000e+00> : vector<1xf32>
    %371 = vector.multi_reduction <add>, %370, %cst_125 [1] : vector<1x128xf32> to vector<1xf32>
    %372 = vector.shape_cast %371 : vector<1xf32> to vector<1x1xf32>
    %373 = arith.addf %372, %206 : vector<1x1xf32>
    %374 = vector.broadcast %c3_i32 : i32 to vector<1x8xi32>
    %375 = arith.cmpi eq, %207, %374 : vector<1x8xi32>
    %376 = vector.shape_cast %373 : vector<1x1xf32> to vector<1x1xf32>
    %377 = vector.broadcast %376 : vector<1x1xf32> to vector<1x8xf32>
    %378 = arith.select %375, %377, %339 : vector<1x8xi1>, vector<1x8xf32>
    %c4_i32 = arith.constant 4 : i32
    %379 = arith.index_cast %c4_i32 : i32 to index
    %c0_126 = arith.constant 0 : index
    %380 = vector.load %arg31[%379, %c0_126] : memref<8x512xf32, #tpu.memory_space<vmem>>, vector<1x512xf32>
    %381 = arith.truncf %369 : vector<1x128xf32> to vector<1x128xbf16>
    %cst_127 = arith.constant dense<0.000000e+00> : vector<1x512xf32>
    %382 = tpu.matmul %381, %220, %cst_127 {dimension_numbers = #tpu.dot_dimension_numbers<[1], [0], [0], [1], [0, 0, 1, 1], [], []>} : vector<1x128xbf16>, vector<128x512xbf16>, vector<1x512xf32> -> vector<1x512xf32>
    %383 = arith.addf %380, %382 : vector<1x512xf32>
    %384 = vector.extract_strided_slice %383 {offsets = [0, 0], sizes = [1, 128], strides = [1, 1]} : vector<1x512xf32> to vector<1x128xf32>
    %385 = arith.negf %384 : vector<1x128xf32>
    %386 = math.exp %385 : vector<1x128xf32>
    %cst_128 = arith.constant 1.000000e+00 : f32
    %387 = vector.broadcast %cst_128 : f32 to vector<1x128xf32>
    %388 = arith.addf %387, %386 : vector<1x128xf32>
    %389 = arith.divf %387, %388 : vector<1x128xf32>
    %390 = vector.extract_strided_slice %383 {offsets = [0, 128], sizes = [1, 128], strides = [1, 1]} : vector<1x512xf32> to vector<1x128xf32>
    %391 = arith.negf %390 : vector<1x128xf32>
    %392 = math.exp %391 : vector<1x128xf32>
    %cst_129 = arith.constant 1.000000e+00 : f32
    %393 = vector.broadcast %cst_129 : f32 to vector<1x128xf32>
    %394 = arith.addf %393, %392 : vector<1x128xf32>
    %395 = arith.divf %393, %394 : vector<1x128xf32>
    %396 = vector.extract_strided_slice %383 {offsets = [0, 256], sizes = [1, 128], strides = [1, 1]} : vector<1x512xf32> to vector<1x128xf32>
    %397 = math.tanh %396 : vector<1x128xf32>
    %398 = vector.extract_strided_slice %383 {offsets = [0, 384], sizes = [1, 128], strides = [1, 1]} : vector<1x512xf32> to vector<1x128xf32>
    %399 = arith.negf %398 : vector<1x128xf32>
    %400 = math.exp %399 : vector<1x128xf32>
    %cst_130 = arith.constant 1.000000e+00 : f32
    %401 = vector.broadcast %cst_130 : f32 to vector<1x128xf32>
    %402 = arith.addf %401, %400 : vector<1x128xf32>
    %403 = arith.divf %401, %402 : vector<1x128xf32>
    %404 = arith.mulf %395, %367 : vector<1x128xf32>
    %405 = arith.mulf %389, %397 : vector<1x128xf32>
    %406 = arith.addf %404, %405 : vector<1x128xf32>
    %407 = math.tanh %406 : vector<1x128xf32>
    %408 = arith.mulf %403, %407 : vector<1x128xf32>
    %409 = arith.mulf %408, %205 : vector<1x128xf32>
    %cst_131 = arith.constant dense<0.000000e+00> : vector<1xf32>
    %410 = vector.multi_reduction <add>, %409, %cst_131 [1] : vector<1x128xf32> to vector<1xf32>
    %411 = vector.shape_cast %410 : vector<1xf32> to vector<1x1xf32>
    %412 = arith.addf %411, %206 : vector<1x1xf32>
    %413 = vector.broadcast %c4_i32 : i32 to vector<1x8xi32>
    %414 = arith.cmpi eq, %207, %413 : vector<1x8xi32>
    %415 = vector.shape_cast %412 : vector<1x1xf32> to vector<1x1xf32>
    %416 = vector.broadcast %415 : vector<1x1xf32> to vector<1x8xf32>
    %417 = arith.select %414, %416, %378 : vector<1x8xi1>, vector<1x8xf32>
    %c5_i32 = arith.constant 5 : i32
    %418 = arith.index_cast %c5_i32 : i32 to index
    %c0_132 = arith.constant 0 : index
    %419 = vector.load %arg31[%418, %c0_132] : memref<8x512xf32, #tpu.memory_space<vmem>>, vector<1x512xf32>
    %420 = arith.truncf %408 : vector<1x128xf32> to vector<1x128xbf16>
    %cst_133 = arith.constant dense<0.000000e+00> : vector<1x512xf32>
    %421 = tpu.matmul %420, %220, %cst_133 {dimension_numbers = #tpu.dot_dimension_numbers<[1], [0], [0], [1], [0, 0, 1, 1], [], []>} : vector<1x128xbf16>, vector<128x512xbf16>, vector<1x512xf32> -> vector<1x512xf32>
    %422 = arith.addf %419, %421 : vector<1x512xf32>
    %423 = vector.extract_strided_slice %422 {offsets = [0, 0], sizes = [1, 128], strides = [1, 1]} : vector<1x512xf32> to vector<1x128xf32>
    %424 = arith.negf %423 : vector<1x128xf32>
    %425 = math.exp %424 : vector<1x128xf32>
    %cst_134 = arith.constant 1.000000e+00 : f32
    %426 = vector.broadcast %cst_134 : f32 to vector<1x128xf32>
    %427 = arith.addf %426, %425 : vector<1x128xf32>
    %428 = arith.divf %426, %427 : vector<1x128xf32>
    %429 = vector.extract_strided_slice %422 {offsets = [0, 128], sizes = [1, 128], strides = [1, 1]} : vector<1x512xf32> to vector<1x128xf32>
    %430 = arith.negf %429 : vector<1x128xf32>
    %431 = math.exp %430 : vector<1x128xf32>
    %cst_135 = arith.constant 1.000000e+00 : f32
    %432 = vector.broadcast %cst_135 : f32 to vector<1x128xf32>
    %433 = arith.addf %432, %431 : vector<1x128xf32>
    %434 = arith.divf %432, %433 : vector<1x128xf32>
    %435 = vector.extract_strided_slice %422 {offsets = [0, 256], sizes = [1, 128], strides = [1, 1]} : vector<1x512xf32> to vector<1x128xf32>
    %436 = math.tanh %435 : vector<1x128xf32>
    %437 = vector.extract_strided_slice %422 {offsets = [0, 384], sizes = [1, 128], strides = [1, 1]} : vector<1x512xf32> to vector<1x128xf32>
    %438 = arith.negf %437 : vector<1x128xf32>
    %439 = math.exp %438 : vector<1x128xf32>
    %cst_136 = arith.constant 1.000000e+00 : f32
    %440 = vector.broadcast %cst_136 : f32 to vector<1x128xf32>
    %441 = arith.addf %440, %439 : vector<1x128xf32>
    %442 = arith.divf %440, %441 : vector<1x128xf32>
    %443 = arith.mulf %434, %406 : vector<1x128xf32>
    %444 = arith.mulf %428, %436 : vector<1x128xf32>
    %445 = arith.addf %443, %444 : vector<1x128xf32>
    %446 = math.tanh %445 : vector<1x128xf32>
    %447 = arith.mulf %442, %446 : vector<1x128xf32>
    %448 = arith.mulf %447, %205 : vector<1x128xf32>
    %cst_137 = arith.constant dense<0.000000e+00> : vector<1xf32>
    %449 = vector.multi_reduction <add>, %448, %cst_137 [1] : vector<1x128xf32> to vector<1xf32>
    %450 = vector.shape_cast %449 : vector<1xf32> to vector<1x1xf32>
    %451 = arith.addf %450, %206 : vector<1x1xf32>
    %452 = vector.broadcast %c5_i32 : i32 to vector<1x8xi32>
    %453 = arith.cmpi eq, %207, %452 : vector<1x8xi32>
    %454 = vector.shape_cast %451 : vector<1x1xf32> to vector<1x1xf32>
    %455 = vector.broadcast %454 : vector<1x1xf32> to vector<1x8xf32>
    %456 = arith.select %453, %455, %417 : vector<1x8xi1>, vector<1x8xf32>
    %c6_i32 = arith.constant 6 : i32
    %457 = arith.index_cast %c6_i32 : i32 to index
    %c0_138 = arith.constant 0 : index
    %458 = vector.load %arg31[%457, %c0_138] : memref<8x512xf32, #tpu.memory_space<vmem>>, vector<1x512xf32>
    %459 = arith.truncf %447 : vector<1x128xf32> to vector<1x128xbf16>
    %cst_139 = arith.constant dense<0.000000e+00> : vector<1x512xf32>
    %460 = tpu.matmul %459, %220, %cst_139 {dimension_numbers = #tpu.dot_dimension_numbers<[1], [0], [0], [1], [0, 0, 1, 1], [], []>} : vector<1x128xbf16>, vector<128x512xbf16>, vector<1x512xf32> -> vector<1x512xf32>
    %461 = arith.addf %458, %460 : vector<1x512xf32>
    %462 = vector.extract_strided_slice %461 {offsets = [0, 0], sizes = [1, 128], strides = [1, 1]} : vector<1x512xf32> to vector<1x128xf32>
    %463 = arith.negf %462 : vector<1x128xf32>
    %464 = math.exp %463 : vector<1x128xf32>
    %cst_140 = arith.constant 1.000000e+00 : f32
    %465 = vector.broadcast %cst_140 : f32 to vector<1x128xf32>
    %466 = arith.addf %465, %464 : vector<1x128xf32>
    %467 = arith.divf %465, %466 : vector<1x128xf32>
    %468 = vector.extract_strided_slice %461 {offsets = [0, 128], sizes = [1, 128], strides = [1, 1]} : vector<1x512xf32> to vector<1x128xf32>
    %469 = arith.negf %468 : vector<1x128xf32>
    %470 = math.exp %469 : vector<1x128xf32>
    %cst_141 = arith.constant 1.000000e+00 : f32
    %471 = vector.broadcast %cst_141 : f32 to vector<1x128xf32>
    %472 = arith.addf %471, %470 : vector<1x128xf32>
    %473 = arith.divf %471, %472 : vector<1x128xf32>
    %474 = vector.extract_strided_slice %461 {offsets = [0, 256], sizes = [1, 128], strides = [1, 1]} : vector<1x512xf32> to vector<1x128xf32>
    %475 = math.tanh %474 : vector<1x128xf32>
    %476 = vector.extract_strided_slice %461 {offsets = [0, 384], sizes = [1, 128], strides = [1, 1]} : vector<1x512xf32> to vector<1x128xf32>
    %477 = arith.negf %476 : vector<1x128xf32>
    %478 = math.exp %477 : vector<1x128xf32>
    %cst_142 = arith.constant 1.000000e+00 : f32
    %479 = vector.broadcast %cst_142 : f32 to vector<1x128xf32>
    %480 = arith.addf %479, %478 : vector<1x128xf32>
    %481 = arith.divf %479, %480 : vector<1x128xf32>
    %482 = arith.mulf %473, %445 : vector<1x128xf32>
    %483 = arith.mulf %467, %475 : vector<1x128xf32>
    %484 = arith.addf %482, %483 : vector<1x128xf32>
    %485 = math.tanh %484 : vector<1x128xf32>
    %486 = arith.mulf %481, %485 : vector<1x128xf32>
    %487 = arith.mulf %486, %205 : vector<1x128xf32>
    %cst_143 = arith.constant dense<0.000000e+00> : vector<1xf32>
    %488 = vector.multi_reduction <add>, %487, %cst_143 [1] : vector<1x128xf32> to vector<1xf32>
    %489 = vector.shape_cast %488 : vector<1xf32> to vector<1x1xf32>
    %490 = arith.addf %489, %206 : vector<1x1xf32>
    %491 = vector.broadcast %c6_i32 : i32 to vector<1x8xi32>
    %492 = arith.cmpi eq, %207, %491 : vector<1x8xi32>
    %493 = vector.shape_cast %490 : vector<1x1xf32> to vector<1x1xf32>
    %494 = vector.broadcast %493 : vector<1x1xf32> to vector<1x8xf32>
    %495 = arith.select %492, %494, %456 : vector<1x8xi1>, vector<1x8xf32>
    %c7_i32 = arith.constant 7 : i32
    %496 = arith.index_cast %c7_i32 : i32 to index
    %c0_144 = arith.constant 0 : index
    %497 = vector.load %arg31[%496, %c0_144] : memref<8x512xf32, #tpu.memory_space<vmem>>, vector<1x512xf32>
    %498 = arith.truncf %486 : vector<1x128xf32> to vector<1x128xbf16>
    %cst_145 = arith.constant dense<0.000000e+00> : vector<1x512xf32>
    %499 = tpu.matmul %498, %220, %cst_145 {dimension_numbers = #tpu.dot_dimension_numbers<[1], [0], [0], [1], [0, 0, 1, 1], [], []>} : vector<1x128xbf16>, vector<128x512xbf16>, vector<1x512xf32> -> vector<1x512xf32>
    %500 = arith.addf %497, %499 : vector<1x512xf32>
    %501 = vector.extract_strided_slice %500 {offsets = [0, 0], sizes = [1, 128], strides = [1, 1]} : vector<1x512xf32> to vector<1x128xf32>
    %502 = arith.negf %501 : vector<1x128xf32>
    %503 = math.exp %502 : vector<1x128xf32>
    %cst_146 = arith.constant 1.000000e+00 : f32
    %504 = vector.broadcast %cst_146 : f32 to vector<1x128xf32>
    %505 = arith.addf %504, %503 : vector<1x128xf32>
    %506 = arith.divf %504, %505 : vector<1x128xf32>
    %507 = vector.extract_strided_slice %500 {offsets = [0, 128], sizes = [1, 128], strides = [1, 1]} : vector<1x512xf32> to vector<1x128xf32>
    %508 = arith.negf %507 : vector<1x128xf32>
    %509 = math.exp %508 : vector<1x128xf32>
    %cst_147 = arith.constant 1.000000e+00 : f32
    %510 = vector.broadcast %cst_147 : f32 to vector<1x128xf32>
    %511 = arith.addf %510, %509 : vector<1x128xf32>
    %512 = arith.divf %510, %511 : vector<1x128xf32>
    %513 = vector.extract_strided_slice %500 {offsets = [0, 256], sizes = [1, 128], strides = [1, 1]} : vector<1x512xf32> to vector<1x128xf32>
    %514 = math.tanh %513 : vector<1x128xf32>
    %515 = vector.extract_strided_slice %500 {offsets = [0, 384], sizes = [1, 128], strides = [1, 1]} : vector<1x512xf32> to vector<1x128xf32>
    %516 = arith.negf %515 : vector<1x128xf32>
    %517 = math.exp %516 : vector<1x128xf32>
    %cst_148 = arith.constant 1.000000e+00 : f32
    %518 = vector.broadcast %cst_148 : f32 to vector<1x128xf32>
    %519 = arith.addf %518, %517 : vector<1x128xf32>
    %520 = arith.divf %518, %519 : vector<1x128xf32>
    %521 = arith.mulf %512, %484 : vector<1x128xf32>
    %522 = arith.mulf %506, %514 : vector<1x128xf32>
    %523 = arith.addf %521, %522 : vector<1x128xf32>
    %524 = math.tanh %523 : vector<1x128xf32>
    %525 = arith.mulf %520, %524 : vector<1x128xf32>
    %526 = arith.mulf %525, %205 : vector<1x128xf32>
    %cst_149 = arith.constant dense<0.000000e+00> : vector<1xf32>
    %527 = vector.multi_reduction <add>, %526, %cst_149 [1] : vector<1x128xf32> to vector<1xf32>
    %528 = vector.shape_cast %527 : vector<1xf32> to vector<1x1xf32>
    %529 = arith.addf %528, %206 : vector<1x1xf32>
    %530 = vector.broadcast %c7_i32 : i32 to vector<1x8xi32>
    %531 = arith.cmpi eq, %207, %530 : vector<1x8xi32>
    %532 = vector.shape_cast %529 : vector<1x1xf32> to vector<1x1xf32>
    %533 = vector.broadcast %532 : vector<1x1xf32> to vector<1x8xf32>
    %534 = arith.select %531, %533, %495 : vector<1x8xi1>, vector<1x8xf32>
    %c8_i32 = arith.constant 8 : i32
    %535 = arith.negf %534 : vector<1x8xf32>
    %536 = math.exp %535 : vector<1x8xf32>
    %cst_150 = arith.constant 1.000000e+00 : f32
    %537 = vector.broadcast %cst_150 : f32 to vector<1x8xf32>
    %538 = arith.addf %537, %536 : vector<1x8xf32>
    %539 = arith.divf %537, %538 : vector<1x8xf32>
    %540 = vector.shape_cast %539 : vector<1x8xf32> to vector<1x1x8xf32>
    %c0_151 = arith.constant 0 : index
    %c0_152 = arith.constant 0 : index
    %c0_153 = arith.constant 0 : index
    %541 = vector.load %arg29[%c0_151, %c0_152, %c0_153] : memref<1x1x8xf32, #tpu.memory_space<vmem>>, vector<1x1x8xf32>
    tpu.vector_store %arg29[%c0_151, %c0_152, %c0_153], %540 {strides = array<i32>} : memref<1x1x8xf32, #tpu.memory_space<vmem>>, vector<1x1x8xf32>,
    return
  }
  func.func @transform_0(%arg0: i32) -> (i32, i32) {
    %c0_i32 = arith.constant 0 : i32
    %c0_i32_0 = arith.constant 0 : i32
    return %arg0, %c0_i32 : i32, i32
  }
  func.func @transform_1(%arg0: i32) -> (i32, i32) {
    %c0_i32 = arith.constant 0 : i32
    %c0_i32_0 = arith.constant 0 : i32
    return %arg0, %c0_i32 : i32, i32
  }
  func.func @transform_2(%arg0: i32) -> (i32, i32, i32) {
    %c0_i32 = arith.constant 0 : i32
    %c0_i32_0 = arith.constant 0 : i32
    %c0_i32_1 = arith.constant 0 : i32
    return %arg0, %c0_i32, %c0_i32_0 : i32, i32, i32
  }
  func.func @transform_3(%arg0: i32) -> (i32, i32) {
    %c0_i32 = arith.constant 0 : i32
    %c0_i32_0 = arith.constant 0 : i32
    %c0_i32_1 = arith.constant 0 : i32
    return %c0_i32, %c0_i32_0 : i32, i32
  }
  func.func @transform_4(%arg0: i32) -> (i32, i32) {
    %c0_i32 = arith.constant 0 : i32
    %c0_i32_0 = arith.constant 0 : i32
    %c0_i32_1 = arith.constant 0 : i32
    return %c0_i32, %c0_i32_0 : i32, i32
  }
  func.func @transform_5(%arg0: i32) -> (i32, i32) {
    %c0_i32 = arith.constant 0 : i32
    %c0_i32_0 = arith.constant 0 : i32
    %c0_i32_1 = arith.constant 0 : i32
    return %c0_i32, %c0_i32_0 : i32, i32
  }
  func.func @transform_6(%arg0: i32) -> (i32, i32) {
    %c0_i32 = arith.constant 0 : i32
    %c0_i32_0 = arith.constant 0 : i32
    %c0_i32_1 = arith.constant 0 : i32
    return %c0_i32, %c0_i32_0 : i32, i32
  }
  func.func @transform_7(%arg0: i32) -> (i32, i32) {
    %c0_i32 = arith.constant 0 : i32
    %c0_i32_0 = arith.constant 0 : i32
    %c0_i32_1 = arith.constant 0 : i32
    return %c0_i32, %c0_i32_0 : i32, i32
  }
  func.func @transform_8(%arg0: i32) -> (i32, i32) {
    %c0_i32 = arith.constant 0 : i32
    %c0_i32_0 = arith.constant 0 : i32
    %c0_i32_1 = arith.constant 0 : i32
    return %c0_i32, %c0_i32_0 : i32, i32
  }
  func.func @transform_9(%arg0: i32) -> (i32, i32) {
    %c0_i32 = arith.constant 0 : i32
    %c0_i32_0 = arith.constant 0 : i32
    %c0_i32_1 = arith.constant 0 : i32
    return %c0_i32, %c0_i32_0 : i32, i32
  }
  func.func @transform_10(%arg0: i32) -> (i32, i32) {
    %c0_i32 = arith.constant 0 : i32
    %c0_i32_0 = arith.constant 0 : i32
    %c0_i32_1 = arith.constant 0 : i32
    return %c0_i32, %c0_i32_0 : i32, i32
  }
  func.func @transform_11(%arg0: i32) -> (i32, i32) {
    %c0_i32 = arith.constant 0 : i32
    %c0_i32_0 = arith.constant 0 : i32
    %c0_i32_1 = arith.constant 0 : i32
    return %c0_i32, %c0_i32_0 : i32, i32
  }
  func.func @transform_12(%arg0: i32) -> (i32, i32) {
    %c0_i32 = arith.constant 0 : i32
    %c0_i32_0 = arith.constant 0 : i32
    %c0_i32_1 = arith.constant 0 : i32
    return %c0_i32, %c0_i32_0 : i32, i32
  }
  func.func @transform_13(%arg0: i32) -> (i32, i32) {
    %c0_i32 = arith.constant 0 : i32
    %c0_i32_0 = arith.constant 0 : i32
    %c0_i32_1 = arith.constant 0 : i32
    return %c0_i32, %c0_i32_0 : i32, i32
  }
  func.func @transform_14(%arg0: i32) -> (i32, i32) {
    %c0_i32 = arith.constant 0 : i32
    %c0_i32_0 = arith.constant 0 : i32
    %c0_i32_1 = arith.constant 0 : i32
    return %c0_i32, %c0_i32_0 : i32, i32
  }
  func.func @transform_15(%arg0: i32) -> (i32, i32) {
    %c0_i32 = arith.constant 0 : i32
    %c0_i32_0 = arith.constant 0 : i32
    %c0_i32_1 = arith.constant 0 : i32
    return %c0_i32, %c0_i32_0 : i32, i32
  }
  func.func @transform_16(%arg0: i32) -> (i32, i32) {
    %c0_i32 = arith.constant 0 : i32
    %c0_i32_0 = arith.constant 0 : i32
    %c0_i32_1 = arith.constant 0 : i32
    return %c0_i32, %c0_i32_0 : i32, i32
  }
  func.func @transform_17(%arg0: i32) -> (i32, i32) {
    %c0_i32 = arith.constant 0 : i32
    %c0_i32_0 = arith.constant 0 : i32
    %c0_i32_1 = arith.constant 0 : i32
    return %c0_i32, %c0_i32_0 : i32, i32
  }
  func.func @transform_18(%arg0: i32) -> (i32, i32) {
    %c0_i32 = arith.constant 0 : i32
    %c0_i32_0 = arith.constant 0 : i32
    %c0_i32_1 = arith.constant 0 : i32
    return %c0_i32, %c0_i32_0 : i32, i32
  }
  func.func @transform_19(%arg0: i32) -> (i32, i32) {
    %c0_i32 = arith.constant 0 : i32
    %c0_i32_0 = arith.constant 0 : i32
    %c0_i32_1 = arith.constant 0 : i32
    return %c0_i32, %c0_i32_0 : i32, i32
  }
  func.func @transform_20(%arg0: i32) -> (i32, i32) {
    %c0_i32 = arith.constant 0 : i32
    %c0_i32_0 = arith.constant 0 : i32
    %c0_i32_1 = arith.constant 0 : i32
    return %c0_i32, %c0_i32_0 : i32, i32
  }
  func.func @transform_21(%arg0: i32) -> (i32, i32) {
    %c0_i32 = arith.constant 0 : i32
    %c0_i32_0 = arith.constant 0 : i32
    %c0_i32_1 = arith.constant 0 : i32
    return %c0_i32, %c0_i32_0 : i32, i32
  }
  func.func @transform_22(%arg0: i32) -> (i32, i32) {
    %c0_i32 = arith.constant 0 : i32
    %c0_i32_0 = arith.constant 0 : i32
    %c0_i32_1 = arith.constant 0 : i32
    return %c0_i32, %c0_i32_0 : i32, i32
  }
  func.func @transform_23(%arg0: i32) -> (i32, i32, i32) {
    %c0_i32 = arith.constant 0 : i32
    %c0_i32_0 = arith.constant 0 : i32
    %c0_i32_1 = arith.constant 0 : i32
    %c0_i32_2 = arith.constant 0 : i32
    return %c0_i32, %c0_i32_0, %c0_i32_1 : i32, i32, i32
  }
  func.func @transform_24(%arg0: i32) -> (i32, i32, i32) {
    %c0_i32 = arith.constant 0 : i32
    %c0_i32_0 = arith.constant 0 : i32
    %c0_i32_1 = arith.constant 0 : i32
    %c0_i32_2 = arith.constant 0 : i32
    return %c0_i32, %c0_i32_0, %c0_i32_1 : i32, i32, i32
  }
  func.func @transform_25(%arg0: i32) -> (i32, i32, i32) {
    %c0_i32 = arith.constant 0 : i32
    %c0_i32_0 = arith.constant 0 : i32
    %c0_i32_1 = arith.constant 0 : i32
    %c0_i32_2 = arith.constant 0 : i32
    return %c0_i32, %c0_i32_0, %c0_i32_1 : i32, i32, i32
  }
  func.func @transform_26(%arg0: i32) -> (i32, i32) {
    %c0_i32 = arith.constant 0 : i32
    %c0_i32_0 = arith.constant 0 : i32
    %c0_i32_1 = arith.constant 0 : i32
    return %c0_i32, %c0_i32_0 : i32, i32
  }
  func.func @transform_27(%arg0: i32) -> (i32, i32) {
    %c0_i32 = arith.constant 0 : i32
    %c0_i32_0 = arith.constant 0 : i32
    %c0_i32_1 = arith.constant 0 : i32
    return %c0_i32, %c0_i32_0 : i32, i32
  }
  func.func @transform_28(%arg0: i32) -> (i32, i32, i32) {
    %c0_i32 = arith.constant 0 : i32
    %c0_i32_0 = arith.constant 0 : i32
    %c0_i32_1 = arith.constant 0 : i32
    return %arg0, %c0_i32, %c0_i32_0 : i32, i32, i32
  }
}

</mosaic_0001>

<llo_original>
// kernel: tpu_custom_call.1
$region0: #{tpu_custom_call.1}
  #allocation0 [shape = 'u32[]', space=smem, size = 0x4, offset = 0x4, fixed_abs, tag = 'smem constant byte address 0x4 - core index']
  #allocation1 [shape = 'u32[72,128]{1,0:T(1,128)}', space=vmem, size = 0x9000, scoped, tag = 'internal scratch']
  #allocation2 [shape = 'f32[8,128]{1,0:T(8,128)}', space=vmem, size = 0x1000, scoped, tag = 'scratch operand']
  #allocation3 [shape = 'f32[8,512]{1,0:T(8,128)}', space=vmem, size = 0x4000, scoped, tag = 'scratch operand']
  #allocation4 [shape = 'f32[1,1]{1,0:T(1,128)S(1)}', space=vmem, size = 0x200, scoped, tag = 'scoped memory for tpu_custom_call.1']
  %s0 = inlined_call_operand.hbm [shape: f32[16,80], index: 0, kind: input, shape index: {}]
  %s1 = inlined_call_operand.vmem [shape: f32[16,6], index: 1, kind: input, shape index: {}]
  %s2 = inlined_call_operand.hbm [shape: f32[2,1,8], index: 2, kind: input, shape index: {}]
  %s3 = inlined_call_operand.vmem [shape: bf16[80,24], index: 3, kind: input, shape index: {}]
  %s4 = inlined_call_operand.hbm [shape: f32[1,24], index: 4, kind: input, shape index: {}]
  %s5 = inlined_call_operand.hbm [shape: f32[1,24], index: 5, kind: input, shape index: {}]
  %s6 = inlined_call_operand.hbm [shape: f32[1,24], index: 6, kind: input, shape index: {}]
  %s7 = inlined_call_operand.vmem [shape: bf16[6,24], index: 7, kind: input, shape index: {}]
  %s8 = inlined_call_operand.hbm [shape: f32[1,24], index: 8, kind: input, shape index: {}]
  %s9 = inlined_call_operand.hbm [shape: f32[1,24], index: 9, kind: input, shape index: {}]
  %s10 = inlined_call_operand.hbm [shape: f32[1,24], index: 10, kind: input, shape index: {}]
  %s11 = inlined_call_operand.vmem [shape: bf16[48,144], index: 11, kind: input, shape index: {}]
  %s12 = inlined_call_operand.hbm [shape: f32[1,144], index: 12, kind: input, shape index: {}]
  %s13 = inlined_call_operand.vmem [shape: bf16[48,48], index: 13, kind: input, shape index: {}]
  %s14 = inlined_call_operand.vmem [shape: f32[1,48], index: 14, kind: input, shape index: {}]
  %s15 = inlined_call_operand.hbm [shape: f32[1,48], index: 15, kind: input, shape index: {}]
  %s16 = inlined_call_operand.hbm [shape: f32[1,48], index: 16, kind: input, shape index: {}]
  %s17 = inlined_call_operand.hbm [shape: bf16[48,48], index: 17, kind: input, shape index: {}]
  %s18 = inlined_call_operand.vmem [shape: f32[1,48], index: 18, kind: input, shape index: {}]
  %s19 = inlined_call_operand.hbm [shape: bf16[48,48], index: 19, kind: input, shape index: {}]
  %s20 = inlined_call_operand.vmem [shape: f32[1,48], index: 20, kind: input, shape index: {}]
  %s21 = inlined_call_operand.vmem [shape: f32[1,48], index: 21, kind: input, shape index: {}]
  %s22 = inlined_call_operand.vmem [shape: f32[1,48], index: 22, kind: input, shape index: {}]
  %s23 = inlined_call_operand.hbm [shape: bf16[1,128,512], index: 23, kind: input, shape index: {}]
  %s24 = inlined_call_operand.hbm [shape: bf16[1,128,512], index: 24, kind: input, shape index: {}]
  %s25 = inlined_call_operand.vmem [shape: f32[1,1,512], index: 25, kind: input, shape index: {}]
  %s26 = inlined_call_operand.vmem [shape: f32[1,128], index: 26, kind: input, shape index: {}]
  %s27 = inlined_call_operand.<no memory space> [shape: f32[1,1], index: 27, kind: input, shape index: {}]
  %s28 = inlined_call_operand.hbm [shape: f32[2,1,8], index: 28, kind: output, shape index: {}]
  %s29 = sld [smem:[#allocation0]]
  $region205: #{tpu_custom_call.1} parent=0
    _
  %s31 = ssub.s32 1, %s29
  %s32 = scalar_select 0, %s31, %s29
  %v33 = vstv %s27
  %34 = vst [vmem:[#allocation4] sm:$0x1] %v33
  $region1: #{tpu_custom_call.1} parent=0
    #allocation5 [shape = 'u8[8192]{0}', space=vmem, size = 0x2000, scoped, tag = 'input window, operand 0']
    #allocation6 [shape = 's32[2]{0}', space=sflag, size = 0x8, scoped, tag = 'scoped memory for tpu_custom_call.1']
    #allocation7 [shape = 's32[2]{0}', space=sflag, size = 0x8, scoped, tag = 'scoped memory for tpu_custom_call.1']
    #allocation8 [shape = 'u8[1024]{0}', space=vmem, size = 0x400, scoped, tag = 'input window, operand 2']
    #allocation9 [shape = 's32[2]{0}', space=sflag, size = 0x8, scoped, tag = 'scoped memory for tpu_custom_call.1']
    #allocation10 [shape = 'u8[512]{0}', space=vmem, size = 0x400, scoped, tag = 'input window, operand 4, single buffered']
    #allocation11 [shape = 'u8[512]{0}', space=vmem, size = 0x400, scoped, tag = 'input window, operand 5, single buffered']
    #allocation12 [shape = 's32[1]{0}', space=sflag, size = 0x4, scoped, tag = 'scoped memory for tpu_custom_call.1']
    #allocation13 [shape = 'u8[512]{0}', space=vmem, size = 0x400, scoped, tag = 'input window, operand 6, single buffered']
    #allocation14 [shape = 'u8[512]{0}', space=vmem, size = 0x400, scoped, tag = 'input window, operand 8, single buffered']
    #allocation15 [shape = 's32[1]{0}', space=sflag, size = 0x4, scoped, tag = 'scoped memory for tpu_custom_call.1']
    #allocation16 [shape = 'u8[512]{0}', space=vmem, size = 0x400, scoped, tag = 'input window, operand 9, single buffered']
    #allocation17 [shape = 'u8[512]{0}', space=vmem, size = 0x400, scoped, tag = 'input window, operand 10, single buffered']
    #allocation18 [shape = 's32[1]{0}', space=sflag, size = 0x4, scoped, tag = 'scoped memory for tpu_custom_call.1']
    #allocation19 [shape = 'u8[1024]{0}', space=vmem, size = 0x400, scoped, tag = 'input window, operand 12, single buffered']
    #allocation20 [shape = 'u8[512]{0}', space=vmem, size = 0x400, scoped, tag = 'input window, operand 15, single buffered']
    #allocation21 [shape = 's32[1]{0}', space=sflag, size = 0x4, scoped, tag = 'scoped memory for tpu_custom_call.1']
    #allocation22 [shape = 'u8[512]{0}', space=vmem, size = 0x400, scoped, tag = 'input window, operand 16, single buffered']
    #allocation23 [shape = 'u8[12288]{0}', space=vmem, size = 0x3000, scoped, tag = 'input window, operand 17, single buffered']
    #allocation24 [shape = 's32[1]{0}', space=sflag, size = 0x4, scoped, tag = 'scoped memory for tpu_custom_call.1']
    #allocation25 [shape = 'u8[12288]{0}', space=vmem, size = 0x3000, scoped, tag = 'input window, operand 19, single buffered']
    #allocation26 [shape = 'u8[131072]{0}', space=vmem, size = 0x20000, scoped, tag = 'input window, operand 23, single buffered']
    #allocation27 [shape = 's32[1]{0}', space=sflag, size = 0x4, scoped, tag = 'scoped memory for tpu_custom_call.1']
    #allocation28 [shape = 'u8[131072]{0}', space=vmem, size = 0x20000, scoped, tag = 'input window, operand 24, single buffered']
    #allocation29 [shape = 'u8[1024]{0}', space=vmem, size = 0x400, scoped, tag = 'output window, operand 0']
    %35 = vsyncpa [#allocation6], 0
    %s36 = scalar_lea.sflag [#allocation6], 1
    %37 = vsyncpa %s36, 0
    %38 = vsyncpa [#allocation9], 0
    %s39 = scalar_lea.sflag [#allocation9], 1
    %40 = vsyncpa %s39, 0
    %41 = vsyncpa [#allocation12], 0
    %42 = vsyncpa [#allocation15], 0
    %43 = vsyncpa [#allocation18], 0
    %44 = vsyncpa [#allocation21], 0
    %45 = vsyncpa [#allocation24], 0
    %46 = vsyncpa [#allocation27], 0
    %47 = vsyncpa [#allocation7], 0
    %s48 = scalar_lea.sflag [#allocation7], 1
    %49 = vsyncpa %s48, 0
    loop: start=0, step=1, limit=4
    $region2: #{tpu_custom_call.1} parent=1 // loop_pre_header
      _
    $region3: #{tpu_custom_call.1} parent=1 // loop_header
      %s51 = sphi 0, %s55
      %p52 = scmp.ge.s32.totalorder %s51, 4
      %s61 = sphi 0, %s63
      %s64 = sphi 0, %s61
      %s65 = sphi 0, %s64
      %s81 = sphi 0, %s65
      %s87 = sphi 0, %s89
      %s90 = sphi 0, %s87
      %s91 = sphi 0, %s90
      %s107 = sphi 0, %s91
      %s113 = sphi 0, %s115
      %s116 = sphi 0, %s113
      %s117 = sphi 0, %s116
      %s133 = sphi 0, %s117
      %s137 = sphi 0, %s137
      %s139 = sphi 0, %s137
      %s140 = sphi 0, %s139
      %s154 = sphi 0, %s140
      %s158 = sphi 0, %s158
      %s160 = sphi 0, %s158
      %s161 = sphi 0, %s160
      %s175 = sphi 0, %s161
      %s179 = sphi 0, %s179
      %s181 = sphi 0, %s179
      %s182 = sphi 0, %s181
      %s196 = sphi 0, %s182
      %s200 = sphi 0, %s200
      %s202 = sphi 0, %s200
      %s203 = sphi 0, %s202
      %s217 = sphi 0, %s203
      %s221 = sphi 0, %s221
      %s223 = sphi 0, %s221
      %s224 = sphi 0, %s223
      %s238 = sphi 0, %s224
      %s242 = sphi 0, %s242
      %s244 = sphi 0, %s242
      %s245 = sphi 0, %s244
      %s259 = sphi 0, %s245
      %s263 = sphi 0, %s263
      %s265 = sphi 0, %s263
      %s266 = sphi 0, %s265
      %s280 = sphi 0, %s266
      %s284 = sphi 0, %s284
      %s286 = sphi 0, %s284
      %s287 = sphi 0, %s286
      %s301 = sphi 0, %s287
      %s305 = sphi 0, %s305
      %s307 = sphi 0, %s305
      %s308 = sphi 0, %s307
      %s322 = sphi 0, %s308
      %s326 = sphi 0, %s326
      %s328 = sphi 0, %s326
      %s329 = sphi 0, %s328
      %s343 = sphi 0, %s329
      %s347 = sphi 0, %s347
      %s349 = sphi 0, %s347
      %s350 = sphi 0, %s349
      %s364 = sphi 0, %s350
      %s368 = sphi 0, %s368
      %s370 = sphi 0, %s368
      %s371 = sphi 0, %s370
      %s385 = sphi 0, %s371
      %s389 = sphi 0, %s389
      %s391 = sphi 0, %s389
      %s392 = sphi 0, %s391
      %s406 = sphi 0, %s392
      %s410 = sphi 0, %s410
      %s412 = sphi 0, %s410
      %s413 = sphi 0, %s412
      %s427 = sphi 0, %s413
      %s431 = sphi 0, %s431
      %s433 = sphi 0, %s431
      %s434 = sphi 0, %s433
      %s448 = sphi 0, %s434
      %s452 = sphi 0, %s452
      %s454 = sphi 0, %s452
      %s455 = sphi 0, %s454
      %s469 = sphi 0, %s455
      %s473 = sphi 0, %s473
      %s475 = sphi 0, %s473
      %s476 = sphi 0, %s475
      %s490 = sphi 0, %s476
      %s494 = sphi 0, %s494
      %s496 = sphi 0, %s494
      %s497 = sphi 0, %s496
      %s511 = sphi 0, %s497
      %s515 = sphi 0, %s515
      %s517 = sphi 0, %s515
      %s518 = sphi 0, %s517
      %s532 = sphi 0, %s518
      %s536 = sphi 0, %s536
      %s538 = sphi 0, %s536
      %s539 = sphi 0, %s538
      %s553 = sphi 0, %s539
      %s557 = sphi 0, %s557
      %s559 = sphi 0, %s557
      %s560 = sphi 0, %s559
      %s574 = sphi 0, %s560
      %s578 = sphi 0, %s578
      %s580 = sphi 0, %s578
      %s581 = sphi 0, %s580
      %s595 = sphi 0, %s581
      %s599 = sphi 0, %s599
      %s601 = sphi 0, %s599
      %s602 = sphi 0, %s601
      %s616 = sphi 0, %s602
      %s620 = sphi 0, %s620
      %s622 = sphi 0, %s620
      %s623 = sphi 0, %s622
      %s637 = sphi 0, %s623
      %s641 = sphi 0, %s641
      %s643 = sphi 0, %s641
      %s644 = sphi 0, %s643
      %s658 = sphi 0, %s644
      %s664 = sphi 0, %s666
      %s667 = sphi 0, %s664
      %s668 = sphi 0, %s667
      %s684 = sphi 0, %s668
    $region4: #{tpu_custom_call.1} parent=1 // loop_header_branch
      %54 = sbr.rel (%p52) target = $region8
    $region5: #{tpu_custom_call.1} parent=1 // loop_body
      %s56 = ssub.s32 %s51, 1
      %s57 = ssub.s32 %s51, 2
      %s58 = sadd.s32 %s51, 1
      %s59 = ssub.s32 %s51, %s58
      %p60 = scmp.eq.s32.totalorder %s59, 0
      %s62 = sadd.s32 %s61, 1
      %s63 = scalar_select %p60, %s61, %s62
      %p66 = pneg %p60
      %p67 = scmp.eq.s32.totalorder %s51, 1
      %p68 = por %p66, %p67
      %p69 = scmp.ne.s32.totalorder %s61, %s64
      %p70 = scmp.eq.s32.totalorder %s51, 0
      %p71 = por %p69, %p70
      %p72 = scmp.ne.s32.totalorder %s61, %s64
      %p73 = scmp.eq.s32.totalorder %s56, 1
      %p74 = por %p72, %p73
      %p75 = scmp.ne.s32.totalorder %s64, %s65
      %p76 = scmp.eq.s32.totalorder %s56, 0
      %p77 = por %p75, %p76
      %p78 = scmp.ne.s32.totalorder %s64, %s65
      %p79 = scmp.eq.s32.totalorder %s57, 1
      %p80 = por %p78, %p79
      %p82 = scmp.ne.s32.totalorder %s65, %s81
      %p83 = scmp.eq.s32.totalorder %s57, 0
      %p84 = por %p82, %p83
      %s85 = ssub.s32 %s51, %s58
      %p86 = scmp.eq.s32.totalorder %s85, 0
      %s88 = sadd.s32 %s87, 1
      %s89 = scalar_select %p86, %s87, %s88
      %p92 = pneg %p86
      %p93 = scmp.eq.s32.totalorder %s51, 1
      %p94 = por %p92, %p93
      %p95 = scmp.ne.s32.totalorder %s87, %s90
      %p96 = scmp.eq.s32.totalorder %s51, 0
      %p97 = por %p95, %p96
      %p98 = scmp.ne.s32.totalorder %s87, %s90
      %p99 = scmp.eq.s32.totalorder %s56, 1
      %p100 = por %p98, %p99
      %p101 = scmp.ne.s32.totalorder %s90, %s91
      %p102 = scmp.eq.s32.totalorder %s56, 0
      %p103 = por %p101, %p102
      %p104 = scmp.ne.s32.totalorder %s90, %s91
      %p105 = scmp.eq.s32.totalorder %s57, 1
      %p106 = por %p104, %p105
      %p108 = scmp.ne.s32.totalorder %s91, %s107
      %p109 = scmp.eq.s32.totalorder %s57, 0
      %p110 = por %p108, %p109
      %s111 = ssub.s32 %s51, %s58
      %p112 = scmp.eq.s32.totalorder %s111, 0
      %s114 = sadd.s32 %s113, 1
      %s115 = scalar_select %p112, %s113, %s114
      %p118 = pneg %p112
      %p119 = scmp.eq.s32.totalorder %s51, 1
      %p120 = por %p118, %p119
      %p121 = scmp.ne.s32.totalorder %s113, %s116
      %p122 = scmp.eq.s32.totalorder %s51, 0
      %p123 = por %p121, %p122
      %p124 = scmp.ne.s32.totalorder %s113, %s116
      %p125 = scmp.eq.s32.totalorder %s56, 1
      %p126 = por %p124, %p125
      %p127 = scmp.ne.s32.totalorder %s116, %s117
      %p128 = scmp.eq.s32.totalorder %s56, 0
      %p129 = por %p127, %p128
      %p130 = scmp.ne.s32.totalorder %s116, %s117
      %p131 = scmp.eq.s32.totalorder %s57, 1
      %p132 = por %p130, %p131
      %p134 = scmp.ne.s32.totalorder %s117, %s133
      %p135 = scmp.eq.s32.totalorder %s57, 0
      %p136 = por %p134, %p135
      %s138 = sadd.s32 %s137, 1
      %p141 = scmp.eq.s32.totalorder %s51, 1
      %p142 = scmp.ne.s32.totalorder %s137, %s139
      %p143 = scmp.eq.s32.totalorder %s51, 0
      %p144 = por %p142, %p143
      %p145 = scmp.ne.s32.totalorder %s137, %s139
      %p146 = scmp.eq.s32.totalorder %s56, 1
      %p147 = por %p145, %p146
      %p148 = scmp.ne.s32.totalorder %s139, %s140
      %p149 = scmp.eq.s32.totalorder %s56, 0
      %p150 = por %p148, %p149
      %p151 = scmp.ne.s32.totalorder %s139, %s140
      %p152 = scmp.eq.s32.totalorder %s57, 1
      %p153 = por %p151, %p152
      %p155 = scmp.ne.s32.totalorder %s140, %s154
      %p156 = scmp.eq.s32.totalorder %s57, 0
      %p157 = por %p155, %p156
      %s159 = sadd.s32 %s158, 1
      %p162 = scmp.eq.s32.totalorder %s51, 1
      %p163 = scmp.ne.s32.totalorder %s158, %s160
      %p164 = scmp.eq.s32.totalorder %s51, 0
      %p165 = por %p163, %p164
      %p166 = scmp.ne.s32.totalorder %s158, %s160
      %p167 = scmp.eq.s32.totalorder %s56, 1
      %p168 = por %p166, %p167
      %p169 = scmp.ne.s32.totalorder %s160, %s161
      %p170 = scmp.eq.s32.totalorder %s56, 0
      %p171 = por %p169, %p170
      %p172 = scmp.ne.s32.totalorder %s160, %s161
      %p173 = scmp.eq.s32.totalorder %s57, 1
      %p174 = por %p172, %p173
      %p176 = scmp.ne.s32.totalorder %s161, %s175
      %p177 = scmp.eq.s32.totalorder %s57, 0
      %p178 = por %p176, %p177
      %s180 = sadd.s32 %s179, 1
      %p183 = scmp.eq.s32.totalorder %s51, 1
      %p184 = scmp.ne.s32.totalorder %s179, %s181
      %p185 = scmp.eq.s32.totalorder %s51, 0
      %p186 = por %p184, %p185
      %p187 = scmp.ne.s32.totalorder %s179, %s181
      %p188 = scmp.eq.s32.totalorder %s56, 1
      %p189 = por %p187, %p188
      %p190 = scmp.ne.s32.totalorder %s181, %s182
      %p191 = scmp.eq.s32.totalorder %s56, 0
      %p192 = por %p190, %p191
      %p193 = scmp.ne.s32.totalorder %s181, %s182
      %p194 = scmp.eq.s32.totalorder %s57, 1
      %p195 = por %p193, %p194
      %p197 = scmp.ne.s32.totalorder %s182, %s196
      %p198 = scmp.eq.s32.totalorder %s57, 0
      %p199 = por %p197, %p198
      %s201 = sadd.s32 %s200, 1
      %p204 = scmp.eq.s32.totalorder %s51, 1
      %p205 = scmp.ne.s32.totalorder %s200, %s202
      %p206 = scmp.eq.s32.totalorder %s51, 0
      %p207 = por %p205, %p206
      %p208 = scmp.ne.s32.totalorder %s200, %s202
      %p209 = scmp.eq.s32.totalorder %s56, 1
      %p210 = por %p208, %p209
      %p211 = scmp.ne.s32.totalorder %s202, %s203
      %p212 = scmp.eq.s32.totalorder %s56, 0
      %p213 = por %p211, %p212
      %p214 = scmp.ne.s32.totalorder %s202, %s203
      %p215 = scmp.eq.s32.totalorder %s57, 1
      %p216 = por %p214, %p215
      %p218 = scmp.ne.s32.totalorder %s203, %s217
      %p219 = scmp.eq.s32.totalorder %s57, 0
      %p220 = por %p218, %p219
      %s222 = sadd.s32 %s221, 1
      %p225 = scmp.eq.s32.totalorder %s51, 1
      %p226 = scmp.ne.s32.totalorder %s221, %s223
      %p227 = scmp.eq.s32.totalorder %s51, 0
      %p228 = por %p226, %p227
      %p229 = scmp.ne.s32.totalorder %s221, %s223
      %p230 = scmp.eq.s32.totalorder %s56, 1
      %p231 = por %p229, %p230
      %p232 = scmp.ne.s32.totalorder %s223, %s224
      %p233 = scmp.eq.s32.totalorder %s56, 0
      %p234 = por %p232, %p233
      %p235 = scmp.ne.s32.totalorder %s223, %s224
      %p236 = scmp.eq.s32.totalorder %s57, 1
      %p237 = por %p235, %p236
      %p239 = scmp.ne.s32.totalorder %s224, %s238
      %p240 = scmp.eq.s32.totalorder %s57, 0
      %p241 = por %p239, %p240
      %s243 = sadd.s32 %s242, 1
      %p246 = scmp.eq.s32.totalorder %s51, 1
      %p247 = scmp.ne.s32.totalorder %s242, %s244
      %p248 = scmp.eq.s32.totalorder %s51, 0
      %p249 = por %p247, %p248
      %p250 = scmp.ne.s32.totalorder %s242, %s244
      %p251 = scmp.eq.s32.totalorder %s56, 1
      %p252 = por %p250, %p251
      %p253 = scmp.ne.s32.totalorder %s244, %s245
      %p254 = scmp.eq.s32.totalorder %s56, 0
      %p255 = por %p253, %p254
      %p256 = scmp.ne.s32.totalorder %s244, %s245
      %p257 = scmp.eq.s32.totalorder %s57, 1
      %p258 = por %p256, %p257
      %p260 = scmp.ne.s32.totalorder %s245, %s259
      %p261 = scmp.eq.s32.totalorder %s57, 0
      %p262 = por %p260, %p261
      %s264 = sadd.s32 %s263, 1
      %p267 = scmp.eq.s32.totalorder %s51, 1
      %p268 = scmp.ne.s32.totalorder %s263, %s265
      %p269 = scmp.eq.s32.totalorder %s51, 0
      %p270 = por %p268, %p269
      %p271 = scmp.ne.s32.totalorder %s263, %s265
      %p272 = scmp.eq.s32.totalorder %s56, 1
      %p273 = por %p271, %p272
      %p274 = scmp.ne.s32.totalorder %s265, %s266
      %p275 = scmp.eq.s32.totalorder %s56, 0
      %p276 = por %p274, %p275
      %p277 = scmp.ne.s32.totalorder %s265, %s266
      %p278 = scmp.eq.s32.totalorder %s57, 1
      %p279 = por %p277, %p278
      %p281 = scmp.ne.s32.totalorder %s266, %s280
      %p282 = scmp.eq.s32.totalorder %s57, 0
      %p283 = por %p281, %p282
      %s285 = sadd.s32 %s284, 1
      %p288 = scmp.eq.s32.totalorder %s51, 1
      %p289 = scmp.ne.s32.totalorder %s284, %s286
      %p290 = scmp.eq.s32.totalorder %s51, 0
      %p291 = por %p289, %p290
      %p292 = scmp.ne.s32.totalorder %s284, %s286
      %p293 = scmp.eq.s32.totalorder %s56, 1
      %p294 = por %p292, %p293
      %p295 = scmp.ne.s32.totalorder %s286, %s287
      %p296 = scmp.eq.s32.totalorder %s56, 0
      %p297 = por %p295, %p296
      %p298 = scmp.ne.s32.totalorder %s286, %s287
      %p299 = scmp.eq.s32.totalorder %s57, 1
      %p300 = por %p298, %p299
      %p302 = scmp.ne.s32.totalorder %s287, %s301
      %p303 = scmp.eq.s32.totalorder %s57, 0
      %p304 = por %p302, %p303
      %s306 = sadd.s32 %s305, 1
      %p309 = scmp.eq.s32.totalorder %s51, 1
      %p310 = scmp.ne.s32.totalorder %s305, %s307
      %p311 = scmp.eq.s32.totalorder %s51, 0
      %p312 = por %p310, %p311
      %p313 = scmp.ne.s32.totalorder %s305, %s307
      %p314 = scmp.eq.s32.totalorder %s56, 1
      %p315 = por %p313, %p314
      %p316 = scmp.ne.s32.totalorder %s307, %s308
      %p317 = scmp.eq.s32.totalorder %s56, 0
      %p318 = por %p316, %p317
      %p319 = scmp.ne.s32.totalorder %s307, %s308
      %p320 = scmp.eq.s32.totalorder %s57, 1
      %p321 = por %p319, %p320
      %p323 = scmp.ne.s32.totalorder %s308, %s322
      %p324 = scmp.eq.s32.totalorder %s57, 0
      %p325 = por %p323, %p324
      %s327 = sadd.s32 %s326, 1
      %p330 = scmp.eq.s32.totalorder %s51, 1
      %p331 = scmp.ne.s32.totalorder %s326, %s328
      %p332 = scmp.eq.s32.totalorder %s51, 0
      %p333 = por %p331, %p332
      %p334 = scmp.ne.s32.totalorder %s326, %s328
      %p335 = scmp.eq.s32.totalorder %s56, 1
      %p336 = por %p334, %p335
      %p337 = scmp.ne.s32.totalorder %s328, %s329
      %p338 = scmp.eq.s32.totalorder %s56, 0
      %p339 = por %p337, %p338
      %p340 = scmp.ne.s32.totalorder %s328, %s329
      %p341 = scmp.eq.s32.totalorder %s57, 1
      %p342 = por %p340, %p341
      %p344 = scmp.ne.s32.totalorder %s329, %s343
      %p345 = scmp.eq.s32.totalorder %s57, 0
      %p346 = por %p344, %p345
      %s348 = sadd.s32 %s347, 1
      %p351 = scmp.eq.s32.totalorder %s51, 1
      %p352 = scmp.ne.s32.totalorder %s347, %s349
      %p353 = scmp.eq.s32.totalorder %s51, 0
      %p354 = por %p352, %p353
      %p355 = scmp.ne.s32.totalorder %s347, %s349
      %p356 = scmp.eq.s32.totalorder %s56, 1
      %p357 = por %p355, %p356
      %p358 = scmp.ne.s32.totalorder %s349, %s350
      %p359 = scmp.eq.s32.totalorder %s56, 0
      %p360 = por %p358, %p359
      %p361 = scmp.ne.s32.totalorder %s349, %s350
      %p362 = scmp.eq.s32.totalorder %s57, 1
      %p363 = por %p361, %p362
      %p365 = scmp.ne.s32.totalorder %s350, %s364
      %p366 = scmp.eq.s32.totalorder %s57, 0
      %p367 = por %p365, %p366
      %s369 = sadd.s32 %s368, 1
      %p372 = scmp.eq.s32.totalorder %s51, 1
      %p373 = scmp.ne.s32.totalorder %s368, %s370
      %p374 = scmp.eq.s32.totalorder %s51, 0
      %p375 = por %p373, %p374
      %p376 = scmp.ne.s32.totalorder %s368, %s370
      %p377 = scmp.eq.s32.totalorder %s56, 1
      %p378 = por %p376, %p377
      %p379 = scmp.ne.s32.totalorder %s370, %s371
      %p380 = scmp.eq.s32.totalorder %s56, 0
      %p381 = por %p379, %p380
      %p382 = scmp.ne.s32.totalorder %s370, %s371
      %p383 = scmp.eq.s32.totalorder %s57, 1
      %p384 = por %p382, %p383
      %p386 = scmp.ne.s32.totalorder %s371, %s385
      %p387 = scmp.eq.s32.totalorder %s57, 0
      %p388 = por %p386, %p387
      %s390 = sadd.s32 %s389, 1
      %p393 = scmp.eq.s32.totalorder %s51, 1
      %p394 = scmp.ne.s32.totalorder %s389, %s391
      %p395 = scmp.eq.s32.totalorder %s51, 0
      %p396 = por %p394, %p395
      %p397 = scmp.ne.s32.totalorder %s389, %s391
      %p398 = scmp.eq.s32.totalorder %s56, 1
      %p399 = por %p397, %p398
      %p400 = scmp.ne.s32.totalorder %s391, %s392
      %p401 = scmp.eq.s32.totalorder %s56, 0
      %p402 = por %p400, %p401
      %p403 = scmp.ne.s32.totalorder %s391, %s392
      %p404 = scmp.eq.s32.totalorder %s57, 1
      %p405 = por %p403, %p404
      %p407 = scmp.ne.s32.totalorder %s392, %s406
      %p408 = scmp.eq.s32.totalorder %s57, 0
      %p409 = por %p407, %p408
      %s411 = sadd.s32 %s410, 1
      %p414 = scmp.eq.s32.totalorder %s51, 1
      %p415 = scmp.ne.s32.totalorder %s410, %s412
      %p416 = scmp.eq.s32.totalorder %s51, 0
      %p417 = por %p415, %p416
      %p418 = scmp.ne.s32.totalorder %s410, %s412
      %p419 = scmp.eq.s32.totalorder %s56, 1
      %p420 = por %p418, %p419
      %p421 = scmp.ne.s32.totalorder %s412, %s413
      %p422 = scmp.eq.s32.totalorder %s56, 0
      %p423 = por %p421, %p422
      %p424 = scmp.ne.s32.totalorder %s412, %s413
      %p425 = scmp.eq.s32.totalorder %s57, 1
      %p426 = por %p424, %p425
      %p428 = scmp.ne.s32.totalorder %s413, %s427
      %p429 = scmp.eq.s32.totalorder %s57, 0
      %p430 = por %p428, %p429
      %s432 = sadd.s32 %s431, 1
      %p435 = scmp.eq.s32.totalorder %s51, 1
      %p436 = scmp.ne.s32.totalorder %s431, %s433
      %p437 = scmp.eq.s32.totalorder %s51, 0
      %p438 = por %p436, %p437
      %p439 = scmp.ne.s32.totalorder %s431, %s433
      %p440 = scmp.eq.s32.totalorder %s56, 1
      %p441 = por %p439, %p440
      %p442 = scmp.ne.s32.totalorder %s433, %s434
      %p443 = scmp.eq.s32.totalorder %s56, 0
      %p444 = por %p442, %p443
      %p445 = scmp.ne.s32.totalorder %s433, %s434
      %p446 = scmp.eq.s32.totalorder %s57, 1
      %p447 = por %p445, %p446
      %p449 = scmp.ne.s32.totalorder %s434, %s448
      %p450 = scmp.eq.s32.totalorder %s57, 0
      %p451 = por %p449, %p450
      %s453 = sadd.s32 %s452, 1
      %p456 = scmp.eq.s32.totalorder %s51, 1
      %p457 = scmp.ne.s32.totalorder %s452, %s454
      %p458 = scmp.eq.s32.totalorder %s51, 0
      %p459 = por %p457, %p458
      %p460 = scmp.ne.s32.totalorder %s452, %s454
      %p461 = scmp.eq.s32.totalorder %s56, 1
      %p462 = por %p460, %p461
      %p463 = scmp.ne.s32.totalorder %s454, %s455
      %p464 = scmp.eq.s32.totalorder %s56, 0
      %p465 = por %p463, %p464
      %p466 = scmp.ne.s32.totalorder %s454, %s455
      %p467 = scmp.eq.s32.totalorder %s57, 1
      %p468 = por %p466, %p467
      %p470 = scmp.ne.s32.totalorder %s455, %s469
      %p471 = scmp.eq.s32.totalorder %s57, 0
      %p472 = por %p470, %p471
      %s474 = sadd.s32 %s473, 1
      %p477 = scmp.eq.s32.totalorder %s51, 1
      %p478 = scmp.ne.s32.totalorder %s473, %s475
      %p479 = scmp.eq.s32.totalorder %s51, 0
      %p480 = por %p478, %p479
      %p481 = scmp.ne.s32.totalorder %s473, %s475
      %p482 = scmp.eq.s32.totalorder %s56, 1
      %p483 = por %p481, %p482
      %p484 = scmp.ne.s32.totalorder %s475, %s476
      %p485 = scmp.eq.s32.totalorder %s56, 0
      %p486 = por %p484, %p485
      %p487 = scmp.ne.s32.totalorder %s475, %s476
      %p488 = scmp.eq.s32.totalorder %s57, 1
      %p489 = por %p487, %p488
      %p491 = scmp.ne.s32.totalorder %s476, %s490
      %p492 = scmp.eq.s32.totalorder %s57, 0
      %p493 = por %p491, %p492
      %s495 = sadd.s32 %s494, 1
      %p498 = scmp.eq.s32.totalorder %s51, 1
      %p499 = scmp.ne.s32.totalorder %s494, %s496
      %p500 = scmp.eq.s32.totalorder %s51, 0
      %p501 = por %p499, %p500
      %p502 = scmp.ne.s32.totalorder %s494, %s496
      %p503 = scmp.eq.s32.totalorder %s56, 1
      %p504 = por %p502, %p503
      %p505 = scmp.ne.s32.totalorder %s496, %s497
      %p506 = scmp.eq.s32.totalorder %s56, 0
      %p507 = por %p505, %p506
      %p508 = scmp.ne.s32.totalorder %s496, %s497
      %p509 = scmp.eq.s32.totalorder %s57, 1
      %p510 = por %p508, %p509
      %p512 = scmp.ne.s32.totalorder %s497, %s511
      %p513 = scmp.eq.s32.totalorder %s57, 0
      %p514 = por %p512, %p513
      %s516 = sadd.s32 %s515, 1
      %p519 = scmp.eq.s32.totalorder %s51, 1
      %p520 = scmp.ne.s32.totalorder %s515, %s517
      %p521 = scmp.eq.s32.totalorder %s51, 0
      %p522 = por %p520, %p521
      %p523 = scmp.ne.s32.totalorder %s515, %s517
      %p524 = scmp.eq.s32.totalorder %s56, 1
      %p525 = por %p523, %p524
      %p526 = scmp.ne.s32.totalorder %s517, %s518
      %p527 = scmp.eq.s32.totalorder %s56, 0
      %p528 = por %p526, %p527
      %p529 = scmp.ne.s32.totalorder %s517, %s518
      %p530 = scmp.eq.s32.totalorder %s57, 1
      %p531 = por %p529, %p530
      %p533 = scmp.ne.s32.totalorder %s518, %s532
      %p534 = scmp.eq.s32.totalorder %s57, 0
      %p535 = por %p533, %p534
      %s537 = sadd.s32 %s536, 1
      %p540 = scmp.eq.s32.totalorder %s51, 1
      %p541 = scmp.ne.s32.totalorder %s536, %s538
      %p542 = scmp.eq.s32.totalorder %s51, 0
      %p543 = por %p541, %p542
      %p544 = scmp.ne.s32.totalorder %s536, %s538
      %p545 = scmp.eq.s32.totalorder %s56, 1
      %p546 = por %p544, %p545
      %p547 = scmp.ne.s32.totalorder %s538, %s539
      %p548 = scmp.eq.s32.totalorder %s56, 0
      %p549 = por %p547, %p548
      %p550 = scmp.ne.s32.totalorder %s538, %s539
      %p551 = scmp.eq.s32.totalorder %s57, 1
      %p552 = por %p550, %p551
      %p554 = scmp.ne.s32.totalorder %s539, %s553
      %p555 = scmp.eq.s32.totalorder %s57, 0
      %p556 = por %p554, %p555
      %s558 = sadd.s32 %s557, 1
      %p561 = scmp.eq.s32.totalorder %s51, 1
      %p562 = scmp.ne.s32.totalorder %s557, %s559
      %p563 = scmp.eq.s32.totalorder %s51, 0
      %p564 = por %p562, %p563
      %p565 = scmp.ne.s32.totalorder %s557, %s559
      %p566 = scmp.eq.s32.totalorder %s56, 1
      %p567 = por %p565, %p566
      %p568 = scmp.ne.s32.totalorder %s559, %s560
      %p569 = scmp.eq.s32.totalorder %s56, 0
      %p570 = por %p568, %p569
      %p571 = scmp.ne.s32.totalorder %s559, %s560
      %p572 = scmp.eq.s32.totalorder %s57, 1
      %p573 = por %p571, %p572
      %p575 = scmp.ne.s32.totalorder %s560, %s574
      %p576 = scmp.eq.s32.totalorder %s57, 0
      %p577 = por %p575, %p576
      %s579 = sadd.s32 %s578, 1
      %p582 = scmp.eq.s32.totalorder %s51, 1
      %p583 = scmp.ne.s32.totalorder %s578, %s580
      %p584 = scmp.eq.s32.totalorder %s51, 0
      %p585 = por %p583, %p584
      %p586 = scmp.ne.s32.totalorder %s578, %s580
      %p587 = scmp.eq.s32.totalorder %s56, 1
      %p588 = por %p586, %p587
      %p589 = scmp.ne.s32.totalorder %s580, %s581
      %p590 = scmp.eq.s32.totalorder %s56, 0
      %p591 = por %p589, %p590
      %p592 = scmp.ne.s32.totalorder %s580, %s581
      %p593 = scmp.eq.s32.totalorder %s57, 1
      %p594 = por %p592, %p593
      %p596 = scmp.ne.s32.totalorder %s581, %s595
      %p597 = scmp.eq.s32.totalorder %s57, 0
      %p598 = por %p596, %p597
      %s600 = sadd.s32 %s599, 1
      %p603 = scmp.eq.s32.totalorder %s51, 1
      %p604 = scmp.ne.s32.totalorder %s599, %s601
      %p605 = scmp.eq.s32.totalorder %s51, 0
      %p606 = por %p604, %p605
      %p607 = scmp.ne.s32.totalorder %s599, %s601
      %p608 = scmp.eq.s32.totalorder %s56, 1
      %p609 = por %p607, %p608
      %p610 = scmp.ne.s32.totalorder %s601, %s602
      %p611 = scmp.eq.s32.totalorder %s56, 0
      %p612 = por %p610, %p611
      %p613 = scmp.ne.s32.totalorder %s601, %s602
      %p614 = scmp.eq.s32.totalorder %s57, 1
      %p615 = por %p613, %p614
      %p617 = scmp.ne.s32.totalorder %s602, %s616
      %p618 = scmp.eq.s32.totalorder %s57, 0
      %p619 = por %p617, %p618
      %s621 = sadd.s32 %s620, 1
      %p624 = scmp.eq.s32.totalorder %s51, 1
      %p625 = scmp.ne.s32.totalorder %s620, %s622
      %p626 = scmp.eq.s32.totalorder %s51, 0
      %p627 = por %p625, %p626
      %p628 = scmp.ne.s32.totalorder %s620, %s622
      %p629 = scmp.eq.s32.totalorder %s56, 1
      %p630 = por %p628, %p629
      %p631 = scmp.ne.s32.totalorder %s622, %s623
      %p632 = scmp.eq.s32.totalorder %s56, 0
      %p633 = por %p631, %p632
      %p634 = scmp.ne.s32.totalorder %s622, %s623
      %p635 = scmp.eq.s32.totalorder %s57, 1
      %p636 = por %p634, %p635
      %p638 = scmp.ne.s32.totalorder %s623, %s637
      %p639 = scmp.eq.s32.totalorder %s57, 0
      %p640 = por %p638, %p639
      %s642 = sadd.s32 %s641, 1
      %p645 = scmp.eq.s32.totalorder %s51, 1
      %p646 = scmp.ne.s32.totalorder %s641, %s643
      %p647 = scmp.eq.s32.totalorder %s51, 0
      %p648 = por %p646, %p647
      %p649 = scmp.ne.s32.totalorder %s641, %s643
      %p650 = scmp.eq.s32.totalorder %s56, 1
      %p651 = por %p649, %p650
      %p652 = scmp.ne.s32.totalorder %s643, %s644
      %p653 = scmp.eq.s32.totalorder %s56, 0
      %p654 = por %p652, %p653
      %p655 = scmp.ne.s32.totalorder %s643, %s644
      %p656 = scmp.eq.s32.totalorder %s57, 1
      %p657 = por %p655, %p656
      %p659 = scmp.ne.s32.totalorder %s644, %s658
      %p660 = scmp.eq.s32.totalorder %s57, 0
      %p661 = por %p659, %p660
      %s662 = ssub.s32 %s51, %s58
      %p663 = scmp.eq.s32.totalorder %s662, 0
      %s665 = sadd.s32 %s664, 1
      %s666 = scalar_select %p663, %s664, %s665
      %p669 = pneg %p663
      %p670 = scmp.eq.s32.totalorder %s51, 1
      %p671 = por %p669, %p670
      %p672 = scmp.ne.s32.totalorder %s664, %s667
      %p673 = scmp.eq.s32.totalorder %s51, 0
      %p674 = por %p672, %p673
      %p675 = scmp.ne.s32.totalorder %s664, %s667
      %p676 = scmp.eq.s32.totalorder %s56, 1
      %p677 = por %p675, %p676
      %p678 = scmp.ne.s32.totalorder %s667, %s668
      %p679 = scmp.eq.s32.totalorder %s56, 0
      %p680 = por %p678, %p679
      %p681 = scmp.ne.s32.totalorder %s667, %s668
      %p682 = scmp.eq.s32.totalorder %s57, 1
      %p683 = por %p681, %p682
      %p685 = scmp.ne.s32.totalorder %s668, %s684
      %p686 = scmp.eq.s32.totalorder %s57, 0
      %p687 = por %p685, %p686
      %p688 = scmp.le.s32.totalorder 1, %s51
      %p689 = scmp.lt.s32.totalorder %s51, 3
      %p690 = pnand %p688, %p689
      %p691 = pneg %p690
      // Predicated region
      $region9: #{tpu_custom_call.1} parent=5 // pred_check
        _
      $region10: #{tpu_custom_call.1} parent=5 // pred_check_branch
        %693 = sbr.rel (%p690) target = $region12
      $region11: #{tpu_custom_call.1} parent=5 // pred_region
        %s694 = ssub.s32 %s51, 1
        // Predicated region
        $region13: #{tpu_custom_call.1} parent=11 // pred_check
          %p695 = pneg %p150
        $region14: #{tpu_custom_call.1} parent=11 // pred_check_branch
          %697 = sbr.rel (%p695) target = $region16
        $region15: #{tpu_custom_call.1} parent=11 // pred_region
          _
        $region16: #{tpu_custom_call.1} parent=11 // pred_fallthru
          _
        // Predicated region
        $region17: #{tpu_custom_call.1} parent=11 // pred_check
          %p698 = pneg %p171
        $region18: #{tpu_custom_call.1} parent=11 // pred_check_branch
          %700 = sbr.rel (%p698) target = $region20
        $region19: #{tpu_custom_call.1} parent=11 // pred_region
          %702 = vsyncadd [#allocation9], 0
          %s704 = sshll.u32 %s4, 4
          %s705 = int_to_ptr.hbm [resolvable:$true] %s704
          %s706 = sshll.u32 [#allocation10], 4
          %s707 = int_to_ptr.vmem [resolvable:$true] %s706
          %709 = dma.hbm_to_vmem [thread:$0]  %s705, 16, %s707, [#allocation9]
        $region20: #{tpu_custom_call.1} parent=11 // pred_fallthru
          _
        // Predicated region
        $region21: #{tpu_custom_call.1} parent=11 // pred_check
          %p710 = pneg %p192
        $region22: #{tpu_custom_call.1} parent=11 // pred_check_branch
          %712 = sbr.rel (%p710) target = $region24
        $region23: #{tpu_custom_call.1} parent=11 // pred_region
          %714 = vsyncadd [#allocation12], 0
          %s716 = sshll.u32 %s5, 4
          %s717 = int_to_ptr.hbm [resolvable:$true] %s716
          %s718 = sshll.u32 [#allocation11], 4
          %s719 = int_to_ptr.vmem [resolvable:$true] %s718
          %721 = dma.hbm_to_vmem [thread:$0]  %s717, 16, %s719, [#allocation12]
        $region24: #{tpu_custom_call.1} parent=11 // pred_fallthru
          _
        // Predicated region
        $region25: #{tpu_custom_call.1} parent=11 // pred_check
          %p722 = pneg %p213
        $region26: #{tpu_custom_call.1} parent=11 // pred_check_branch
          %724 = sbr.rel (%p722) target = $region28
        $region27: #{tpu_custom_call.1} parent=11 // pred_region
          %726 = vsyncadd [#allocation12], 0
          %s728 = sshll.u32 %s6, 4
          %s729 = int_to_ptr.hbm [resolvable:$true] %s728
          %s730 = sshll.u32 [#allocation13], 4
          %s731 = int_to_ptr.vmem [resolvable:$true] %s730
          %733 = dma.hbm_to_vmem [thread:$0]  %s729, 16, %s731, [#allocation12]
        $region28: #{tpu_custom_call.1} parent=11 // pred_fallthru
          _
        // Predicated region
        $region29: #{tpu_custom_call.1} parent=11 // pred_check
          %p734 = pneg %p234
        $region30: #{tpu_custom_call.1} parent=11 // pred_check_branch
          %736 = sbr.rel (%p734) target = $region32
        $region31: #{tpu_custom_call.1} parent=11 // pred_region
          _
        $region32: #{tpu_custom_call.1} parent=11 // pred_fallthru
          _
        // Predicated region
        $region33: #{tpu_custom_call.1} parent=11 // pred_check
          %p737 = pneg %p255
        $region34: #{tpu_custom_call.1} parent=11 // pred_check_branch
          %739 = sbr.rel (%p737) target = $region36
        $region35: #{tpu_custom_call.1} parent=11 // pred_region
          %741 = vsyncadd [#allocation15], 0
          %s743 = sshll.u32 %s8, 4
          %s744 = int_to_ptr.hbm [resolvable:$true] %s743
          %s745 = sshll.u32 [#allocation14], 4
          %s746 = int_to_ptr.vmem [resolvable:$true] %s745
          %748 = dma.hbm_to_vmem [thread:$0]  %s744, 16, %s746, [#allocation15]
        $region36: #{tpu_custom_call.1} parent=11 // pred_fallthru
          _
        // Predicated region
        $region37: #{tpu_custom_call.1} parent=11 // pred_check
          %p749 = pneg %p276
        $region38: #{tpu_custom_call.1} parent=11 // pred_check_branch
          %751 = sbr.rel (%p749) target = $region40
        $region39: #{tpu_custom_call.1} parent=11 // pred_region
          %753 = vsyncadd [#allocation15], 0
          %s755 = sshll.u32 %s9, 4
          %s756 = int_to_ptr.hbm [resolvable:$true] %s755
          %s757 = sshll.u32 [#allocation16], 4
          %s758 = int_to_ptr.vmem [resolvable:$true] %s757
          %760 = dma.hbm_to_vmem [thread:$0]  %s756, 16, %s758, [#allocation15]
        $region40: #{tpu_custom_call.1} parent=11 // pred_fallthru
          _
        // Predicated region
        $region41: #{tpu_custom_call.1} parent=11 // pred_check
          %p761 = pneg %p297
        $region42: #{tpu_custom_call.1} parent=11 // pred_check_branch
          %763 = sbr.rel (%p761) target = $region44
        $region43: #{tpu_custom_call.1} parent=11 // pred_region
          %765 = vsyncadd [#allocation18], 0
          %s767 = sshll.u32 %s10, 4
          %s768 = int_to_ptr.hbm [resolvable:$true] %s767
          %s769 = sshll.u32 [#allocation17], 4
          %s770 = int_to_ptr.vmem [resolvable:$true] %s769
          %772 = dma.hbm_to_vmem [thread:$0]  %s768, 16, %s770, [#allocation18]
        $region44: #{tpu_custom_call.1} parent=11 // pred_fallthru
          _
        // Predicated region
        $region45: #{tpu_custom_call.1} parent=11 // pred_check
          %p773 = pneg %p318
        $region46: #{tpu_custom_call.1} parent=11 // pred_check_branch
          %775 = sbr.rel (%p773) target = $region48
        $region47: #{tpu_custom_call.1} parent=11 // pred_region
          _
        $region48: #{tpu_custom_call.1} parent=11 // pred_fallthru
          _
        // Predicated region
        $region49: #{tpu_custom_call.1} parent=11 // pred_check
          %p776 = pneg %p339
        $region50: #{tpu_custom_call.1} parent=11 // pred_check_branch
          %778 = sbr.rel (%p776) target = $region52
        $region51: #{tpu_custom_call.1} parent=11 // pred_region
          %780 = vsyncadd [#allocation18], 0
          %s782 = sshll.u32 %s12, 4
          %s783 = int_to_ptr.hbm [resolvable:$true] %s782
          %s784 = sshll.u32 [#allocation19], 4
          %s785 = int_to_ptr.vmem [resolvable:$true] %s784
          %787 = dma.hbm_to_vmem [thread:$0]  %s783, 32, %s785, [#allocation18]
        $region52: #{tpu_custom_call.1} parent=11 // pred_fallthru
          _
        // Predicated region
        $region53: #{tpu_custom_call.1} parent=11 // pred_check
          %p788 = pneg %p360
        $region54: #{tpu_custom_call.1} parent=11 // pred_check_branch
          %790 = sbr.rel (%p788) target = $region56
        $region55: #{tpu_custom_call.1} parent=11 // pred_region
          _
        $region56: #{tpu_custom_call.1} parent=11 // pred_fallthru
          _
        // Predicated region
        $region57: #{tpu_custom_call.1} parent=11 // pred_check
          %p791 = pneg %p381
        $region58: #{tpu_custom_call.1} parent=11 // pred_check_branch
          %793 = sbr.rel (%p791) target = $region60
        $region59: #{tpu_custom_call.1} parent=11 // pred_region
          _
        $region60: #{tpu_custom_call.1} parent=11 // pred_fallthru
          _
        // Predicated region
        $region61: #{tpu_custom_call.1} parent=11 // pred_check
          %p794 = pneg %p402
        $region62: #{tpu_custom_call.1} parent=11 // pred_check_branch
          %796 = sbr.rel (%p794) target = $region64
        $region63: #{tpu_custom_call.1} parent=11 // pred_region
          %798 = vsyncadd [#allocation21], 0
          %s800 = sshll.u32 %s15, 4
          %s801 = int_to_ptr.hbm [resolvable:$true] %s800
          %s802 = sshll.u32 [#allocation20], 4
          %s803 = int_to_ptr.vmem [resolvable:$true] %s802
          %805 = dma.hbm_to_vmem [thread:$0]  %s801, 16, %s803, [#allocation21]
        $region64: #{tpu_custom_call.1} parent=11 // pred_fallthru
          _
        // Predicated region
        $region65: #{tpu_custom_call.1} parent=11 // pred_check
          %p806 = pneg %p423
        $region66: #{tpu_custom_call.1} parent=11 // pred_check_branch
          %808 = sbr.rel (%p806) target = $region68
        $region67: #{tpu_custom_call.1} parent=11 // pred_region
          %810 = vsyncadd [#allocation21], 0
          %s812 = sshll.u32 %s16, 4
          %s813 = int_to_ptr.hbm [resolvable:$true] %s812
          %s814 = sshll.u32 [#allocation22], 4
          %s815 = int_to_ptr.vmem [resolvable:$true] %s814
          %817 = dma.hbm_to_vmem [thread:$0]  %s813, 16, %s815, [#allocation21]
        $region68: #{tpu_custom_call.1} parent=11 // pred_fallthru
          _
        // Predicated region
        $region69: #{tpu_custom_call.1} parent=11 // pred_check
          %p818 = pneg %p444
        $region70: #{tpu_custom_call.1} parent=11 // pred_check_branch
          %820 = sbr.rel (%p818) target = $region72
        $region71: #{tpu_custom_call.1} parent=11 // pred_region
          %822 = vsyncadd [#allocation24], 0
          %s823 = sshll.u32 %s17, 4
          %s824 = int_to_ptr.hbm [resolvable:$true] %s823
          %s825 = sshll.u32 [#allocation23], 4
          %s826 = int_to_ptr.vmem [resolvable:$true] %s825
          %831 = dma.hbm_to_vmem [thread:$0]  %s824, 384, %s826, [#allocation24], 64, 64, 4
        $region72: #{tpu_custom_call.1} parent=11 // pred_fallthru
          _
        // Predicated region
        $region73: #{tpu_custom_call.1} parent=11 // pred_check
          %p832 = pneg %p465
        $region74: #{tpu_custom_call.1} parent=11 // pred_check_branch
          %834 = sbr.rel (%p832) target = $region76
        $region75: #{tpu_custom_call.1} parent=11 // pred_region
          _
        $region76: #{tpu_custom_call.1} parent=11 // pred_fallthru
          _
        // Predicated region
        $region77: #{tpu_custom_call.1} parent=11 // pred_check
          %p835 = pneg %p486
        $region78: #{tpu_custom_call.1} parent=11 // pred_check_branch
          %837 = sbr.rel (%p835) target = $region80
        $region79: #{tpu_custom_call.1} parent=11 // pred_region
          %839 = vsyncadd [#allocation24], 0
          %s840 = sshll.u32 %s19, 4
          %s841 = int_to_ptr.hbm [resolvable:$true] %s840
          %s842 = sshll.u32 [#allocation25], 4
          %s843 = int_to_ptr.vmem [resolvable:$true] %s842
          %848 = dma.hbm_to_vmem [thread:$0]  %s841, 384, %s843, [#allocation24], 64, 64, 4
        $region80: #{tpu_custom_call.1} parent=11 // pred_fallthru
          _
        // Predicated region
        $region81: #{tpu_custom_call.1} parent=11 // pred_check
          %p849 = pneg %p507
        $region82: #{tpu_custom_call.1} parent=11 // pred_check_branch
          %851 = sbr.rel (%p849) target = $region84
        $region83: #{tpu_custom_call.1} parent=11 // pred_region
          _
        $region84: #{tpu_custom_call.1} parent=11 // pred_fallthru
          _
        // Predicated region
        $region85: #{tpu_custom_call.1} parent=11 // pred_check
          %p852 = pneg %p528
        $region86: #{tpu_custom_call.1} parent=11 // pred_check_branch
          %854 = sbr.rel (%p852) target = $region88
        $region87: #{tpu_custom_call.1} parent=11 // pred_region
          _
        $region88: #{tpu_custom_call.1} parent=11 // pred_fallthru
          _
        // Predicated region
        $region89: #{tpu_custom_call.1} parent=11 // pred_check
          %p855 = pneg %p549
        $region90: #{tpu_custom_call.1} parent=11 // pred_check_branch
          %857 = sbr.rel (%p855) target = $region92
        $region91: #{tpu_custom_call.1} parent=11 // pred_region
          _
        $region92: #{tpu_custom_call.1} parent=11 // pred_fallthru
          _
        // Predicated region
        $region93: #{tpu_custom_call.1} parent=11 // pred_check
          %p858 = pneg %p570
        $region94: #{tpu_custom_call.1} parent=11 // pred_check_branch
          %860 = sbr.rel (%p858) target = $region96
        $region95: #{tpu_custom_call.1} parent=11 // pred_region
          %862 = vsyncadd [#allocation27], 0
          %s863 = sshll.u32 %s23, 4
          %s864 = int_to_ptr.hbm [resolvable:$true] %s863
          %s865 = sshll.u32 [#allocation26], 4
          %s866 = int_to_ptr.vmem [resolvable:$true] %s865
          %871 = dma.hbm_to_vmem [thread:$0]  %s864, 4096, %s866, [#allocation27], 256, 256, 16
        $region96: #{tpu_custom_call.1} parent=11 // pred_fallthru
          _
        // Predicated region
        $region97: #{tpu_custom_call.1} parent=11 // pred_check
          %p872 = pneg %p591
        $region98: #{tpu_custom_call.1} parent=11 // pred_check_branch
          %874 = sbr.rel (%p872) target = $region100
        $region99: #{tpu_custom_call.1} parent=11 // pred_region
          %876 = vsyncadd [#allocation27], 0
          %s877 = sshll.u32 %s24, 4
          %s878 = int_to_ptr.hbm [resolvable:$true] %s877
          %s879 = sshll.u32 [#allocation28], 4
          %s880 = int_to_ptr.vmem [resolvable:$true] %s879
          %885 = dma.hbm_to_vmem [thread:$0]  %s878, 4096, %s880, [#allocation27], 256, 256, 16
        $region100: #{tpu_custom_call.1} parent=11 // pred_fallthru
          _
        // Predicated region
        $region101: #{tpu_custom_call.1} parent=11 // pred_check
          %p886 = pneg %p612
        $region102: #{tpu_custom_call.1} parent=11 // pred_check_branch
          %888 = sbr.rel (%p886) target = $region104
        $region103: #{tpu_custom_call.1} parent=11 // pred_region
          _
        $region104: #{tpu_custom_call.1} parent=11 // pred_fallthru
          _
        // Predicated region
        $region105: #{tpu_custom_call.1} parent=11 // pred_check
          %p889 = pneg %p633
        $region106: #{tpu_custom_call.1} parent=11 // pred_check_branch
          %891 = sbr.rel (%p889) target = $region108
        $region107: #{tpu_custom_call.1} parent=11 // pred_region
          _
        $region108: #{tpu_custom_call.1} parent=11 // pred_fallthru
          _
        // Predicated region
        $region109: #{tpu_custom_call.1} parent=11 // pred_check
          %p892 = pneg %p654
        $region110: #{tpu_custom_call.1} parent=11 // pred_check_branch
          %894 = sbr.rel (%p892) target = $region112
        $region111: #{tpu_custom_call.1} parent=11 // pred_region
          _
        $region112: #{tpu_custom_call.1} parent=11 // pred_fallthru
          _
      $region12: #{tpu_custom_call.1} parent=5 // pred_fallthru
        _
      %p895 = scmp.lt.s32.totalorder %s51, 2
      // Predicated region
      $region113: #{tpu_custom_call.1} parent=5 // pred_check
        %p896 = pneg %p895
      $region114: #{tpu_custom_call.1} parent=5 // pred_check_branch
        %898 = sbr.rel (%p896) target = $region116
      $region115: #{tpu_custom_call.1} parent=5 // pred_region
        // Predicated region
        $region117: #{tpu_custom_call.1} parent=115 // pred_check
          %p899 = pneg %p71
        $region118: #{tpu_custom_call.1} parent=115 // pred_check_branch
          %901 = sbr.rel (%p899) target = $region120
        $region119: #{tpu_custom_call.1} parent=115 // pred_region
          %s902 = sand.u32 %s61, 1
          %s903 = scalar_lea.sflag [#allocation6], %s902
          %s904 = sand.u32 %s61, 1
          %s905 = smul.addr %s904, 8
          %s906 = scalar_lea.vmem [#allocation5], %s905
          %908 = vsyncadd %s903, 0
          %s909 = smul.addr %s51, 8
          %s910 = scalar_lea.hbm %s0, %s909
          %s912 = sshll.u32 %s910, 4
          %s913 = int_to_ptr.hbm [resolvable:$true] %s912
          %s914 = sshll.u32 %s906, 4
          %s915 = int_to_ptr.vmem [resolvable:$true] %s914
          %917 = dma.hbm_to_vmem [thread:$0]  %s913, 128, %s915, %s903
        $region120: #{tpu_custom_call.1} parent=115 // pred_fallthru
          _
        // Predicated region
        $region121: #{tpu_custom_call.1} parent=115 // pred_check
          %p918 = pneg %p97
        $region122: #{tpu_custom_call.1} parent=115 // pred_check_branch
          %920 = sbr.rel (%p918) target = $region124
        $region123: #{tpu_custom_call.1} parent=115 // pred_region
          %p921 = scmp.lt.s32.totalorder %s51, 1
          %s922 = scalar_select %p921, %s51, 1
          %s923 = smul.addr %s922, 8
          %s924 = scalar_lea.vmem %s1, %s923
        $region124: #{tpu_custom_call.1} parent=115 // pred_fallthru
          _
        // Predicated region
        $region125: #{tpu_custom_call.1} parent=115 // pred_check
          %p925 = pneg %p123
        $region126: #{tpu_custom_call.1} parent=115 // pred_check_branch
          %927 = sbr.rel (%p925) target = $region128
        $region127: #{tpu_custom_call.1} parent=115 // pred_region
          %s928 = sand.u32 %s51, 1
          %s929 = scalar_lea.sflag [#allocation9], %s928
          %s930 = sand.u32 %s113, 1
          %s931 = scalar_lea.vmem [#allocation8], %s930
          %933 = vsyncadd %s929, 0
          %s934 = scalar_lea.hbm %s2, %s51
          %s936 = sshll.u32 %s934, 4
          %s937 = int_to_ptr.hbm [resolvable:$true] %s936
          %s938 = sshll.u32 %s931, 4
          %s939 = int_to_ptr.vmem [resolvable:$true] %s938
          %941 = dma.hbm_to_vmem [thread:$0]  %s937, 16, %s939, %s929
        $region128: #{tpu_custom_call.1} parent=115 // pred_fallthru
          _
      $region116: #{tpu_custom_call.1} parent=5 // pred_fallthru
        _
      %p942 = scmp.le.s32.totalorder 1, %s51
      %p943 = scmp.lt.s32.totalorder %s51, 3
      %p944 = pnand %p942, %p943
      %p945 = pneg %p944
      // Predicated region
      $region129: #{tpu_custom_call.1} parent=5 // pred_check
        _
      $region130: #{tpu_custom_call.1} parent=5 // pred_check_branch
        %947 = sbr.rel (%p944) target = $region132
      $region131: #{tpu_custom_call.1} parent=5 // pred_region
        %s948 = ssub.s32 %s51, 1
        %s949 = sand.u32 %s64, 1
        %s950 = scalar_lea.sflag [#allocation6], %s949
        %s951 = sand.u32 %s64, 1
        %s952 = smul.addr %s951, 8
        %s953 = scalar_lea.vmem [#allocation5], %s952
        // Predicated region
        $region133: #{tpu_custom_call.1} parent=131 // pred_check
          %p954 = pneg %p77
        $region134: #{tpu_custom_call.1} parent=131 // pred_check_branch
          %956 = sbr.rel (%p954) target = $region136
        $region135: #{tpu_custom_call.1} parent=131 // pred_region
          %958 = dma.done %s950, 128
        $region136: #{tpu_custom_call.1} parent=131 // pred_fallthru
          _
        %s959 = sand.u32 %s56, 1
        %s960 = scalar_lea.sflag [#allocation9], %s959
        %s961 = sand.u32 %s116, 1
        %s962 = scalar_lea.vmem [#allocation8], %s961
        // Predicated region
        $region137: #{tpu_custom_call.1} parent=131 // pred_check
          %p963 = pneg %p129
        $region138: #{tpu_custom_call.1} parent=131 // pred_check_branch
          %965 = sbr.rel (%p963) target = $region140
        $region139: #{tpu_custom_call.1} parent=131 // pred_region
          %967 = dma.done %s960, 16
        $region140: #{tpu_custom_call.1} parent=131 // pred_fallthru
          _
        // Predicated region
        $region141: #{tpu_custom_call.1} parent=131 // pred_check
          %p968 = pneg %p171
        $region142: #{tpu_custom_call.1} parent=131 // pred_check_branch
          %970 = sbr.rel (%p968) target = $region144
        $region143: #{tpu_custom_call.1} parent=131 // pred_region
          %972 = dma.done [#allocation9], 16
        $region144: #{tpu_custom_call.1} parent=131 // pred_fallthru
          _
        // Predicated region
        $region145: #{tpu_custom_call.1} parent=131 // pred_check
          %p973 = pneg %p192
        $region146: #{tpu_custom_call.1} parent=131 // pred_check_branch
          %975 = sbr.rel (%p973) target = $region148
        $region147: #{tpu_custom_call.1} parent=131 // pred_region
          %977 = dma.done [#allocation12], 16
        $region148: #{tpu_custom_call.1} parent=131 // pred_fallthru
          _
        // Predicated region
        $region149: #{tpu_custom_call.1} parent=131 // pred_check
          %p978 = pneg %p213
        $region150: #{tpu_custom_call.1} parent=131 // pred_check_branch
          %980 = sbr.rel (%p978) target = $region152
        $region151: #{tpu_custom_call.1} parent=131 // pred_region
          %982 = dma.done [#allocation12], 16
        $region152: #{tpu_custom_call.1} parent=131 // pred_fallthru
          _
        // Predicated region
        $region153: #{tpu_custom_call.1} parent=131 // pred_check
          %p983 = pneg %p255
        $region154: #{tpu_custom_call.1} parent=131 // pred_check_branch
          %985 = sbr.rel (%p983) target = $region156
        $region155: #{tpu_custom_call.1} parent=131 // pred_region
          %987 = dma.done [#allocation15], 16
        $region156: #{tpu_custom_call.1} parent=131 // pred_fallthru
          _
        // Predicated region
        $region157: #{tpu_custom_call.1} parent=131 // pred_check
          %p988 = pneg %p276
        $region158: #{tpu_custom_call.1} parent=131 // pred_check_branch
          %990 = sbr.rel (%p988) target = $region160
        $region159: #{tpu_custom_call.1} parent=131 // pred_region
          %992 = dma.done [#allocation15], 16
        $region160: #{tpu_custom_call.1} parent=131 // pred_fallthru
          _
        // Predicated region
        $region161: #{tpu_custom_call.1} parent=131 // pred_check
          %p993 = pneg %p297
        $region162: #{tpu_custom_call.1} parent=131 // pred_check_branch
          %995 = sbr.rel (%p993) target = $region164
        $region163: #{tpu_custom_call.1} parent=131 // pred_region
          %997 = dma.done [#allocation18], 16
        $region164: #{tpu_custom_call.1} parent=131 // pred_fallthru
          _
        // Predicated region
        $region165: #{tpu_custom_call.1} parent=131 // pred_check
          %p998 = pneg %p339
        $region166: #{tpu_custom_call.1} parent=131 // pred_check_branch
          %1000 = sbr.rel (%p998) target = $region168
        $region167: #{tpu_custom_call.1} parent=131 // pred_region
          %1002 = dma.done [#allocation18], 32
        $region168: #{tpu_custom_call.1} parent=131 // pred_fallthru
          _
        // Predicated region
        $region169: #{tpu_custom_call.1} parent=131 // pred_check
          %p1003 = pneg %p402
        $region170: #{tpu_custom_call.1} parent=131 // pred_check_branch
          %1005 = sbr.rel (%p1003) target = $region172
        $region171: #{tpu_custom_call.1} parent=131 // pred_region
          %1007 = dma.done [#allocation21], 16
        $region172: #{tpu_custom_call.1} parent=131 // pred_fallthru
          _
        // Predicated region
        $region173: #{tpu_custom_call.1} parent=131 // pred_check
          %p1008 = pneg %p423
        $region174: #{tpu_custom_call.1} parent=131 // pred_check_branch
          %1010 = sbr.rel (%p1008) target = $region176
        $region175: #{tpu_custom_call.1} parent=131 // pred_region
          %1012 = dma.done [#allocation21], 16
        $region176: #{tpu_custom_call.1} parent=131 // pred_fallthru
          _
        // Predicated region
        $region177: #{tpu_custom_call.1} parent=131 // pred_check
          %p1013 = pneg %p444
        $region178: #{tpu_custom_call.1} parent=131 // pred_check_branch
          %1015 = sbr.rel (%p1013) target = $region180
        $region179: #{tpu_custom_call.1} parent=131 // pred_region
          %1017 = dma.done [#allocation24], 384
        $region180: #{tpu_custom_call.1} parent=131 // pred_fallthru
          _
        // Predicated region
        $region181: #{tpu_custom_call.1} parent=131 // pred_check
          %p1018 = pneg %p486
        $region182: #{tpu_custom_call.1} parent=131 // pred_check_branch
          %1020 = sbr.rel (%p1018) target = $region184
        $region183: #{tpu_custom_call.1} parent=131 // pred_region
          %1022 = dma.done [#allocation24], 384
        $region184: #{tpu_custom_call.1} parent=131 // pred_fallthru
          _
        // Predicated region
        $region185: #{tpu_custom_call.1} parent=131 // pred_check
          %p1023 = pneg %p570
        $region186: #{tpu_custom_call.1} parent=131 // pred_check_branch
          %1025 = sbr.rel (%p1023) target = $region188
        $region187: #{tpu_custom_call.1} parent=131 // pred_region
          %1027 = dma.done [#allocation27], 4096
        $region188: #{tpu_custom_call.1} parent=131 // pred_fallthru
          _
        // Predicated region
        $region189: #{tpu_custom_call.1} parent=131 // pred_check
          %p1028 = pneg %p591
        $region190: #{tpu_custom_call.1} parent=131 // pred_check_branch
          %1030 = sbr.rel (%p1028) target = $region192
        $region191: #{tpu_custom_call.1} parent=131 // pred_region
          %1032 = dma.done [#allocation27], 4096
        $region192: #{tpu_custom_call.1} parent=131 // pred_fallthru
          _
        %s1033 = sand.u32 %s64, 1
        %s1034 = scalar_lea.sflag [#allocation6], %s1033
        %s1035 = sand.u32 %s64, 1
        %s1036 = smul.addr %s1035, 8
        %s1037 = scalar_lea.vmem [#allocation5], %s1036
        %p1038 = pneg %p77
        %p1039 = pneg %p74
        %p1040 = scmp.lt.s32.totalorder %s56, 1
        %s1041 = scalar_select %p1040, %s56, 1
        %s1042 = smul.addr %s1041, 8
        %s1043 = scalar_lea.vmem %s1, %s1042
        %p1044 = pneg %p103
        %p1045 = pneg %p100
        %s1046 = sand.u32 %s56, 1
        %s1047 = scalar_lea.sflag [#allocation9], %s1046
        %s1048 = sand.u32 %s116, 1
        %s1049 = scalar_lea.vmem [#allocation8], %s1048
        %p1050 = pneg %p129
        %p1051 = pneg %p126
        %p1052 = pneg %p150
        %p1053 = pneg %p147
        %p1054 = pneg %p171
        %p1055 = pneg %p168
        %p1056 = pneg %p192
        %p1057 = pneg %p189
        %p1058 = pneg %p213
        %p1059 = pneg %p210
        %p1060 = pneg %p234
        %p1061 = pneg %p231
        %p1062 = pneg %p255
        %p1063 = pneg %p252
        %p1064 = pneg %p276
        %p1065 = pneg %p273
        %p1066 = pneg %p297
        %p1067 = pneg %p294
        %p1068 = pneg %p318
        %p1069 = pneg %p315
        %p1070 = pneg %p339
        %p1071 = pneg %p336
        %p1072 = pneg %p360
        %p1073 = pneg %p357
        %p1074 = pneg %p381
        %p1075 = pneg %p378
        %p1076 = pneg %p402
        %p1077 = pneg %p399
        %p1078 = pneg %p423
        %p1079 = pneg %p420
        %p1080 = pneg %p444
        %p1081 = pneg %p441
        %p1082 = pneg %p465
        %p1083 = pneg %p462
        %p1084 = pneg %p486
        %p1085 = pneg %p483
        %p1086 = pneg %p507
        %p1087 = pneg %p504
        %p1088 = pneg %p528
        %p1089 = pneg %p525
        %p1090 = pneg %p549
        %p1091 = pneg %p546
        %p1092 = pneg %p570
        %p1093 = pneg %p567
        %p1094 = pneg %p591
        %p1095 = pneg %p588
        %p1096 = pneg %p612
        %p1097 = pneg %p609
        %p1098 = pneg %p633
        %p1099 = pneg %p630
        %p1100 = pneg %p654
        %p1101 = pneg %p651
        %p1102 = pneg %p680
        %p1103 = pneg %p677
        %s1104 = sand.u32 %s667, 1
        %s1105 = scalar_lea.sflag [#allocation7], %s1104
        %s1106 = sand.u32 %s667, 1
        %s1107 = scalar_lea.vmem [#allocation29], %s1106
        %p1108 = scmp.lt.s32.totalorder %s56, 1
        %s1109 = scalar_select %p1108, %s56, 1
        %s1110 = smul.addr %s1109, 8
        %s1111 = scalar_lea.vmem %s1, %s1110
        %v1113 = vld [vmem:[%s953] sm:$0xff]
        %v1114 = vpack.c.bf16 %v1113, %v1113
        %v1115 = vld [vmem:[%s3] sm:$0xf]
        %v1116 = vld [vmem:[%s3 + $0x4] sm:$0xf]
        %v1117 = vld [vmem:[%s3 + $0x8] sm:$0xf]
        %v1118 = vld [vmem:[%s3 + $0xc] sm:$0xf]
        %v1119 = vld [vmem:[%s3 + $0x10] sm:$0xf]
        %v1120 = vld [vmem:[%s3 + $0x14] sm:$0xf]
        %v1121 = vld [vmem:[%s3 + $0x18] sm:$0xf]
        %v1122 = vld [vmem:[%s3 + $0x1c] sm:$0xf]
        %v1123 = vld [vmem:[%s3 + $0x20] sm:$0xf]
        %v1124 = vld [vmem:[%s3 + $0x24] sm:$0xf]
        %v1125 = vld [vmem:[#allocation10] sm:$0x1]
        %v1127 = vperm.slane %v1125, 0
        %v1139 = vunpack.c.l.b16 %v1115
        %v1140 = vunpack.c.l.b16 %v1116
        %v1141 = vunpack.c.l.b16 %v1117
        %v1142 = vunpack.c.l.b16 %v1118
        %v1143 = vunpack.c.l.b16 %v1119
        %v1144 = vunpack.c.l.b16 %v1120
        %v1145 = vunpack.c.l.b16 %v1121
        %v1146 = vunpack.c.l.b16 %v1122
        %v1147 = vunpack.c.l.b16 %v1123
        %v1148 = vunpack.c.l.b16 %v1124
        %v1149 = vpack.c.b16 %v1140, %v1139
        %v1150 = vpack.c.b16 %v1142, %v1141
        %v1151 = vpack.c.b16 %v1144, %v1143
        %v1152 = vpack.c.b16 %v1146, %v1145
        %v1153 = vpack.c.b16 %v1148, %v1147
        %vm1159 = vcmask 654336
        %v1161 = vsel %vm1159, %v1114, 0
        %1163 = vmatpush.bf16.msra.mxu0 0
        %1164 = vmatpush.bf16.msra.mxu0 0
        %1165 = vmatpush.bf16.msra.mxu0 0
        %1166 = vmatpush.bf16.msra.mxu0 %v1153
        %1167 = vmatpush.bf16.msra.mxu0 %v1152
        %1168 = vmatpush.bf16.msra.mxu0 %v1151
        %1169 = vmatpush.bf16.msra.mxu0 %v1150
        %1170 = vmatpush.bf16.msra.mxu0 %v1149
        %1171 = vmatmul.bf16.gmra.mxu0 %v1161
        %v1172 = vpop.f32.mrf.mxu0
        %v1173 = vadd.f32 %v1127, %v1172
        %v1174 = vpop.f32.mrf.mxu0
        %1175 = vdwg.mxu0
        %v1176 = vld [vmem:[#allocation11] sm:$0x1]
        %v1177 = vld [vmem:[#allocation13] sm:$0x1]
        %vm1178 = vcmask 195584
        %v1179 = vsel %vm1178, %v1173, 0.0
        %1180 = vadd.xlane.f32.xlu0 %v1179
        %v1181 = vpop.xlane.xlu0 %1180
        %v1182 = vrcp.pop 24.0
        %v1183 = vmul.f32 24.0, %v1182
        %v1184 = vsub.f32 1.0, %v1183
        %v1185 = vmul.f32 %v1182, %v1184
        %v1186 = vadd.f32 %v1182, %v1185
        %vm1187 = vweird.f32 %v1182
        %v1188 = vsel %vm1187, %v1182, %v1186
        %v1189 = vmul.f32 %v1181, %v1188
        %v1190 = vsub.f32 %v1173, %v1189
        %v1191 = vmul.f32 %v1190, %v1190
        %v1192 = vsel %vm1178, %v1191, 0.0
        %1193 = vadd.xlane.f32.xlu0 %v1192
        %v1194 = vpop.xlane.xlu0 %1193
        %v1195 = vmul.f32 %v1194, %v1188
        %v1196 = vadd.f32 %v1195, 1e-05
        %v1197 = vrsqrt.pop %v1196
        %v1198 = vmul.f32 %v1197, %v1196
        %v1199 = vmul.f32 %v1198, %v1197
        %v1200 = vmul.f32 0.5, %v1199
        %v1201 = vsub.f32 1.5, %v1200
        %v1202 = vmul.f32 %v1197, %v1201
        %vm1203 = vweird.f32 %v1196
        %vm1204 = vweird.f32 %v1197
        %vm1205 = vmor %vm1203, %vm1204
        %v1206 = vsel %vm1205, %v1197, %v1202
        %v1207 = vmul.f32 %v1190, %v1206
        %v1209 = vperm.slane %v1176, 0
        %v1211 = vmul.f32 %v1207, %v1209
        %v1213 = vperm.slane %v1177, 0
        %v1215 = vadd.f32 %v1211, %v1213
        %v1216 = vld [vmem:[%s1111] sm:$0xff]
        %v1217 = vpack.c.bf16 %v1216, %v1216
        %v1218 = vld [vmem:[%s7] sm:$0x7]
        %v1219 = vld [vmem:[#allocation14] sm:$0x1]
        %v1221 = vperm.slane %v1219, 0
        %vm1223 = vcmask 48128
        %v1225 = vsel %vm1223, %v1217, 0
        %vm1227 = vcmask 1042432
        %v1229 = vsel %vm1227, %v1218, 0
        %1231 = vmatpush.bf16.msra.mxu0 0
        %1232 = vmatpush.bf16.msra.mxu0 0
        %1233 = vmatpush.bf16.msra.mxu0 0
        %1234 = vmatpush.bf16.msra.mxu0 0
        %1235 = vmatpush.bf16.msra.mxu0 0
        %1236 = vmatpush.bf16.msra.mxu0 0
        %1237 = vmatpush.bf16.msra.mxu0 0
        %1238 = vmatpush.bf16.msra.mxu0 %v1229
        %1239 = vmatmul.bf16.gmra.mxu0 %v1225
        %v1240 = vpop.f32.mrf.mxu0
        %v1241 = vadd.f32 %v1221, %v1240
        %v1242 = vpop.f32.mrf.mxu0
        %1243 = vdwg.mxu0
        %v1244 = vld [vmem:[#allocation16] sm:$0x1]
        %v1245 = vld [vmem:[#allocation17] sm:$0x1]
        %v1246 = vsel %vm1178, %v1241, 0.0
        %1247 = vadd.xlane.f32.xlu0 %v1246
        %v1248 = vpop.xlane.xlu0 %1247
        %v1249 = vmul.f32 %v1248, %v1188
        %v1250 = vsub.f32 %v1241, %v1249
        %v1251 = vmul.f32 %v1250, %v1250
        %v1252 = vsel %vm1178, %v1251, 0.0
        %1253 = vadd.xlane.f32.xlu0 %v1252
        %v1254 = vpop.xlane.xlu0 %1253
        %v1255 = vmul.f32 %v1254, %v1188
        %v1256 = vadd.f32 %v1255, 1e-05
        %v1257 = vrsqrt.pop %v1256
        %v1258 = vmul.f32 %v1257, %v1256
        %v1259 = vmul.f32 %v1258, %v1257
        %v1260 = vmul.f32 0.5, %v1259
        %v1261 = vsub.f32 1.5, %v1260
        %v1262 = vmul.f32 %v1257, %v1261
        %vm1263 = vweird.f32 %v1256
        %vm1264 = vweird.f32 %v1257
        %vm1265 = vmor %vm1263, %vm1264
        %v1266 = vsel %vm1265, %v1257, %v1262
        %v1267 = vmul.f32 %v1250, %v1266
        %v1269 = vperm.slane %v1244, 0
        %v1271 = vmul.f32 %v1267, %v1269
        %v1273 = vperm.slane %v1245, 0
        %v1275 = vadd.f32 %v1271, %v1273
        %1277 = vrot.lane.b32.xlu0 %v1275, 24
        %v1278 = vpop.permute.xlu0 %1277
        %v1280 = vsel %vm1178, %v1215, %v1278
        %v1281 = vpack.c.bf16 %v1280, %v1280
        %v1282 = vld [vmem:[%s11] sm:$0xff]
        %v1283 = vld [vmem:[%s11 + $0x8] sm:$0xff]
        %v1284 = vld [vmem:[%s11 + $0x10] sm:$0xff]
        %v1285 = vld [vmem:[%s11 + $0x18] sm:$0xff]
        %v1286 = vld [vmem:[%s11 + $0x20] sm:$0xff]
        %v1287 = vld [vmem:[%s11 + $0x28] sm:$0xff]
        %v1288 = vld [vmem:[#allocation19] sm:$0x3]
        %v1290 = vperm.slane %v1288, 0
        %v1291 = vperm.slane %v1288, 1
        %v1300 = vunpack.c.l.b16 %v1282
        %v1301 = vunpack.c.h.b16 %v1282
        %v1302 = vunpack.c.l.b16 %v1283
        %v1303 = vunpack.c.h.b16 %v1283
        %v1304 = vunpack.c.l.b16 %v1284
        %v1305 = vunpack.c.h.b16 %v1284
        %v1306 = vunpack.c.l.b16 %v1285
        %v1307 = vunpack.c.h.b16 %v1285
        %v1308 = vunpack.c.l.b16 %v1286
        %v1309 = vunpack.c.h.b16 %v1286
        %v1310 = vunpack.c.l.b16 %v1287
        %v1311 = vunpack.c.h.b16 %v1287
        %v1312 = vpack.c.b16 %v1302, %v1300
        %v1313 = vpack.c.b16 %v1303, %v1301
        %v1314 = vpack.c.b16 %v1306, %v1304
        %v1315 = vpack.c.b16 %v1307, %v1305
        %v1316 = vpack.c.b16 %v1310, %v1308
        %v1317 = vpack.c.b16 %v1311, %v1309
        %vm1324 = vcmask 392192
        %v1326 = vsel %vm1324, %v1281, 0
        %1328 = vmatpush.bf16.msra.mxu0 0
        %1329 = vmatpush.bf16.msra.mxu0 0
        %1330 = vmatpush.bf16.msra.mxu0 0
        %1331 = vmatpush.bf16.msra.mxu0 0
        %1332 = vmatpush.bf16.msra.mxu0 0
        %1333 = vmatpush.bf16.msra.mxu0 %v1316
        %1334 = vmatpush.bf16.msra.mxu0 %v1314
        %1335 = vmatpush.bf16.msra.mxu0 %v1312
        %1336 = vmatmul.bf16.gmra.mxu0 %v1326
        %v1337 = vpop.f32.mrf.mxu0
        %v1338 = vadd.f32 %v1290, %v1337
        %v1339 = vpop.f32.mrf.mxu0
        %1340 = vdwg.mxu0
        %1341 = vmatpush.bf16.msra.mxu0 0
        %1342 = vmatpush.bf16.msra.mxu0 0
        %1343 = vmatpush.bf16.msra.mxu0 0
        %1344 = vmatpush.bf16.msra.mxu0 0
        %1345 = vmatpush.bf16.msra.mxu0 0
        %1346 = vmatpush.bf16.msra.mxu0 %v1317
        %1347 = vmatpush.bf16.msra.mxu0 %v1315
        %1348 = vmatpush.bf16.msra.mxu0 %v1313
        %1349 = vmatmul.bf16.gmra.mxu0 %v1326
        %v1350 = vpop.f32.mrf.mxu0
        %v1351 = vadd.f32 %v1291, %v1350
        %v1352 = vpop.f32.mrf.mxu0
        %1353 = vdwg.mxu0
        %v1354 = vpack.c.bf16 %v1351, %v1338
        %1356 = vrot.lane.b32.xlu0 %v1354, 116
        %v1357 = vpop.permute.xlu0 %1356
        %1358 = vrot.lane.b32.xlu0 %v1354, 104
        %v1359 = vpop.permute.xlu0 %1358
        %1360 = vrot.lane.b32.xlu0 %v1354, 92
        %v1361 = vpop.permute.xlu0 %1360
        %1362 = vrot.lane.b32.xlu0 %v1354, 124
        %v1363 = vpop.permute.xlu0 %1362
        %v1364 = vrot.slane %v1363, 4
        %v1365 = vrot.slane %v1359, 4
        %vm1366 = vcmask 850944
        %v1367 = vsel %vm1366, %v1359, %v1365
        %1368 = vrot.lane.b32.xlu0 %v1364, 96
        %v1369 = vpop.permute.xlu0 %1368
        %v1370 = vlaneseq
        %v1371 = vshrl.u32 %v1370, 7
        %v1372 = vlaneseq
        %v1373 = vand.u32 %v1372, 127
        %vm1374 = vcmp.gt.s32.totalorder %v1373, %v1371
        %v1375 = vld [vmem:[%s962] sm:$0x1]
        %vm1376 = vcmp.gt.f32.partialorder %v1375, 0.5
        %v1377 = vsel %vm1376, 1, 0
        %v1378 = vperm.slane %v1377, 0
        %vm1379 = vcmp.eq.s32.totalorder %v1378, 1
        %vm1380 = vmor %vm1374, %vm1379
        %v1381 = vunpack.c.l.b16 %v1354
        %v1382 = vpack.c.b16 %v1381, %v1381
        %1383 = vrot.lane.b32.xlu0 %v1382, 80
        %v1384 = vpop.permute.xlu0 %1383
        %vm1385 = vcmask 97280
        %v1387 = vsel %vm1385, %v1354, 0
        %v1390 = vsel %vm1385, %v1384, 0
        %1392 = vmatpush.bf16.xpose.msra.mxu0 0
        %1393 = vmatpush.bf16.xpose.msra.mxu0 0
        %1394 = vmatpush.bf16.xpose.msra.mxu0 0
        %1395 = vmatpush.bf16.xpose.msra.mxu0 0
        %1396 = vmatpush.bf16.xpose.msra.mxu0 0
        %1397 = vmatpush.bf16.xpose.msra.mxu0 0
        %1398 = vmatpush.bf16.xpose.msra.mxu0 0
        %1399 = vmatpush.bf16.xpose.msra.mxu0 %v1390
        %1400 = vmatmul.bf16.gmra.mxu0 %v1387
        %v1401 = vpop.f32.mrf.mxu0
        %v1402 = vadd.f32 0.0, %v1401
        %v1403 = vpop.f32.mrf.mxu0
        %1404 = vdwg.mxu0
        %v1405 = vunpack.c.l.b16 %v1357
        %v1406 = vpack.c.b16 %v1405, %v1405
        %1407 = vrot.lane.b32.xlu0 %v1406, 80
        %v1408 = vpop.permute.xlu0 %1407
        %v1410 = vsel %vm1385, %v1357, 0
        %v1413 = vsel %vm1385, %v1408, 0
        %1415 = vmatpush.bf16.xpose.msra.mxu0 0
        %1416 = vmatpush.bf16.xpose.msra.mxu0 0
        %1417 = vmatpush.bf16.xpose.msra.mxu0 0
        %1418 = vmatpush.bf16.xpose.msra.mxu0 0
        %1419 = vmatpush.bf16.xpose.msra.mxu0 0
        %1420 = vmatpush.bf16.xpose.msra.mxu0 0
        %1421 = vmatpush.bf16.xpose.msra.mxu0 0
        %1422 = vmatpush.bf16.xpose.msra.mxu0 %v1413
        %1423 = vmatmul.bf16.gmra.mxu0 %v1410
        %v1424 = vpop.f32.mrf.mxu0
        %v1425 = vadd.f32 0.0, %v1424
        %v1426 = vpop.f32.mrf.mxu0
        %1427 = vdwg.mxu0
        %v1428 = vunpack.c.l.b16 %v1359
        %v1429 = vpack.c.b16 %v1428, %v1428
        %1430 = vrot.lane.b32.xlu0 %v1429, 80
        %v1431 = vpop.permute.xlu0 %1430
        %v1433 = vsel %vm1385, %v1359, 0
        %v1436 = vsel %vm1385, %v1431, 0
        %1438 = vmatpush.bf16.xpose.msra.mxu0 0
        %1439 = vmatpush.bf16.xpose.msra.mxu0 0
        %1440 = vmatpush.bf16.xpose.msra.mxu0 0
        %1441 = vmatpush.bf16.xpose.msra.mxu0 0
        %1442 = vmatpush.bf16.xpose.msra.mxu0 0
        %1443 = vmatpush.bf16.xpose.msra.mxu0 0
        %1444 = vmatpush.bf16.xpose.msra.mxu0 0
        %1445 = vmatpush.bf16.xpose.msra.mxu0 %v1436
        %1446 = vmatmul.bf16.gmra.mxu0 %v1433
        %v1447 = vpop.f32.mrf.mxu0
        %v1448 = vadd.f32 0.0, %v1447
        %v1449 = vpop.f32.mrf.mxu0
        %1450 = vdwg.mxu0
        %v1451 = vunpack.c.l.b16 %v1361
        %v1452 = vpack.c.b16 %v1451, %v1451
        %1453 = vrot.lane.b32.xlu0 %v1452, 80
        %v1454 = vpop.permute.xlu0 %1453
        %v1456 = vsel %vm1385, %v1361, 0
        %v1459 = vsel %vm1385, %v1454, 0
        %1461 = vmatpush.bf16.xpose.msra.mxu0 0
        %1462 = vmatpush.bf16.xpose.msra.mxu0 0
        %1463 = vmatpush.bf16.xpose.msra.mxu0 0
        %1464 = vmatpush.bf16.xpose.msra.mxu0 0
        %1465 = vmatpush.bf16.xpose.msra.mxu0 0
        %1466 = vmatpush.bf16.xpose.msra.mxu0 0
        %1467 = vmatpush.bf16.xpose.msra.mxu0 0
        %1468 = vmatpush.bf16.xpose.msra.mxu0 %v1459
        %1469 = vmatmul.bf16.gmra.mxu0 %v1456
        %v1470 = vpop.f32.mrf.mxu0
        %v1471 = vadd.f32 0.0, %v1470
        %v1472 = vpop.f32.mrf.mxu0
        %1473 = vdwg.mxu0
        %v1474 = vsel %vm1380, 1, 0
        %vm1475 = vcmp.eq.s32.totalorder %v1474, 1
        %v1476 = vsel %vm1475, -1e+30, %v1402
        %v1477 = vsel %vm1475, -1e+30, %v1425
        %v1478 = vsel %vm1475, -1e+30, %v1448
        %v1479 = vsel %vm1475, -1e+30, %v1471
        %vm1480 = vcmask 64512
        %v1481 = vsel %vm1480, %v1476, -inf
        %1482 = vmax.xlane.f32.xlu0 %v1481
        %v1483 = vpop.xlane.xlu0 %1482
        %v1484 = vsel %vm1480, %v1477, -inf
        %1485 = vmax.xlane.f32.xlu0 %v1484
        %v1486 = vpop.xlane.xlu0 %1485
        %v1487 = vsel %vm1480, %v1478, -inf
        %1488 = vmax.xlane.f32.xlu0 %v1487
        %v1489 = vpop.xlane.xlu0 %1488
        %v1490 = vsel %vm1480, %v1479, -inf
        %1491 = vmax.xlane.f32.xlu0 %v1490
        %v1492 = vpop.xlane.xlu0 %1491
        %v1493 = vsub.f32 %v1476, %v1483
        %v1494 = vsub.f32 %v1477, %v1486
        %v1495 = vsub.f32 %v1478, %v1489
        %v1496 = vsub.f32 %v1479, %v1492
        %v1497 = vmul.f32 %v1493, 1.442695
        %v1498 = vpow.pop %v1497
        %v1499 = vmul.f32 %v1494, 1.442695
        %v1500 = vpow.pop %v1499
        %v1501 = vmul.f32 %v1495, 1.442695
        %v1502 = vpow.pop %v1501
        %v1503 = vmul.f32 %v1496, 1.442695
        %v1504 = vpow.pop %v1503
        %v1505 = vsel %vm1480, %v1498, 0.0
        %1506 = vadd.xlane.f32.xlu0 %v1505
        %v1507 = vpop.xlane.xlu0 %1506
        %v1508 = vsel %vm1480, %v1500, 0.0
        %1509 = vadd.xlane.f32.xlu0 %v1508
        %v1510 = vpop.xlane.xlu0 %1509
        %v1511 = vsel %vm1480, %v1502, 0.0
        %1512 = vadd.xlane.f32.xlu0 %v1511
        %v1513 = vpop.xlane.xlu0 %1512
        %v1514 = vsel %vm1480, %v1504, 0.0
        %1515 = vadd.xlane.f32.xlu0 %v1514
        %v1516 = vpop.xlane.xlu0 %1515
        %v1517 = vrcp.pop %v1507
        %v1518 = vrcp.pop %v1510
        %v1519 = vrcp.pop %v1513
        %v1520 = vrcp.pop %v1516
        %v1521 = vmul.f32 %v1498, %v1517
        %v1522 = vmul.f32 %v1500, %v1518
        %v1523 = vmul.f32 %v1502, %v1519
        %v1524 = vmul.f32 %v1504, %v1520
        %v1525 = vpack.c.bf16 %v1521, %v1521
        %v1526 = vpack.c.bf16 %v1522, %v1522
        %v1527 = vpack.c.bf16 %v1523, %v1523
        %v1528 = vpack.c.bf16 %v1524, %v1524
        %1529 = vrot.lane.b32.xlu0 %v1382, 32
        %v1530 = vpop.permute.xlu0 %1529
        %v1532 = vsel %vm1480, %v1525, 0
        %vm1534 = vcmask 1043456
        %v1536 = vsel %vm1534, %v1530, 0
        %1538 = vmatpush.bf16.msra.mxu0 0
        %1539 = vmatpush.bf16.msra.mxu0 0
        %1540 = vmatpush.bf16.msra.mxu0 0
        %1541 = vmatpush.bf16.msra.mxu0 0
        %1542 = vmatpush.bf16.msra.mxu0 0
        %1543 = vmatpush.bf16.msra.mxu0 0
        %1544 = vmatpush.bf16.msra.mxu0 0
        %1545 = vmatpush.bf16.msra.mxu0 %v1536
        %1546 = vmatmul.bf16.gmra.mxu0 %v1532
        %v1547 = vpop.f32.mrf.mxu0
        %v1548 = vadd.f32 0.0, %v1547
        %v1549 = vpop.f32.mrf.mxu0
        %1550 = vdwg.mxu0
        %1551 = vrot.lane.b32.xlu0 %v1406, 32
        %v1552 = vpop.permute.xlu0 %1551
        %v1554 = vsel %vm1480, %v1526, 0
        %v1557 = vsel %vm1534, %v1552, 0
        %1559 = vmatpush.bf16.msra.mxu0 0
        %1560 = vmatpush.bf16.msra.mxu0 0
        %1561 = vmatpush.bf16.msra.mxu0 0
        %1562 = vmatpush.bf16.msra.mxu0 0
        %1563 = vmatpush.bf16.msra.mxu0 0
        %1564 = vmatpush.bf16.msra.mxu0 0
        %1565 = vmatpush.bf16.msra.mxu0 0
        %1566 = vmatpush.bf16.msra.mxu0 %v1557
        %1567 = vmatmul.bf16.gmra.mxu0 %v1554
        %v1568 = vpop.f32.mrf.mxu0
        %v1569 = vadd.f32 0.0, %v1568
        %v1570 = vpop.f32.mrf.mxu0
        %1571 = vdwg.mxu0
        %v1572 = vunpack.c.l.b16 %v1367
        %v1573 = vpack.c.b16 %v1572, %v1572
        %1574 = vrot.lane.b32.xlu0 %v1573, 32
        %v1575 = vpop.permute.xlu0 %1574
        %v1577 = vsel %vm1480, %v1527, 0
        %v1580 = vsel %vm1534, %v1575, 0
        %1582 = vmatpush.bf16.msra.mxu0 0
        %1583 = vmatpush.bf16.msra.mxu0 0
        %1584 = vmatpush.bf16.msra.mxu0 0
        %1585 = vmatpush.bf16.msra.mxu0 0
        %1586 = vmatpush.bf16.msra.mxu0 0
        %1587 = vmatpush.bf16.msra.mxu0 0
        %1588 = vmatpush.bf16.msra.mxu0 0
        %1589 = vmatpush.bf16.msra.mxu0 %v1580
        %1590 = vmatmul.bf16.gmra.mxu0 %v1577
        %v1591 = vpop.f32.mrf.mxu0
        %v1592 = vadd.f32 0.0, %v1591
        %v1593 = vpop.f32.mrf.mxu0
        %1594 = vdwg.mxu0
        %v1595 = vunpack.c.l.b16 %v1369
        %v1596 = vpack.c.b16 %v1595, %v1595
        %1597 = vrot.lane.b32.xlu0 %v1596, 32
        %v1598 = vpop.permute.xlu0 %1597
        %v1600 = vsel %vm1480, %v1528, 0
        %v1603 = vsel %vm1534, %v1598, 0
        %1605 = vmatpush.bf16.msra.mxu0 0
        %1606 = vmatpush.bf16.msra.mxu0 0
        %1607 = vmatpush.bf16.msra.mxu0 0
        %1608 = vmatpush.bf16.msra.mxu0 0
        %1609 = vmatpush.bf16.msra.mxu0 0
        %1610 = vmatpush.bf16.msra.mxu0 0
        %1611 = vmatpush.bf16.msra.mxu0 0
        %1612 = vmatpush.bf16.msra.mxu0 %v1603
        %1613 = vmatmul.bf16.gmra.mxu0 %v1600
        %v1614 = vpop.f32.mrf.mxu0
        %v1615 = vadd.f32 0.0, %v1614
        %v1616 = vpop.f32.mrf.mxu0
        %1617 = vdwg.mxu0
        %1619 = vrot.lane.b32.xlu0 %v1569, 12
        %v1620 = vpop.permute.xlu0 %1619
        %1623 = vrot.lane.b32.xlu0 %v1592, 24
        %v1624 = vpop.permute.xlu0 %1623
        %1627 = vrot.lane.b32.xlu0 %v1615, 36
        %v1628 = vpop.permute.xlu0 %1627
        %v1630 = vsel %vm1385, %v1548, %v1620
        %v1631 = vsel %vm1178, %v1630, %v1624
        %vm1632 = vcmask 293888
        %v1633 = vsel %vm1632, %v1631, %v1628
        %v1634 = vpack.c.bf16 %v1633, %v1633
        %v1635 = vld [vmem:[%s13] sm:$0xf]
        %v1636 = vld [vmem:[%s13 + $0x4] sm:$0xf]
        %v1637 = vld [vmem:[%s13 + $0x8] sm:$0xf]
        %v1638 = vld [vmem:[%s13 + $0xc] sm:$0xf]
        %v1639 = vld [vmem:[%s13 + $0x10] sm:$0xf]
        %v1640 = vld [vmem:[%s13 + $0x14] sm:$0xf]
        %v1641 = vld [vmem:[%s14] sm:$0x1]
        %v1643 = vperm.slane %v1641, 0
        %v1651 = vunpack.c.l.b16 %v1635
        %v1652 = vunpack.c.l.b16 %v1636
        %v1653 = vunpack.c.l.b16 %v1637
        %v1654 = vunpack.c.l.b16 %v1638
        %v1655 = vunpack.c.l.b16 %v1639
        %v1656 = vunpack.c.l.b16 %v1640
        %v1657 = vpack.c.b16 %v1652, %v1651
        %v1658 = vpack.c.b16 %v1654, %v1653
        %v1659 = vpack.c.b16 %v1656, %v1655
        %v1664 = vsel %vm1324, %v1634, 0
        %1666 = vmatpush.bf16.msra.mxu0 0
        %1667 = vmatpush.bf16.msra.mxu0 0
        %1668 = vmatpush.bf16.msra.mxu0 0
        %1669 = vmatpush.bf16.msra.mxu0 0
        %1670 = vmatpush.bf16.msra.mxu0 0
        %1671 = vmatpush.bf16.msra.mxu0 %v1659
        %1672 = vmatpush.bf16.msra.mxu0 %v1658
        %1673 = vmatpush.bf16.msra.mxu0 %v1657
        %1674 = vmatmul.bf16.gmra.mxu0 %v1664
        %v1675 = vpop.f32.mrf.mxu0
        %v1676 = vadd.f32 %v1643, %v1675
        %v1677 = vpop.f32.mrf.mxu0
        %1678 = vdwg.mxu0
        %v1679 = vadd.f32 %v1280, %v1676
        %v1680 = vld [vmem:[#allocation20] sm:$0x1]
        %v1681 = vld [vmem:[#allocation22] sm:$0x1]
        %v1682 = vsel %vm1324, %v1679, 0.0
        %1683 = vadd.xlane.f32.xlu0 %v1682
        %v1684 = vpop.xlane.xlu0 %1683
        %v1685 = vrcp.pop 48.0
        %v1686 = vmul.f32 48.0, %v1685
        %v1687 = vsub.f32 1.0, %v1686
        %v1688 = vmul.f32 %v1685, %v1687
        %v1689 = vadd.f32 %v1685, %v1688
        %vm1690 = vweird.f32 %v1685
        %v1691 = vsel %vm1690, %v1685, %v1689
        %v1692 = vmul.f32 %v1684, %v1691
        %v1693 = vsub.f32 %v1679, %v1692
        %v1694 = vmul.f32 %v1693, %v1693
        %v1695 = vsel %vm1324, %v1694, 0.0
        %1696 = vadd.xlane.f32.xlu0 %v1695
        %v1697 = vpop.xlane.xlu0 %1696
        %v1698 = vmul.f32 %v1697, %v1691
        %v1699 = vadd.f32 %v1698, 1e-05
        %v1700 = vrsqrt.pop %v1699
        %v1701 = vmul.f32 %v1700, %v1699
        %v1702 = vmul.f32 %v1701, %v1700
        %v1703 = vmul.f32 0.5, %v1702
        %v1704 = vsub.f32 1.5, %v1703
        %v1705 = vmul.f32 %v1700, %v1704
        %vm1706 = vweird.f32 %v1699
        %vm1707 = vweird.f32 %v1700
        %vm1708 = vmor %vm1706, %vm1707
        %v1709 = vsel %vm1708, %v1700, %v1705
        %v1710 = vmul.f32 %v1693, %v1709
        %v1712 = vperm.slane %v1680, 0
        %v1714 = vmul.f32 %v1710, %v1712
        %v1716 = vperm.slane %v1681, 0
        %v1718 = vadd.f32 %v1714, %v1716
        %v1719 = vpack.c.bf16 %v1718, %v1718
        %v1720 = vld [vmem:[#allocation23] sm:$0xf]
        %v1721 = vld [vmem:[#allocation23 + $0x4] sm:$0xf]
        %v1722 = vld [vmem:[#allocation23 + $0x8] sm:$0xf]
        %v1723 = vld [vmem:[#allocation23 + $0xc] sm:$0xf]
        %v1724 = vld [vmem:[#allocation23 + $0x10] sm:$0xf]
        %v1725 = vld [vmem:[#allocation23 + $0x14] sm:$0xf]
        %v1726 = vld [vmem:[%s18] sm:$0x1]
        %v1728 = vperm.slane %v1726, 0
        %v1736 = vunpack.c.l.b16 %v1720
        %v1737 = vunpack.c.l.b16 %v1721
        %v1738 = vunpack.c.l.b16 %v1722
        %v1739 = vunpack.c.l.b16 %v1723
        %v1740 = vunpack.c.l.b16 %v1724
        %v1741 = vunpack.c.l.b16 %v1725
        %v1742 = vpack.c.b16 %v1737, %v1736
        %v1743 = vpack.c.b16 %v1739, %v1738
        %v1744 = vpack.c.b16 %v1741, %v1740
        %v1749 = vsel %vm1324, %v1719, 0
        %1751 = vmatpush.bf16.msra.mxu0 0
        %1752 = vmatpush.bf16.msra.mxu0 0
        %1753 = vmatpush.bf16.msra.mxu0 0
        %1754 = vmatpush.bf16.msra.mxu0 0
        %1755 = vmatpush.bf16.msra.mxu0 0
        %1756 = vmatpush.bf16.msra.mxu0 %v1744
        %1757 = vmatpush.bf16.msra.mxu0 %v1743
        %1758 = vmatpush.bf16.msra.mxu0 %v1742
        %1759 = vmatmul.bf16.gmra.mxu0 %v1749
        %v1760 = vpop.f32.mrf.mxu0
        %v1761 = vadd.f32 %v1728, %v1760
        %v1762 = vpop.f32.mrf.mxu0
        %1763 = vdwg.mxu0
        %v1764 = vmax.f32 %v1761, 0.0
        %v1765 = vpack.c.bf16 %v1764, %v1764
        %v1766 = vld [vmem:[#allocation25] sm:$0xf]
        %v1767 = vld [vmem:[#allocation25 + $0x4] sm:$0xf]
        %v1768 = vld [vmem:[#allocation25 + $0x8] sm:$0xf]
        %v1769 = vld [vmem:[#allocation25 + $0xc] sm:$0xf]
        %v1770 = vld [vmem:[#allocation25 + $0x10] sm:$0xf]
        %v1771 = vld [vmem:[#allocation25 + $0x14] sm:$0xf]
        %v1772 = vld [vmem:[%s20] sm:$0x1]
        %v1774 = vperm.slane %v1772, 0
        %v1782 = vunpack.c.l.b16 %v1766
        %v1783 = vunpack.c.l.b16 %v1767
        %v1784 = vunpack.c.l.b16 %v1768
        %v1785 = vunpack.c.l.b16 %v1769
        %v1786 = vunpack.c.l.b16 %v1770
        %v1787 = vunpack.c.l.b16 %v1771
        %v1788 = vpack.c.b16 %v1783, %v1782
        %v1789 = vpack.c.b16 %v1785, %v1784
        %v1790 = vpack.c.b16 %v1787, %v1786
        %v1795 = vsel %vm1324, %v1765, 0
        %1797 = vmatpush.bf16.msra.mxu0 0
        %1798 = vmatpush.bf16.msra.mxu0 0
        %1799 = vmatpush.bf16.msra.mxu0 0
        %1800 = vmatpush.bf16.msra.mxu0 0
        %1801 = vmatpush.bf16.msra.mxu0 0
        %1802 = vmatpush.bf16.msra.mxu0 %v1790
        %1803 = vmatpush.bf16.msra.mxu0 %v1789
        %1804 = vmatpush.bf16.msra.mxu0 %v1788
        %1805 = vmatmul.bf16.gmra.mxu0 %v1795
        %v1806 = vpop.f32.mrf.mxu0
        %v1807 = vadd.f32 %v1774, %v1806
        %v1808 = vpop.f32.mrf.mxu0
        %1809 = vdwg.mxu0
        %v1810 = vadd.f32 %v1280, %v1807
        %v1811 = vld [vmem:[%s21] sm:$0x1]
        %v1812 = vld [vmem:[%s22] sm:$0x1]
        %v1813 = vsel %vm1324, %v1810, 0.0
        %1814 = vadd.xlane.f32.xlu0 %v1813
        %v1815 = vpop.xlane.xlu0 %1814
        %v1816 = vmul.f32 %v1815, %v1691
        %v1817 = vsub.f32 %v1810, %v1816
        %v1818 = vmul.f32 %v1817, %v1817
        %v1819 = vsel %vm1324, %v1818, 0.0
        %1820 = vadd.xlane.f32.xlu0 %v1819
        %v1821 = vpop.xlane.xlu0 %1820
        %v1822 = vmul.f32 %v1821, %v1691
        %v1823 = vadd.f32 %v1822, 1e-05
        %v1824 = vrsqrt.pop %v1823
        %v1825 = vmul.f32 %v1824, %v1823
        %v1826 = vmul.f32 %v1825, %v1824
        %v1827 = vmul.f32 0.5, %v1826
        %v1828 = vsub.f32 1.5, %v1827
        %v1829 = vmul.f32 %v1824, %v1828
        %vm1830 = vweird.f32 %v1823
        %vm1831 = vweird.f32 %v1824
        %vm1832 = vmor %vm1830, %vm1831
        %v1833 = vsel %vm1832, %v1824, %v1829
        %v1834 = vmul.f32 %v1817, %v1833
        %v1836 = vperm.slane %v1811, 0
        %v1838 = vmul.f32 %v1834, %v1836
        %v1840 = vperm.slane %v1812, 0
        %v1842 = vadd.f32 %v1838, %v1840
        %v1843 = vsel %vm1324, %v1842, 0.0
        %1844 = vst [vmem:[#allocation2] sm:$0xff] %v1843
        %v1845 = vld [vmem:[%s26] sm:$0x1]
        %v1846 = vld [vmem:[#allocation4] sm:$0x1]
        %v1847 = vld [vmem:[#allocation2] sm:$0xff]
        %v1848 = vpack.c.bf16 %v1847, %v1847
        %v1849 = vld [vmem:[#allocation26] sm:$0xff]
        %v1850 = vld [vmem:[#allocation26 + $0x8] sm:$0xff]
        %v1851 = vld [vmem:[#allocation26 + $0x10] sm:$0xff]
        %v1852 = vld [vmem:[#allocation26 + $0x18] sm:$0xff]
        %v1853 = vld [vmem:[#allocation26 + $0x20] sm:$0xff]
        %v1854 = vld [vmem:[#allocation26 + $0x28] sm:$0xff]
        %v1855 = vld [vmem:[#allocation26 + $0x30] sm:$0xff]
        %v1856 = vld [vmem:[#allocation26 + $0x38] sm:$0xff]
        %v1857 = vld [vmem:[#allocation26 + $0x40] sm:$0xff]
        %v1858 = vld [vmem:[#allocation26 + $0x48] sm:$0xff]
        %v1859 = vld [vmem:[#allocation26 + $0x50] sm:$0xff]
        %v1860 = vld [vmem:[#allocation26 + $0x58] sm:$0xff]
        %v1861 = vld [vmem:[#allocation26 + $0x60] sm:$0xff]
        %v1862 = vld [vmem:[#allocation26 + $0x68] sm:$0xff]
        %v1863 = vld [vmem:[#allocation26 + $0x70] sm:$0xff]
        %v1864 = vld [vmem:[#allocation26 + $0x78] sm:$0xff]
        %v1865 = vld [vmem:[#allocation26 + $0x80] sm:$0xff]
        %v1866 = vld [vmem:[#allocation26 + $0x88] sm:$0xff]
        %v1867 = vld [vmem:[#allocation26 + $0x90] sm:$0xff]
        %v1868 = vld [vmem:[#allocation26 + $0x98] sm:$0xff]
        %v1869 = vld [vmem:[#allocation26 + $0xa0] sm:$0xff]
        %v1870 = vld [vmem:[#allocation26 + $0xa8] sm:$0xff]
        %v1871 = vld [vmem:[#allocation26 + $0xb0] sm:$0xff]
        %v1872 = vld [vmem:[#allocation26 + $0xb8] sm:$0xff]
        %v1873 = vld [vmem:[#allocation26 + $0xc0] sm:$0xff]
        %v1874 = vld [vmem:[#allocation26 + $0xc8] sm:$0xff]
        %v1875 = vld [vmem:[#allocation26 + $0xd0] sm:$0xff]
        %v1876 = vld [vmem:[#allocation26 + $0xd8] sm:$0xff]
        %v1877 = vld [vmem:[#allocation26 + $0xe0] sm:$0xff]
        %v1878 = vld [vmem:[#allocation26 + $0xe8] sm:$0xff]
        %v1879 = vld [vmem:[#allocation26 + $0xf0] sm:$0xff]
        %v1880 = vld [vmem:[#allocation26 + $0xf8] sm:$0xff]
        %v1881 = vld [vmem:[%s25] sm:$0xf]
        %v1883 = vperm.slane %v1881, 0
        %v1884 = vperm.slane %v1881, 1
        %v1885 = vperm.slane %v1881, 2
        %v1886 = vperm.slane %v1881, 3
        %v1923 = vunpack.c.l.b16 %v1849
        %v1924 = vunpack.c.h.b16 %v1849
        %v1925 = vunpack.c.l.b16 %v1850
        %v1926 = vunpack.c.h.b16 %v1850
        %v1927 = vunpack.c.l.b16 %v1851
        %v1928 = vunpack.c.h.b16 %v1851
        %v1929 = vunpack.c.l.b16 %v1852
        %v1930 = vunpack.c.h.b16 %v1852
        %v1931 = vunpack.c.l.b16 %v1853
        %v1932 = vunpack.c.h.b16 %v1853
        %v1933 = vunpack.c.l.b16 %v1854
        %v1934 = vunpack.c.h.b16 %v1854
        %v1935 = vunpack.c.l.b16 %v1855
        %v1936 = vunpack.c.h.b16 %v1855
        %v1937 = vunpack.c.l.b16 %v1856
        %v1938 = vunpack.c.h.b16 %v1856
        %v1939 = vunpack.c.l.b16 %v1857
        %v1940 = vunpack.c.h.b16 %v1857
        %v1941 = vunpack.c.l.b16 %v1858
        %v1942 = vunpack.c.h.b16 %v1858
        %v1943 = vunpack.c.l.b16 %v1859
        %v1944 = vunpack.c.h.b16 %v1859
        %v1945 = vunpack.c.l.b16 %v1860
        %v1946 = vunpack.c.h.b16 %v1860
        %v1947 = vunpack.c.l.b16 %v1861
        %v1948 = vunpack.c.h.b16 %v1861
        %v1949 = vunpack.c.l.b16 %v1862
        %v1950 = vunpack.c.h.b16 %v1862
        %v1951 = vunpack.c.l.b16 %v1863
        %v1952 = vunpack.c.h.b16 %v1863
        %v1953 = vunpack.c.l.b16 %v1864
        %v1954 = vunpack.c.h.b16 %v1864
        %v1955 = vunpack.c.l.b16 %v1865
        %v1956 = vunpack.c.h.b16 %v1865
        %v1957 = vunpack.c.l.b16 %v1866
        %v1958 = vunpack.c.h.b16 %v1866
        %v1959 = vunpack.c.l.b16 %v1867
        %v1960 = vunpack.c.h.b16 %v1867
        %v1961 = vunpack.c.l.b16 %v1868
        %v1962 = vunpack.c.h.b16 %v1868
        %v1963 = vunpack.c.l.b16 %v1869
        %v1964 = vunpack.c.h.b16 %v1869
        %v1965 = vunpack.c.l.b16 %v1870
        %v1966 = vunpack.c.h.b16 %v1870
        %v1967 = vunpack.c.l.b16 %v1871
        %v1968 = vunpack.c.h.b16 %v1871
        %v1969 = vunpack.c.l.b16 %v1872
        %v1970 = vunpack.c.h.b16 %v1872
        %v1971 = vunpack.c.l.b16 %v1873
        %v1972 = vunpack.c.h.b16 %v1873
        %v1973 = vunpack.c.l.b16 %v1874
        %v1974 = vunpack.c.h.b16 %v1874
        %v1975 = vunpack.c.l.b16 %v1875
        %v1976 = vunpack.c.h.b16 %v1875
        %v1977 = vunpack.c.l.b16 %v1876
        %v1978 = vunpack.c.h.b16 %v1876
        %v1979 = vunpack.c.l.b16 %v1877
        %v1980 = vunpack.c.h.b16 %v1877
        %v1981 = vunpack.c.l.b16 %v1878
        %v1982 = vunpack.c.h.b16 %v1878
        %v1983 = vunpack.c.l.b16 %v1879
        %v1984 = vunpack.c.h.b16 %v1879
        %v1985 = vunpack.c.l.b16 %v1880
        %v1986 = vunpack.c.h.b16 %v1880
        %v1987 = vpack.c.b16 %v1927, %v1923
        %v1988 = vpack.c.b16 %v1928, %v1924
        %v1989 = vpack.c.b16 %v1929, %v1925
        %v1990 = vpack.c.b16 %v1930, %v1926
        %v1991 = vpack.c.b16 %v1935, %v1931
        %v1992 = vpack.c.b16 %v1936, %v1932
        %v1993 = vpack.c.b16 %v1937, %v1933
        %v1994 = vpack.c.b16 %v1938, %v1934
        %v1995 = vpack.c.b16 %v1943, %v1939
        %v1996 = vpack.c.b16 %v1944, %v1940
        %v1997 = vpack.c.b16 %v1945, %v1941
        %v1998 = vpack.c.b16 %v1946, %v1942
        %v1999 = vpack.c.b16 %v1951, %v1947
        %v2000 = vpack.c.b16 %v1952, %v1948
        %v2001 = vpack.c.b16 %v1953, %v1949
        %v2002 = vpack.c.b16 %v1954, %v1950
        %v2003 = vpack.c.b16 %v1959, %v1955
        %v2004 = vpack.c.b16 %v1960, %v1956
        %v2005 = vpack.c.b16 %v1961, %v1957
        %v2006 = vpack.c.b16 %v1962, %v1958
        %v2007 = vpack.c.b16 %v1967, %v1963
        %v2008 = vpack.c.b16 %v1968, %v1964
        %v2009 = vpack.c.b16 %v1969, %v1965
        %v2010 = vpack.c.b16 %v1970, %v1966
        %v2011 = vpack.c.b16 %v1975, %v1971
        %v2012 = vpack.c.b16 %v1976, %v1972
        %v2013 = vpack.c.b16 %v1977, %v1973
        %v2014 = vpack.c.b16 %v1978, %v1974
        %v2015 = vpack.c.b16 %v1983, %v1979
        %v2016 = vpack.c.b16 %v1984, %v1980
        %v2017 = vpack.c.b16 %v1985, %v1981
        %v2018 = vpack.c.b16 %v1986, %v1982
        %2051 = vmatpush.bf16.msra.mxu0 %v2015
        %2052 = vmatpush.bf16.msra.mxu0 %v2011
        %2053 = vmatpush.bf16.msra.mxu0 %v2007
        %2054 = vmatpush.bf16.msra.mxu0 %v2003
        %2055 = vmatpush.bf16.msra.mxu0 %v1999
        %2056 = vmatpush.bf16.msra.mxu0 %v1995
        %2057 = vmatpush.bf16.msra.mxu0 %v1991
        %2058 = vmatpush.bf16.msra.mxu0 %v1987
        %2059 = vmatmul.bf16.gmra.mxu0 %v1848
        %v2060 = vpop.f32.mrf.mxu0
        %v2061 = vadd.f32 %v1883, %v2060
        %v2062 = vpop.f32.mrf.mxu0
        %2063 = vdwg.mxu0
        %2064 = vmatpush.bf16.msra.mxu0 %v2016
        %2065 = vmatpush.bf16.msra.mxu0 %v2012
        %2066 = vmatpush.bf16.msra.mxu0 %v2008
        %2067 = vmatpush.bf16.msra.mxu0 %v2004
        %2068 = vmatpush.bf16.msra.mxu0 %v2000
        %2069 = vmatpush.bf16.msra.mxu0 %v1996
        %2070 = vmatpush.bf16.msra.mxu0 %v1992
        %2071 = vmatpush.bf16.msra.mxu0 %v1988
        %2072 = vmatmul.bf16.gmra.mxu0 %v1848
        %v2073 = vpop.f32.mrf.mxu0
        %v2074 = vadd.f32 %v1884, %v2073
        %v2075 = vpop.f32.mrf.mxu0
        %2076 = vdwg.mxu0
        %2077 = vmatpush.bf16.msra.mxu0 %v2017
        %2078 = vmatpush.bf16.msra.mxu0 %v2013
        %2079 = vmatpush.bf16.msra.mxu0 %v2009
        %2080 = vmatpush.bf16.msra.mxu0 %v2005
        %2081 = vmatpush.bf16.msra.mxu0 %v2001
        %2082 = vmatpush.bf16.msra.mxu0 %v1997
        %2083 = vmatpush.bf16.msra.mxu0 %v1993
        %2084 = vmatpush.bf16.msra.mxu0 %v1989
        %2085 = vmatmul.bf16.gmra.mxu0 %v1848
        %v2086 = vpop.f32.mrf.mxu0
        %v2087 = vadd.f32 %v1885, %v2086
        %v2088 = vpop.f32.mrf.mxu0
        %2089 = vdwg.mxu0
        %2090 = vmatpush.bf16.msra.mxu0 %v2018
        %2091 = vmatpush.bf16.msra.mxu0 %v2014
        %2092 = vmatpush.bf16.msra.mxu0 %v2010
        %2093 = vmatpush.bf16.msra.mxu0 %v2006
        %2094 = vmatpush.bf16.msra.mxu0 %v2002
        %2095 = vmatpush.bf16.msra.mxu0 %v1998
        %2096 = vmatpush.bf16.msra.mxu0 %v1994
        %2097 = vmatpush.bf16.msra.mxu0 %v1990
        %2098 = vmatmul.bf16.gmra.mxu0 %v1848
        %v2099 = vpop.f32.mrf.mxu0
        %v2100 = vadd.f32 %v1886, %v2099
        %v2101 = vpop.f32.mrf.mxu0
        %2102 = vdwg.mxu0
        %2103 = vst [vmem:[#allocation3] sm:$0xff] %v2061
        %2104 = vst [vmem:[#allocation3 + $0x8] sm:$0xff] %v2074
        %2105 = vst [vmem:[#allocation3 + $0x10] sm:$0xff] %v2087
        %2106 = vst [vmem:[#allocation3 + $0x18] sm:$0xff] %v2100
        %v2107 = vld [vmem:[#allocation28] sm:$0xff]
        %v2108 = vld [vmem:[#allocation28 + $0x8] sm:$0xff]
        %v2109 = vld [vmem:[#allocation28 + $0x10] sm:$0xff]
        %v2110 = vld [vmem:[#allocation28 + $0x18] sm:$0xff]
        %v2111 = vld [vmem:[#allocation28 + $0x20] sm:$0xff]
        %v2112 = vld [vmem:[#allocation28 + $0x28] sm:$0xff]
        %v2113 = vld [vmem:[#allocation28 + $0x30] sm:$0xff]
        %v2114 = vld [vmem:[#allocation28 + $0x38] sm:$0xff]
        %v2115 = vld [vmem:[#allocation28 + $0x40] sm:$0xff]
        %v2116 = vld [vmem:[#allocation28 + $0x48] sm:$0xff]
        %v2117 = vld [vmem:[#allocation28 + $0x50] sm:$0xff]
        %v2118 = vld [vmem:[#allocation28 + $0x58] sm:$0xff]
        %v2119 = vld [vmem:[#allocation28 + $0x60] sm:$0xff]
        %v2120 = vld [vmem:[#allocation28 + $0x68] sm:$0xff]
        %v2121 = vld [vmem:[#allocation28 + $0x70] sm:$0xff]
        %v2122 = vld [vmem:[#allocation28 + $0x78] sm:$0xff]
        %v2123 = vld [vmem:[#allocation28 + $0x80] sm:$0xff]
        %v2124 = vld [vmem:[#allocation28 + $0x88] sm:$0xff]
        %v2125 = vld [vmem:[#allocation28 + $0x90] sm:$0xff]
        %v2126 = vld [vmem:[#allocation28 + $0x98] sm:$0xff]
        %v2127 = vld [vmem:[#allocation28 + $0xa0] sm:$0xff]
        %v2128 = vld [vmem:[#allocation28 + $0xa8] sm:$0xff]
        %v2129 = vld [vmem:[#allocation28 + $0xb0] sm:$0xff]
        %v2130 = vld [vmem:[#allocation28 + $0xb8] sm:$0xff]
        %v2131 = vld [vmem:[#allocation28 + $0xc0] sm:$0xff]
        %v2132 = vld [vmem:[#allocation28 + $0xc8] sm:$0xff]
        %v2133 = vld [vmem:[#allocation28 + $0xd0] sm:$0xff]
        %v2134 = vld [vmem:[#allocation28 + $0xd8] sm:$0xff]
        %v2135 = vld [vmem:[#allocation28 + $0xe0] sm:$0xff]
        %v2136 = vld [vmem:[#allocation28 + $0xe8] sm:$0xff]
        %v2137 = vld [vmem:[#allocation28 + $0xf0] sm:$0xff]
        %v2138 = vld [vmem:[#allocation28 + $0xf8] sm:$0xff]
        %v2139 = vld [vmem:[#allocation3] ss:$8 sm:$0xf]
        %v2172 = vunpack.c.l.b16 %v2107
        %v2173 = vunpack.c.h.b16 %v2107
        %v2174 = vunpack.c.l.b16 %v2108
        %v2175 = vunpack.c.h.b16 %v2108
        %v2176 = vunpack.c.l.b16 %v2109
        %v2177 = vunpack.c.h.b16 %v2109
        %v2178 = vunpack.c.l.b16 %v2110
        %v2179 = vunpack.c.h.b16 %v2110
        %v2180 = vunpack.c.l.b16 %v2111
        %v2181 = vunpack.c.h.b16 %v2111
        %v2182 = vunpack.c.l.b16 %v2112
        %v2183 = vunpack.c.h.b16 %v2112
        %v2184 = vunpack.c.l.b16 %v2113
        %v2185 = vunpack.c.h.b16 %v2113
        %v2186 = vunpack.c.l.b16 %v2114
        %v2187 = vunpack.c.h.b16 %v2114
        %v2188 = vunpack.c.l.b16 %v2115
        %v2189 = vunpack.c.h.b16 %v2115
        %v2190 = vunpack.c.l.b16 %v2116
        %v2191 = vunpack.c.h.b16 %v2116
        %v2192 = vunpack.c.l.b16 %v2117
        %v2193 = vunpack.c.h.b16 %v2117
        %v2194 = vunpack.c.l.b16 %v2118
        %v2195 = vunpack.c.h.b16 %v2118
        %v2196 = vunpack.c.l.b16 %v2119
        %v2197 = vunpack.c.h.b16 %v2119
        %v2198 = vunpack.c.l.b16 %v2120
        %v2199 = vunpack.c.h.b16 %v2120
        %v2200 = vunpack.c.l.b16 %v2121
        %v2201 = vunpack.c.h.b16 %v2121
        %v2202 = vunpack.c.l.b16 %v2122
        %v2203 = vunpack.c.h.b16 %v2122
        %v2204 = vunpack.c.l.b16 %v2123
        %v2205 = vunpack.c.h.b16 %v2123
        %v2206 = vunpack.c.l.b16 %v2124
        %v2207 = vunpack.c.h.b16 %v2124
        %v2208 = vunpack.c.l.b16 %v2125
        %v2209 = vunpack.c.h.b16 %v2125
        %v2210 = vunpack.c.l.b16 %v2126
        %v2211 = vunpack.c.h.b16 %v2126
        %v2212 = vunpack.c.l.b16 %v2127
        %v2213 = vunpack.c.h.b16 %v2127
        %v2214 = vunpack.c.l.b16 %v2128
        %v2215 = vunpack.c.h.b16 %v2128
        %v2216 = vunpack.c.l.b16 %v2129
        %v2217 = vunpack.c.h.b16 %v2129
        %v2218 = vunpack.c.l.b16 %v2130
        %v2219 = vunpack.c.h.b16 %v2130
        %v2220 = vunpack.c.l.b16 %v2131
        %v2221 = vunpack.c.h.b16 %v2131
        %v2222 = vunpack.c.l.b16 %v2132
        %v2223 = vunpack.c.h.b16 %v2132
        %v2224 = vunpack.c.l.b16 %v2133
        %v2225 = vunpack.c.h.b16 %v2133
        %v2226 = vunpack.c.l.b16 %v2134
        %v2227 = vunpack.c.h.b16 %v2134
        %v2228 = vunpack.c.l.b16 %v2135
        %v2229 = vunpack.c.h.b16 %v2135
        %v2230 = vunpack.c.l.b16 %v2136
        %v2231 = vunpack.c.h.b16 %v2136
        %v2232 = vunpack.c.l.b16 %v2137
        %v2233 = vunpack.c.h.b16 %v2137
        %v2234 = vunpack.c.l.b16 %v2138
        %v2235 = vunpack.c.h.b16 %v2138
        %v2236 = vpack.c.b16 %v2176, %v2172
        %v2237 = vpack.c.b16 %v2177, %v2173
        %v2238 = vpack.c.b16 %v2178, %v2174
        %v2239 = vpack.c.b16 %v2179, %v2175
        %v2240 = vpack.c.b16 %v2184, %v2180
        %v2241 = vpack.c.b16 %v2185, %v2181
        %v2242 = vpack.c.b16 %v2186, %v2182
        %v2243 = vpack.c.b16 %v2187, %v2183
        %v2244 = vpack.c.b16 %v2192, %v2188
        %v2245 = vpack.c.b16 %v2193, %v2189
        %v2246 = vpack.c.b16 %v2194, %v2190
        %v2247 = vpack.c.b16 %v2195, %v2191
        %v2248 = vpack.c.b16 %v2200, %v2196
        %v2249 = vpack.c.b16 %v2201, %v2197
        %v2250 = vpack.c.b16 %v2202, %v2198
        %v2251 = vpack.c.b16 %v2203, %v2199
        %v2252 = vpack.c.b16 %v2208, %v2204
        %v2253 = vpack.c.b16 %v2209, %v2205
        %v2254 = vpack.c.b16 %v2210, %v2206
        %v2255 = vpack.c.b16 %v2211, %v2207
        %v2256 = vpack.c.b16 %v2216, %v2212
        %v2257 = vpack.c.b16 %v2217, %v2213
        %v2258 = vpack.c.b16 %v2218, %v2214
        %v2259 = vpack.c.b16 %v2219, %v2215
        %v2260 = vpack.c.b16 %v2224, %v2220
        %v2261 = vpack.c.b16 %v2225, %v2221
        %v2262 = vpack.c.b16 %v2226, %v2222
        %v2263 = vpack.c.b16 %v2227, %v2223
        %v2264 = vpack.c.b16 %v2232, %v2228
        %v2265 = vpack.c.b16 %v2233, %v2229
        %v2266 = vpack.c.b16 %v2234, %v2230
        %v2267 = vpack.c.b16 %v2235, %v2231
        %2300 = vmatpush.bf16.msra.mxu0 %v2264
        %2301 = vmatpush.bf16.msra.mxu0 %v2260
        %2302 = vmatpush.bf16.msra.mxu0 %v2256
        %2303 = vmatpush.bf16.msra.mxu0 %v2252
        %2304 = vmatpush.bf16.msra.mxu0 %v2248
        %2305 = vmatpush.bf16.msra.mxu0 %v2244
        %2306 = vmatpush.bf16.msra.mxu0 %v2240
        %2307 = vmatpush.bf16.msra.mxu0 %v2236
        %2308 = vmatmul.bf16.gmra.mxu0 0
        %v2309 = vpop.f32.mrf.mxu0
        %v2310 = vadd.f32 0.0, %v2309
        %v2311 = vpop.f32.mrf.mxu0
        %2312 = vdwg.mxu0
        %2313 = vmatpush.bf16.msra.mxu0 %v2265
        %2314 = vmatpush.bf16.msra.mxu0 %v2261
        %2315 = vmatpush.bf16.msra.mxu0 %v2257
        %2316 = vmatpush.bf16.msra.mxu0 %v2253
        %2317 = vmatpush.bf16.msra.mxu0 %v2249
        %2318 = vmatpush.bf16.msra.mxu0 %v2245
        %2319 = vmatpush.bf16.msra.mxu0 %v2241
        %2320 = vmatpush.bf16.msra.mxu0 %v2237
        %2321 = vmatmul.bf16.gmra.mxu0 0
        %v2322 = vpop.f32.mrf.mxu0
        %v2323 = vadd.f32 0.0, %v2322
        %v2324 = vpop.f32.mrf.mxu0
        %2325 = vdwg.mxu0
        %2326 = vmatpush.bf16.msra.mxu0 %v2266
        %2327 = vmatpush.bf16.msra.mxu0 %v2262
        %2328 = vmatpush.bf16.msra.mxu0 %v2258
        %2329 = vmatpush.bf16.msra.mxu0 %v2254
        %2330 = vmatpush.bf16.msra.mxu0 %v2250
        %2331 = vmatpush.bf16.msra.mxu0 %v2246
        %2332 = vmatpush.bf16.msra.mxu0 %v2242
        %2333 = vmatpush.bf16.msra.mxu0 %v2238
        %2334 = vmatmul.bf16.gmra.mxu0 0
        %v2335 = vpop.f32.mrf.mxu0
        %v2336 = vadd.f32 0.0, %v2335
        %v2337 = vpop.f32.mrf.mxu0
        %2338 = vdwg.mxu0
        %2339 = vmatpush.bf16.msra.mxu0 %v2267
        %2340 = vmatpush.bf16.msra.mxu0 %v2263
        %2341 = vmatpush.bf16.msra.mxu0 %v2259
        %2342 = vmatpush.bf16.msra.mxu0 %v2255
        %2343 = vmatpush.bf16.msra.mxu0 %v2251
        %2344 = vmatpush.bf16.msra.mxu0 %v2247
        %2345 = vmatpush.bf16.msra.mxu0 %v2243
        %2346 = vmatpush.bf16.msra.mxu0 %v2239
        %2347 = vmatmul.bf16.gmra.mxu0 0
        %v2348 = vpop.f32.mrf.mxu0
        %v2349 = vadd.f32 0.0, %v2348
        %v2350 = vpop.f32.mrf.mxu0
        %2351 = vdwg.mxu0
        %v2356 = vrot.slane %v2323, 7
        %v2357 = vrot.slane %v2336, 6
        %v2358 = vrot.slane %v2349, 5
        %vm2359 = vcmask 1040384
        %v2360 = vsel %vm2359, %v2310, %v2356
        %vm2361 = vcmask 1042434
        %v2362 = vsel %vm2361, %v2357, %v2358
        %vm2363 = vcmask 1041408
        %v2364 = vsel %vm2363, %v2360, %v2362
        %v2366 = vadd.f32 %v2139, %v2364
        %v2367 = vxor.u32 %v2366, 2147483648
        %v2368 = vmul.f32 %v2367, 1.442695
        %v2369 = vpow.pop %v2368
        %v2370 = vadd.f32 %v2369, 1.0
        %v2371 = vrcp.pop %v2370
        %v2372 = vmul.f32 %v2370, %v2371
        %v2373 = vsub.f32 1.0, %v2372
        %v2374 = vmul.f32 %v2371, %v2373
        %v2375 = vadd.f32 %v2371, %v2374
        %vm2376 = vweird.f32 %v2370
        %vm2377 = vweird.f32 %v2371
        %vm2378 = vmor %vm2376, %vm2377
        %v2379 = vsel %vm2378, %v2371, %v2375
        %v2380 = vand.u32 2147483647, %v2370
        %vm2381 = vcmp.eq.f32.partialorder %v2380, 8.507059e+37
        %v2382 = vand.u32 %v2370, 2147483648
        %v2383 = vor.u32 1.1754944e-38, %v2382
        %v2384 = vsel %vm2381, %v2383, %v2379
        %v2385 = vmul.f32 1.0, %v2384
        %v2387 = vrot.slane %v2366, 1
        %v2389 = vxor.u32 %v2387, 2147483648
        %v2390 = vmul.f32 %v2389, 1.442695
        %v2391 = vpow.pop %v2390
        %v2392 = vadd.f32 %v2391, 1.0
        %v2393 = vrcp.pop %v2392
        %v2394 = vmul.f32 %v2392, %v2393
        %v2395 = vsub.f32 1.0, %v2394
        %v2396 = vmul.f32 %v2393, %v2395
        %v2397 = vadd.f32 %v2393, %v2396
        %vm2398 = vweird.f32 %v2392
        %vm2399 = vweird.f32 %v2393
        %vm2400 = vmor %vm2398, %vm2399
        %v2401 = vsel %vm2400, %v2393, %v2397
        %v2402 = vand.u32 2147483647, %v2392
        %vm2403 = vcmp.eq.f32.partialorder %v2402, 8.507059e+37
        %v2404 = vand.u32 %v2392, 2147483648
        %v2405 = vor.u32 1.1754944e-38, %v2404
        %v2406 = vsel %vm2403, %v2405, %v2401
        %v2407 = vmul.f32 1.0, %v2406
        %v2408 = vrot.slane %v2366, 2
        %v2410 = vtanh.pop %v2408
        %v2411 = vrot.slane %v2366, 3
        %v2413 = vxor.u32 %v2411, 2147483648
        %v2414 = vmul.f32 %v2413, 1.442695
        %v2415 = vpow.pop %v2414
        %v2416 = vadd.f32 %v2415, 1.0
        %v2417 = vrcp.pop %v2416
        %v2418 = vmul.f32 %v2416, %v2417
        %v2419 = vsub.f32 1.0, %v2418
        %v2420 = vmul.f32 %v2417, %v2419
        %v2421 = vadd.f32 %v2417, %v2420
        %vm2422 = vweird.f32 %v2416
        %vm2423 = vweird.f32 %v2417
        %vm2424 = vmor %vm2422, %vm2423
        %v2425 = vsel %vm2424, %v2417, %v2421
        %v2426 = vand.u32 2147483647, %v2416
        %vm2427 = vcmp.eq.f32.partialorder %v2426, 8.507059e+37
        %v2428 = vand.u32 %v2416, 2147483648
        %v2429 = vor.u32 1.1754944e-38, %v2428
        %v2430 = vsel %vm2427, %v2429, %v2425
        %v2431 = vmul.f32 1.0, %v2430
        %v2432 = vmul.f32 %v2407, 0.0
        %v2433 = vmul.f32 %v2385, %v2410
        %v2434 = vadd.f32 %v2432, %v2433
        %v2435 = vtanh.pop %v2434
        %v2436 = vmul.f32 %v2431, %v2435
        %v2437 = vmul.f32 %v2436, %v1845
        %v2438 = vsel %vm2359, %v2437, 0.0
        %2439 = vadd.xlane.f32.xlu0 %v2438
        %v2440 = vpop.xlane.xlu0 %2439
        %v2441 = vadd.f32 %v2440, %v1846
        %vm2442 = vcmp.eq.s32.totalorder %v1373, 0
        %2444 = vset.pattern.permute.xlu0 0
        %2445 = vperm.xlu0 %2444, %v2441
        %v2446 = vpop.permute.xlu0 %2445
        %v2448 = vsel %vm2442, %v2446, 0.0
        %s2449 = scalar_lea.vmem [#allocation3], 1
        %v2450 = vld [vmem:[%s2449] ss:$8 sm:$0xf]
        %v2451 = vpack.c.bf16 %v2436, %v2436
        %2452 = vmatpush.bf16.msra.mxu0 %v2264
        %2453 = vmatpush.bf16.msra.mxu0 %v2260
        %2454 = vmatpush.bf16.msra.mxu0 %v2256
        %2455 = vmatpush.bf16.msra.mxu0 %v2252
        %2456 = vmatpush.bf16.msra.mxu0 %v2248
        %2457 = vmatpush.bf16.msra.mxu0 %v2244
        %2458 = vmatpush.bf16.msra.mxu0 %v2240
        %2459 = vmatpush.bf16.msra.mxu0 %v2236
        %2460 = vmatmul.bf16.gmra.mxu0 %v2451
        %v2461 = vpop.f32.mrf.mxu0
        %v2462 = vadd.f32 0.0, %v2461
        %v2463 = vpop.f32.mrf.mxu0
        %2464 = vdwg.mxu0
        %2465 = vmatpush.bf16.msra.mxu0 %v2265
        %2466 = vmatpush.bf16.msra.mxu0 %v2261
        %2467 = vmatpush.bf16.msra.mxu0 %v2257
        %2468 = vmatpush.bf16.msra.mxu0 %v2253
        %2469 = vmatpush.bf16.msra.mxu0 %v2249
        %2470 = vmatpush.bf16.msra.mxu0 %v2245
        %2471 = vmatpush.bf16.msra.mxu0 %v2241
        %2472 = vmatpush.bf16.msra.mxu0 %v2237
        %2473 = vmatmul.bf16.gmra.mxu0 %v2451
        %v2474 = vpop.f32.mrf.mxu0
        %v2475 = vadd.f32 0.0, %v2474
        %v2476 = vpop.f32.mrf.mxu0
        %2477 = vdwg.mxu0
        %2478 = vmatpush.bf16.msra.mxu0 %v2266
        %2479 = vmatpush.bf16.msra.mxu0 %v2262
        %2480 = vmatpush.bf16.msra.mxu0 %v2258
        %2481 = vmatpush.bf16.msra.mxu0 %v2254
        %2482 = vmatpush.bf16.msra.mxu0 %v2250
        %2483 = vmatpush.bf16.msra.mxu0 %v2246
        %2484 = vmatpush.bf16.msra.mxu0 %v2242
        %2485 = vmatpush.bf16.msra.mxu0 %v2238
        %2486 = vmatmul.bf16.gmra.mxu0 %v2451
        %v2487 = vpop.f32.mrf.mxu0
        %v2488 = vadd.f32 0.0, %v2487
        %v2489 = vpop.f32.mrf.mxu0
        %2490 = vdwg.mxu0
        %2491 = vmatpush.bf16.msra.mxu0 %v2267
        %2492 = vmatpush.bf16.msra.mxu0 %v2263
        %2493 = vmatpush.bf16.msra.mxu0 %v2259
        %2494 = vmatpush.bf16.msra.mxu0 %v2255
        %2495 = vmatpush.bf16.msra.mxu0 %v2251
        %2496 = vmatpush.bf16.msra.mxu0 %v2247
        %2497 = vmatpush.bf16.msra.mxu0 %v2243
        %2498 = vmatpush.bf16.msra.mxu0 %v2239
        %2499 = vmatmul.bf16.gmra.mxu0 %v2451
        %v2500 = vpop.f32.mrf.mxu0
        %v2501 = vadd.f32 0.0, %v2500
        %v2502 = vpop.f32.mrf.mxu0
        %2503 = vdwg.mxu0
        %v2508 = vrot.slane %v2475, 7
        %v2509 = vrot.slane %v2488, 6
        %v2510 = vrot.slane %v2501, 5
        %v2511 = vsel %vm2359, %v2462, %v2508
        %v2512 = vsel %vm2361, %v2509, %v2510
        %v2513 = vsel %vm2363, %v2511, %v2512
        %v2515 = vadd.f32 %v2450, %v2513
        %v2516 = vxor.u32 %v2515, 2147483648
        %v2517 = vmul.f32 %v2516, 1.442695
        %v2518 = vpow.pop %v2517
        %v2519 = vadd.f32 %v2518, 1.0
        %v2520 = vrcp.pop %v2519
        %v2521 = vmul.f32 %v2519, %v2520
        %v2522 = vsub.f32 1.0, %v2521
        %v2523 = vmul.f32 %v2520, %v2522
        %v2524 = vadd.f32 %v2520, %v2523
        %vm2525 = vweird.f32 %v2519
        %vm2526 = vweird.f32 %v2520
        %vm2527 = vmor %vm2525, %vm2526
        %v2528 = vsel %vm2527, %v2520, %v2524
        %v2529 = vand.u32 2147483647, %v2519
        %vm2530 = vcmp.eq.f32.partialorder %v2529, 8.507059e+37
        %v2531 = vand.u32 %v2519, 2147483648
        %v2532 = vor.u32 1.1754944e-38, %v2531
        %v2533 = vsel %vm2530, %v2532, %v2528
        %v2534 = vmul.f32 1.0, %v2533
        %v2536 = vrot.slane %v2515, 1
        %v2538 = vxor.u32 %v2536, 2147483648
        %v2539 = vmul.f32 %v2538, 1.442695
        %v2540 = vpow.pop %v2539
        %v2541 = vadd.f32 %v2540, 1.0
        %v2542 = vrcp.pop %v2541
        %v2543 = vmul.f32 %v2541, %v2542
        %v2544 = vsub.f32 1.0, %v2543
        %v2545 = vmul.f32 %v2542, %v2544
        %v2546 = vadd.f32 %v2542, %v2545
        %vm2547 = vweird.f32 %v2541
        %vm2548 = vweird.f32 %v2542
        %vm2549 = vmor %vm2547, %vm2548
        %v2550 = vsel %vm2549, %v2542, %v2546
        %v2551 = vand.u32 2147483647, %v2541
        %vm2552 = vcmp.eq.f32.partialorder %v2551, 8.507059e+37
        %v2553 = vand.u32 %v2541, 2147483648
        %v2554 = vor.u32 1.1754944e-38, %v2553
        %v2555 = vsel %vm2552, %v2554, %v2550
        %v2556 = vmul.f32 1.0, %v2555
        %v2557 = vrot.slane %v2515, 2
        %v2559 = vtanh.pop %v2557
        %v2560 = vrot.slane %v2515, 3
        %v2562 = vxor.u32 %v2560, 2147483648
        %v2563 = vmul.f32 %v2562, 1.442695
        %v2564 = vpow.pop %v2563
        %v2565 = vadd.f32 %v2564, 1.0
        %v2566 = vrcp.pop %v2565
        %v2567 = vmul.f32 %v2565, %v2566
        %v2568 = vsub.f32 1.0, %v2567
        %v2569 = vmul.f32 %v2566, %v2568
        %v2570 = vadd.f32 %v2566, %v2569
        %vm2571 = vweird.f32 %v2565
        %vm2572 = vweird.f32 %v2566
        %vm2573 = vmor %vm2571, %vm2572
        %v2574 = vsel %vm2573, %v2566, %v2570
        %v2575 = vand.u32 2147483647, %v2565
        %vm2576 = vcmp.eq.f32.partialorder %v2575, 8.507059e+37
        %v2577 = vand.u32 %v2565, 2147483648
        %v2578 = vor.u32 1.1754944e-38, %v2577
        %v2579 = vsel %vm2576, %v2578, %v2574
        %v2580 = vmul.f32 1.0, %v2579
        %v2581 = vmul.f32 %v2556, %v2434
        %v2582 = vmul.f32 %v2534, %v2559
        %v2583 = vadd.f32 %v2581, %v2582
        %v2584 = vtanh.pop %v2583
        %v2585 = vmul.f32 %v2580, %v2584
        %v2586 = vmul.f32 %v2585, %v1845
        %v2587 = vsel %vm2359, %v2586, 0.0
        %2588 = vadd.xlane.f32.xlu0 %v2587
        %v2589 = vpop.xlane.xlu0 %2588
        %v2590 = vadd.f32 %v2589, %v1846
        %vm2591 = vcmp.eq.s32.totalorder %v1373, 1
        %2593 = vset.pattern.permute.xlu0 0
        %2594 = vperm.xlu0 %2593, %v2590
        %v2595 = vpop.permute.xlu0 %2594
        %v2597 = vsel %vm2591, %v2595, %v2448
        %s2598 = scalar_lea.vmem [#allocation3], 2
        %v2599 = vld [vmem:[%s2598] ss:$8 sm:$0xf]
        %v2600 = vpack.c.bf16 %v2585, %v2585
        %2601 = vmatpush.bf16.msra.mxu0 %v2264
        %2602 = vmatpush.bf16.msra.mxu0 %v2260
        %2603 = vmatpush.bf16.msra.mxu0 %v2256
        %2604 = vmatpush.bf16.msra.mxu0 %v2252
        %2605 = vmatpush.bf16.msra.mxu0 %v2248
        %2606 = vmatpush.bf16.msra.mxu0 %v2244
        %2607 = vmatpush.bf16.msra.mxu0 %v2240
        %2608 = vmatpush.bf16.msra.mxu0 %v2236
        %2609 = vmatmul.bf16.gmra.mxu0 %v2600
        %v2610 = vpop.f32.mrf.mxu0
        %v2611 = vadd.f32 0.0, %v2610
        %v2612 = vpop.f32.mrf.mxu0
        %2613 = vdwg.mxu0
        %2614 = vmatpush.bf16.msra.mxu0 %v2265
        %2615 = vmatpush.bf16.msra.mxu0 %v2261
        %2616 = vmatpush.bf16.msra.mxu0 %v2257
        %2617 = vmatpush.bf16.msra.mxu0 %v2253
        %2618 = vmatpush.bf16.msra.mxu0 %v2249
        %2619 = vmatpush.bf16.msra.mxu0 %v2245
        %2620 = vmatpush.bf16.msra.mxu0 %v2241
        %2621 = vmatpush.bf16.msra.mxu0 %v2237
        %2622 = vmatmul.bf16.gmra.mxu0 %v2600
        %v2623 = vpop.f32.mrf.mxu0
        %v2624 = vadd.f32 0.0, %v2623
        %v2625 = vpop.f32.mrf.mxu0
        %2626 = vdwg.mxu0
        %2627 = vmatpush.bf16.msra.mxu0 %v2266
        %2628 = vmatpush.bf16.msra.mxu0 %v2262
        %2629 = vmatpush.bf16.msra.mxu0 %v2258
        %2630 = vmatpush.bf16.msra.mxu0 %v2254
        %2631 = vmatpush.bf16.msra.mxu0 %v2250
        %2632 = vmatpush.bf16.msra.mxu0 %v2246
        %2633 = vmatpush.bf16.msra.mxu0 %v2242
        %2634 = vmatpush.bf16.msra.mxu0 %v2238
        %2635 = vmatmul.bf16.gmra.mxu0 %v2600
        %v2636 = vpop.f32.mrf.mxu0
        %v2637 = vadd.f32 0.0, %v2636
        %v2638 = vpop.f32.mrf.mxu0
        %2639 = vdwg.mxu0
        %2640 = vmatpush.bf16.msra.mxu0 %v2267
        %2641 = vmatpush.bf16.msra.mxu0 %v2263
        %2642 = vmatpush.bf16.msra.mxu0 %v2259
        %2643 = vmatpush.bf16.msra.mxu0 %v2255
        %2644 = vmatpush.bf16.msra.mxu0 %v2251
        %2645 = vmatpush.bf16.msra.mxu0 %v2247
        %2646 = vmatpush.bf16.msra.mxu0 %v2243
        %2647 = vmatpush.bf16.msra.mxu0 %v2239
        %2648 = vmatmul.bf16.gmra.mxu0 %v2600
        %v2649 = vpop.f32.mrf.mxu0
        %v2650 = vadd.f32 0.0, %v2649
        %v2651 = vpop.f32.mrf.mxu0
        %2652 = vdwg.mxu0
        %v2657 = vrot.slane %v2624, 7
        %v2658 = vrot.slane %v2637, 6
        %v2659 = vrot.slane %v2650, 5
        %v2660 = vsel %vm2359, %v2611, %v2657
        %v2661 = vsel %vm2361, %v2658, %v2659
        %v2662 = vsel %vm2363, %v2660, %v2661
        %v2664 = vadd.f32 %v2599, %v2662
        %v2665 = vxor.u32 %v2664, 2147483648
        %v2666 = vmul.f32 %v2665, 1.442695
        %v2667 = vpow.pop %v2666
        %v2668 = vadd.f32 %v2667, 1.0
        %v2669 = vrcp.pop %v2668
        %v2670 = vmul.f32 %v2668, %v2669
        %v2671 = vsub.f32 1.0, %v2670
        %v2672 = vmul.f32 %v2669, %v2671
        %v2673 = vadd.f32 %v2669, %v2672
        %vm2674 = vweird.f32 %v2668
        %vm2675 = vweird.f32 %v2669
        %vm2676 = vmor %vm2674, %vm2675
        %v2677 = vsel %vm2676, %v2669, %v2673
        %v2678 = vand.u32 2147483647, %v2668
        %vm2679 = vcmp.eq.f32.partialorder %v2678, 8.507059e+37
        %v2680 = vand.u32 %v2668, 2147483648
        %v2681 = vor.u32 1.1754944e-38, %v2680
        %v2682 = vsel %vm2679, %v2681, %v2677
        %v2683 = vmul.f32 1.0, %v2682
        %v2685 = vrot.slane %v2664, 1
        %v2687 = vxor.u32 %v2685, 2147483648
        %v2688 = vmul.f32 %v2687, 1.442695
        %v2689 = vpow.pop %v2688
        %v2690 = vadd.f32 %v2689, 1.0
        %v2691 = vrcp.pop %v2690
        %v2692 = vmul.f32 %v2690, %v2691
        %v2693 = vsub.f32 1.0, %v2692
        %v2694 = vmul.f32 %v2691, %v2693
        %v2695 = vadd.f32 %v2691, %v2694
        %vm2696 = vweird.f32 %v2690
        %vm2697 = vweird.f32 %v2691
        %vm2698 = vmor %vm2696, %vm2697
        %v2699 = vsel %vm2698, %v2691, %v2695
        %v2700 = vand.u32 2147483647, %v2690
        %vm2701 = vcmp.eq.f32.partialorder %v2700, 8.507059e+37
        %v2702 = vand.u32 %v2690, 2147483648
        %v2703 = vor.u32 1.1754944e-38, %v2702
        %v2704 = vsel %vm2701, %v2703, %v2699
        %v2705 = vmul.f32 1.0, %v2704
        %v2706 = vrot.slane %v2664, 2
        %v2708 = vtanh.pop %v2706
        %v2709 = vrot.slane %v2664, 3
        %v2711 = vxor.u32 %v2709, 2147483648
        %v2712 = vmul.f32 %v2711, 1.442695
        %v2713 = vpow.pop %v2712
        %v2714 = vadd.f32 %v2713, 1.0
        %v2715 = vrcp.pop %v2714
        %v2716 = vmul.f32 %v2714, %v2715
        %v2717 = vsub.f32 1.0, %v2716
        %v2718 = vmul.f32 %v2715, %v2717
        %v2719 = vadd.f32 %v2715, %v2718
        %vm2720 = vweird.f32 %v2714
        %vm2721 = vweird.f32 %v2715
        %vm2722 = vmor %vm2720, %vm2721
        %v2723 = vsel %vm2722, %v2715, %v2719
        %v2724 = vand.u32 2147483647, %v2714
        %vm2725 = vcmp.eq.f32.partialorder %v2724, 8.507059e+37
        %v2726 = vand.u32 %v2714, 2147483648
        %v2727 = vor.u32 1.1754944e-38, %v2726
        %v2728 = vsel %vm2725, %v2727, %v2723
        %v2729 = vmul.f32 1.0, %v2728
        %v2730 = vmul.f32 %v2705, %v2583
        %v2731 = vmul.f32 %v2683, %v2708
        %v2732 = vadd.f32 %v2730, %v2731
        %v2733 = vtanh.pop %v2732
        %v2734 = vmul.f32 %v2729, %v2733
        %v2735 = vmul.f32 %v2734, %v1845
        %v2736 = vsel %vm2359, %v2735, 0.0
        %2737 = vadd.xlane.f32.xlu0 %v2736
        %v2738 = vpop.xlane.xlu0 %2737
        %v2739 = vadd.f32 %v2738, %v1846
        %vm2740 = vcmp.eq.s32.totalorder %v1373, 2
        %2742 = vset.pattern.permute.xlu0 0
        %2743 = vperm.xlu0 %2742, %v2739
        %v2744 = vpop.permute.xlu0 %2743
        %v2746 = vsel %vm2740, %v2744, %v2597
        %s2747 = scalar_lea.vmem [#allocation3], 3
        %v2748 = vld [vmem:[%s2747] ss:$8 sm:$0xf]
        %v2749 = vpack.c.bf16 %v2734, %v2734
        %2750 = vmatpush.bf16.msra.mxu0 %v2264
        %2751 = vmatpush.bf16.msra.mxu0 %v2260
        %2752 = vmatpush.bf16.msra.mxu0 %v2256
        %2753 = vmatpush.bf16.msra.mxu0 %v2252
        %2754 = vmatpush.bf16.msra.mxu0 %v2248
        %2755 = vmatpush.bf16.msra.mxu0 %v2244
        %2756 = vmatpush.bf16.msra.mxu0 %v2240
        %2757 = vmatpush.bf16.msra.mxu0 %v2236
        %2758 = vmatmul.bf16.gmra.mxu0 %v2749
        %v2759 = vpop.f32.mrf.mxu0
        %v2760 = vadd.f32 0.0, %v2759
        %v2761 = vpop.f32.mrf.mxu0
        %2762 = vdwg.mxu0
        %2763 = vmatpush.bf16.msra.mxu0 %v2265
        %2764 = vmatpush.bf16.msra.mxu0 %v2261
        %2765 = vmatpush.bf16.msra.mxu0 %v2257
        %2766 = vmatpush.bf16.msra.mxu0 %v2253
        %2767 = vmatpush.bf16.msra.mxu0 %v2249
        %2768 = vmatpush.bf16.msra.mxu0 %v2245
        %2769 = vmatpush.bf16.msra.mxu0 %v2241
        %2770 = vmatpush.bf16.msra.mxu0 %v2237
        %2771 = vmatmul.bf16.gmra.mxu0 %v2749
        %v2772 = vpop.f32.mrf.mxu0
        %v2773 = vadd.f32 0.0, %v2772
        %v2774 = vpop.f32.mrf.mxu0
        %2775 = vdwg.mxu0
        %2776 = vmatpush.bf16.msra.mxu0 %v2266
        %2777 = vmatpush.bf16.msra.mxu0 %v2262
        %2778 = vmatpush.bf16.msra.mxu0 %v2258
        %2779 = vmatpush.bf16.msra.mxu0 %v2254
        %2780 = vmatpush.bf16.msra.mxu0 %v2250
        %2781 = vmatpush.bf16.msra.mxu0 %v2246
        %2782 = vmatpush.bf16.msra.mxu0 %v2242
        %2783 = vmatpush.bf16.msra.mxu0 %v2238
        %2784 = vmatmul.bf16.gmra.mxu0 %v2749
        %v2785 = vpop.f32.mrf.mxu0
        %v2786 = vadd.f32 0.0, %v2785
        %v2787 = vpop.f32.mrf.mxu0
        %2788 = vdwg.mxu0
        %2789 = vmatpush.bf16.msra.mxu0 %v2267
        %2790 = vmatpush.bf16.msra.mxu0 %v2263
        %2791 = vmatpush.bf16.msra.mxu0 %v2259
        %2792 = vmatpush.bf16.msra.mxu0 %v2255
        %2793 = vmatpush.bf16.msra.mxu0 %v2251
        %2794 = vmatpush.bf16.msra.mxu0 %v2247
        %2795 = vmatpush.bf16.msra.mxu0 %v2243
        %2796 = vmatpush.bf16.msra.mxu0 %v2239
        %2797 = vmatmul.bf16.gmra.mxu0 %v2749
        %v2798 = vpop.f32.mrf.mxu0
        %v2799 = vadd.f32 0.0, %v2798
        %v2800 = vpop.f32.mrf.mxu0
        %2801 = vdwg.mxu0
        %v2806 = vrot.slane %v2773, 7
        %v2807 = vrot.slane %v2786, 6
        %v2808 = vrot.slane %v2799, 5
        %v2809 = vsel %vm2359, %v2760, %v2806
        %v2810 = vsel %vm2361, %v2807, %v2808
        %v2811 = vsel %vm2363, %v2809, %v2810
        %v2813 = vadd.f32 %v2748, %v2811
        %v2814 = vxor.u32 %v2813, 2147483648
        %v2815 = vmul.f32 %v2814, 1.442695
        %v2816 = vpow.pop %v2815
        %v2817 = vadd.f32 %v2816, 1.0
        %v2818 = vrcp.pop %v2817
        %v2819 = vmul.f32 %v2817, %v2818
        %v2820 = vsub.f32 1.0, %v2819
        %v2821 = vmul.f32 %v2818, %v2820
        %v2822 = vadd.f32 %v2818, %v2821
        %vm2823 = vweird.f32 %v2817
        %vm2824 = vweird.f32 %v2818
        %vm2825 = vmor %vm2823, %vm2824
        %v2826 = vsel %vm2825, %v2818, %v2822
        %v2827 = vand.u32 2147483647, %v2817
        %vm2828 = vcmp.eq.f32.partialorder %v2827, 8.507059e+37
        %v2829 = vand.u32 %v2817, 2147483648
        %v2830 = vor.u32 1.1754944e-38, %v2829
        %v2831 = vsel %vm2828, %v2830, %v2826
        %v2832 = vmul.f32 1.0, %v2831
        %v2834 = vrot.slane %v2813, 1
        %v2836 = vxor.u32 %v2834, 2147483648
        %v2837 = vmul.f32 %v2836, 1.442695
        %v2838 = vpow.pop %v2837
        %v2839 = vadd.f32 %v2838, 1.0
        %v2840 = vrcp.pop %v2839
        %v2841 = vmul.f32 %v2839, %v2840
        %v2842 = vsub.f32 1.0, %v2841
        %v2843 = vmul.f32 %v2840, %v2842
        %v2844 = vadd.f32 %v2840, %v2843
        %vm2845 = vweird.f32 %v2839
        %vm2846 = vweird.f32 %v2840
        %vm2847 = vmor %vm2845, %vm2846
        %v2848 = vsel %vm2847, %v2840, %v2844
        %v2849 = vand.u32 2147483647, %v2839
        %vm2850 = vcmp.eq.f32.partialorder %v2849, 8.507059e+37
        %v2851 = vand.u32 %v2839, 2147483648
        %v2852 = vor.u32 1.1754944e-38, %v2851
        %v2853 = vsel %vm2850, %v2852, %v2848
        %v2854 = vmul.f32 1.0, %v2853
        %v2855 = vrot.slane %v2813, 2
        %v2857 = vtanh.pop %v2855
        %v2858 = vrot.slane %v2813, 3
        %v2860 = vxor.u32 %v2858, 2147483648
        %v2861 = vmul.f32 %v2860, 1.442695
        %v2862 = vpow.pop %v2861
        %v2863 = vadd.f32 %v2862, 1.0
        %v2864 = vrcp.pop %v2863
        %v2865 = vmul.f32 %v2863, %v2864
        %v2866 = vsub.f32 1.0, %v2865
        %v2867 = vmul.f32 %v2864, %v2866
        %v2868 = vadd.f32 %v2864, %v2867
        %vm2869 = vweird.f32 %v2863
        %vm2870 = vweird.f32 %v2864
        %vm2871 = vmor %vm2869, %vm2870
        %v2872 = vsel %vm2871, %v2864, %v2868
        %v2873 = vand.u32 2147483647, %v2863
        %vm2874 = vcmp.eq.f32.partialorder %v2873, 8.507059e+37
        %v2875 = vand.u32 %v2863, 2147483648
        %v2876 = vor.u32 1.1754944e-38, %v2875
        %v2877 = vsel %vm2874, %v2876, %v2872
        %v2878 = vmul.f32 1.0, %v2877
        %v2879 = vmul.f32 %v2854, %v2732
        %v2880 = vmul.f32 %v2832, %v2857
        %v2881 = vadd.f32 %v2879, %v2880
        %v2882 = vtanh.pop %v2881
        %v2883 = vmul.f32 %v2878, %v2882
        %v2884 = vmul.f32 %v2883, %v1845
        %v2885 = vsel %vm2359, %v2884, 0.0
        %2886 = vadd.xlane.f32.xlu0 %v2885
        %v2887 = vpop.xlane.xlu0 %2886
        %v2888 = vadd.f32 %v2887, %v1846
        %vm2889 = vcmp.eq.s32.totalorder %v1373, 3
        %2891 = vset.pattern.permute.xlu0 0
        %2892 = vperm.xlu0 %2891, %v2888
        %v2893 = vpop.permute.xlu0 %2892
        %v2895 = vsel %vm2889, %v2893, %v2746
        %s2896 = scalar_lea.vmem [#allocation3], 4
        %v2897 = vld [vmem:[%s2896] ss:$8 sm:$0xf]
        %v2898 = vpack.c.bf16 %v2883, %v2883
        %2899 = vmatpush.bf16.msra.mxu0 %v2264
        %2900 = vmatpush.bf16.msra.mxu0 %v2260
        %2901 = vmatpush.bf16.msra.mxu0 %v2256
        %2902 = vmatpush.bf16.msra.mxu0 %v2252
        %2903 = vmatpush.bf16.msra.mxu0 %v2248
        %2904 = vmatpush.bf16.msra.mxu0 %v2244
        %2905 = vmatpush.bf16.msra.mxu0 %v2240
        %2906 = vmatpush.bf16.msra.mxu0 %v2236
        %2907 = vmatmul.bf16.gmra.mxu0 %v2898
        %v2908 = vpop.f32.mrf.mxu0
        %v2909 = vadd.f32 0.0, %v2908
        %v2910 = vpop.f32.mrf.mxu0
        %2911 = vdwg.mxu0
        %2912 = vmatpush.bf16.msra.mxu0 %v2265
        %2913 = vmatpush.bf16.msra.mxu0 %v2261
        %2914 = vmatpush.bf16.msra.mxu0 %v2257
        %2915 = vmatpush.bf16.msra.mxu0 %v2253
        %2916 = vmatpush.bf16.msra.mxu0 %v2249
        %2917 = vmatpush.bf16.msra.mxu0 %v2245
        %2918 = vmatpush.bf16.msra.mxu0 %v2241
        %2919 = vmatpush.bf16.msra.mxu0 %v2237
        %2920 = vmatmul.bf16.gmra.mxu0 %v2898
        %v2921 = vpop.f32.mrf.mxu0
        %v2922 = vadd.f32 0.0, %v2921
        %v2923 = vpop.f32.mrf.mxu0
        %2924 = vdwg.mxu0
        %2925 = vmatpush.bf16.msra.mxu0 %v2266
        %2926 = vmatpush.bf16.msra.mxu0 %v2262
        %2927 = vmatpush.bf16.msra.mxu0 %v2258
        %2928 = vmatpush.bf16.msra.mxu0 %v2254
        %2929 = vmatpush.bf16.msra.mxu0 %v2250
        %2930 = vmatpush.bf16.msra.mxu0 %v2246
        %2931 = vmatpush.bf16.msra.mxu0 %v2242
        %2932 = vmatpush.bf16.msra.mxu0 %v2238
        %2933 = vmatmul.bf16.gmra.mxu0 %v2898
        %v2934 = vpop.f32.mrf.mxu0
        %v2935 = vadd.f32 0.0, %v2934
        %v2936 = vpop.f32.mrf.mxu0
        %2937 = vdwg.mxu0
        %2938 = vmatpush.bf16.msra.mxu0 %v2267
        %2939 = vmatpush.bf16.msra.mxu0 %v2263
        %2940 = vmatpush.bf16.msra.mxu0 %v2259
        %2941 = vmatpush.bf16.msra.mxu0 %v2255
        %2942 = vmatpush.bf16.msra.mxu0 %v2251
        %2943 = vmatpush.bf16.msra.mxu0 %v2247
        %2944 = vmatpush.bf16.msra.mxu0 %v2243
        %2945 = vmatpush.bf16.msra.mxu0 %v2239
        %2946 = vmatmul.bf16.gmra.mxu0 %v2898
        %v2947 = vpop.f32.mrf.mxu0
        %v2948 = vadd.f32 0.0, %v2947
        %v2949 = vpop.f32.mrf.mxu0
        %2950 = vdwg.mxu0
        %v2955 = vrot.slane %v2922, 7
        %v2956 = vrot.slane %v2935, 6
        %v2957 = vrot.slane %v2948, 5
        %v2958 = vsel %vm2359, %v2909, %v2955
        %v2959 = vsel %vm2361, %v2956, %v2957
        %v2960 = vsel %vm2363, %v2958, %v2959
        %v2962 = vadd.f32 %v2897, %v2960
        %v2963 = vxor.u32 %v2962, 2147483648
        %v2964 = vmul.f32 %v2963, 1.442695
        %v2965 = vpow.pop %v2964
        %v2966 = vadd.f32 %v2965, 1.0
        %v2967 = vrcp.pop %v2966
        %v2968 = vmul.f32 %v2966, %v2967
        %v2969 = vsub.f32 1.0, %v2968
        %v2970 = vmul.f32 %v2967, %v2969
        %v2971 = vadd.f32 %v2967, %v2970
        %vm2972 = vweird.f32 %v2966
        %vm2973 = vweird.f32 %v2967
        %vm2974 = vmor %vm2972, %vm2973
        %v2975 = vsel %vm2974, %v2967, %v2971
        %v2976 = vand.u32 2147483647, %v2966
        %vm2977 = vcmp.eq.f32.partialorder %v2976, 8.507059e+37
        %v2978 = vand.u32 %v2966, 2147483648
        %v2979 = vor.u32 1.1754944e-38, %v2978
        %v2980 = vsel %vm2977, %v2979, %v2975
        %v2981 = vmul.f32 1.0, %v2980
        %v2983 = vrot.slane %v2962, 1
        %v2985 = vxor.u32 %v2983, 2147483648
        %v2986 = vmul.f32 %v2985, 1.442695
        %v2987 = vpow.pop %v2986
        %v2988 = vadd.f32 %v2987, 1.0
        %v2989 = vrcp.pop %v2988
        %v2990 = vmul.f32 %v2988, %v2989
        %v2991 = vsub.f32 1.0, %v2990
        %v2992 = vmul.f32 %v2989, %v2991
        %v2993 = vadd.f32 %v2989, %v2992
        %vm2994 = vweird.f32 %v2988
        %vm2995 = vweird.f32 %v2989
        %vm2996 = vmor %vm2994, %vm2995
        %v2997 = vsel %vm2996, %v2989, %v2993
        %v2998 = vand.u32 2147483647, %v2988
        %vm2999 = vcmp.eq.f32.partialorder %v2998, 8.507059e+37
        %v3000 = vand.u32 %v2988, 2147483648
        %v3001 = vor.u32 1.1754944e-38, %v3000
        %v3002 = vsel %vm2999, %v3001, %v2997
        %v3003 = vmul.f32 1.0, %v3002
        %v3004 = vrot.slane %v2962, 2
        %v3006 = vtanh.pop %v3004
        %v3007 = vrot.slane %v2962, 3
        %v3009 = vxor.u32 %v3007, 2147483648
        %v3010 = vmul.f32 %v3009, 1.442695
        %v3011 = vpow.pop %v3010
        %v3012 = vadd.f32 %v3011, 1.0
        %v3013 = vrcp.pop %v3012
        %v3014 = vmul.f32 %v3012, %v3013
        %v3015 = vsub.f32 1.0, %v3014
        %v3016 = vmul.f32 %v3013, %v3015
        %v3017 = vadd.f32 %v3013, %v3016
        %vm3018 = vweird.f32 %v3012
        %vm3019 = vweird.f32 %v3013
        %vm3020 = vmor %vm3018, %vm3019
        %v3021 = vsel %vm3020, %v3013, %v3017
        %v3022 = vand.u32 2147483647, %v3012
        %vm3023 = vcmp.eq.f32.partialorder %v3022, 8.507059e+37
        %v3024 = vand.u32 %v3012, 2147483648
        %v3025 = vor.u32 1.1754944e-38, %v3024
        %v3026 = vsel %vm3023, %v3025, %v3021
        %v3027 = vmul.f32 1.0, %v3026
        %v3028 = vmul.f32 %v3003, %v2881
        %v3029 = vmul.f32 %v2981, %v3006
        %v3030 = vadd.f32 %v3028, %v3029
        %v3031 = vtanh.pop %v3030
        %v3032 = vmul.f32 %v3027, %v3031
        %v3033 = vmul.f32 %v3032, %v1845
        %v3034 = vsel %vm2359, %v3033, 0.0
        %3035 = vadd.xlane.f32.xlu0 %v3034
        %v3036 = vpop.xlane.xlu0 %3035
        %v3037 = vadd.f32 %v3036, %v1846
        %vm3038 = vcmp.eq.s32.totalorder %v1373, 4
        %3040 = vset.pattern.permute.xlu0 0
        %3041 = vperm.xlu0 %3040, %v3037
        %v3042 = vpop.permute.xlu0 %3041
        %v3044 = vsel %vm3038, %v3042, %v2895
        %s3045 = scalar_lea.vmem [#allocation3], 5
        %v3046 = vld [vmem:[%s3045] ss:$8 sm:$0xf]
        %v3047 = vpack.c.bf16 %v3032, %v3032
        %3048 = vmatpush.bf16.msra.mxu0 %v2264
        %3049 = vmatpush.bf16.msra.mxu0 %v2260
        %3050 = vmatpush.bf16.msra.mxu0 %v2256
        %3051 = vmatpush.bf16.msra.mxu0 %v2252
        %3052 = vmatpush.bf16.msra.mxu0 %v2248
        %3053 = vmatpush.bf16.msra.mxu0 %v2244
        %3054 = vmatpush.bf16.msra.mxu0 %v2240
        %3055 = vmatpush.bf16.msra.mxu0 %v2236
        %3056 = vmatmul.bf16.gmra.mxu0 %v3047
        %v3057 = vpop.f32.mrf.mxu0
        %v3058 = vadd.f32 0.0, %v3057
        %v3059 = vpop.f32.mrf.mxu0
        %3060 = vdwg.mxu0
        %3061 = vmatpush.bf16.msra.mxu0 %v2265
        %3062 = vmatpush.bf16.msra.mxu0 %v2261
        %3063 = vmatpush.bf16.msra.mxu0 %v2257
        %3064 = vmatpush.bf16.msra.mxu0 %v2253
        %3065 = vmatpush.bf16.msra.mxu0 %v2249
        %3066 = vmatpush.bf16.msra.mxu0 %v2245
        %3067 = vmatpush.bf16.msra.mxu0 %v2241
        %3068 = vmatpush.bf16.msra.mxu0 %v2237
        %3069 = vmatmul.bf16.gmra.mxu0 %v3047
        %v3070 = vpop.f32.mrf.mxu0
        %v3071 = vadd.f32 0.0, %v3070
        %v3072 = vpop.f32.mrf.mxu0
        %3073 = vdwg.mxu0
        %3074 = vmatpush.bf16.msra.mxu0 %v2266
        %3075 = vmatpush.bf16.msra.mxu0 %v2262
        %3076 = vmatpush.bf16.msra.mxu0 %v2258
        %3077 = vmatpush.bf16.msra.mxu0 %v2254
        %3078 = vmatpush.bf16.msra.mxu0 %v2250
        %3079 = vmatpush.bf16.msra.mxu0 %v2246
        %3080 = vmatpush.bf16.msra.mxu0 %v2242
        %3081 = vmatpush.bf16.msra.mxu0 %v2238
        %3082 = vmatmul.bf16.gmra.mxu0 %v3047
        %v3083 = vpop.f32.mrf.mxu0
        %v3084 = vadd.f32 0.0, %v3083
        %v3085 = vpop.f32.mrf.mxu0
        %3086 = vdwg.mxu0
        %3087 = vmatpush.bf16.msra.mxu0 %v2267
        %3088 = vmatpush.bf16.msra.mxu0 %v2263
        %3089 = vmatpush.bf16.msra.mxu0 %v2259
        %3090 = vmatpush.bf16.msra.mxu0 %v2255
        %3091 = vmatpush.bf16.msra.mxu0 %v2251
        %3092 = vmatpush.bf16.msra.mxu0 %v2247
        %3093 = vmatpush.bf16.msra.mxu0 %v2243
        %3094 = vmatpush.bf16.msra.mxu0 %v2239
        %3095 = vmatmul.bf16.gmra.mxu0 %v3047
        %v3096 = vpop.f32.mrf.mxu0
        %v3097 = vadd.f32 0.0, %v3096
        %v3098 = vpop.f32.mrf.mxu0
        %3099 = vdwg.mxu0
        %v3104 = vrot.slane %v3071, 7
        %v3105 = vrot.slane %v3084, 6
        %v3106 = vrot.slane %v3097, 5
        %v3107 = vsel %vm2359, %v3058, %v3104
        %v3108 = vsel %vm2361, %v3105, %v3106
        %v3109 = vsel %vm2363, %v3107, %v3108
        %v3111 = vadd.f32 %v3046, %v3109
        %v3112 = vxor.u32 %v3111, 2147483648
        %v3113 = vmul.f32 %v3112, 1.442695
        %v3114 = vpow.pop %v3113
        %v3115 = vadd.f32 %v3114, 1.0
        %v3116 = vrcp.pop %v3115
        %v3117 = vmul.f32 %v3115, %v3116
        %v3118 = vsub.f32 1.0, %v3117
        %v3119 = vmul.f32 %v3116, %v3118
        %v3120 = vadd.f32 %v3116, %v3119
        %vm3121 = vweird.f32 %v3115
        %vm3122 = vweird.f32 %v3116
        %vm3123 = vmor %vm3121, %vm3122
        %v3124 = vsel %vm3123, %v3116, %v3120
        %v3125 = vand.u32 2147483647, %v3115
        %vm3126 = vcmp.eq.f32.partialorder %v3125, 8.507059e+37
        %v3127 = vand.u32 %v3115, 2147483648
        %v3128 = vor.u32 1.1754944e-38, %v3127
        %v3129 = vsel %vm3126, %v3128, %v3124
        %v3130 = vmul.f32 1.0, %v3129
        %v3132 = vrot.slane %v3111, 1
        %v3134 = vxor.u32 %v3132, 2147483648
        %v3135 = vmul.f32 %v3134, 1.442695
        %v3136 = vpow.pop %v3135
        %v3137 = vadd.f32 %v3136, 1.0
        %v3138 = vrcp.pop %v3137
        %v3139 = vmul.f32 %v3137, %v3138
        %v3140 = vsub.f32 1.0, %v3139
        %v3141 = vmul.f32 %v3138, %v3140
        %v3142 = vadd.f32 %v3138, %v3141
        %vm3143 = vweird.f32 %v3137
        %vm3144 = vweird.f32 %v3138
        %vm3145 = vmor %vm3143, %vm3144
        %v3146 = vsel %vm3145, %v3138, %v3142
        %v3147 = vand.u32 2147483647, %v3137
        %vm3148 = vcmp.eq.f32.partialorder %v3147, 8.507059e+37
        %v3149 = vand.u32 %v3137, 2147483648
        %v3150 = vor.u32 1.1754944e-38, %v3149
        %v3151 = vsel %vm3148, %v3150, %v3146
        %v3152 = vmul.f32 1.0, %v3151
        %v3153 = vrot.slane %v3111, 2
        %v3155 = vtanh.pop %v3153
        %v3156 = vrot.slane %v3111, 3
        %v3158 = vxor.u32 %v3156, 2147483648
        %v3159 = vmul.f32 %v3158, 1.442695
        %v3160 = vpow.pop %v3159
        %v3161 = vadd.f32 %v3160, 1.0
        %v3162 = vrcp.pop %v3161
        %v3163 = vmul.f32 %v3161, %v3162
        %v3164 = vsub.f32 1.0, %v3163
        %v3165 = vmul.f32 %v3162, %v3164
        %v3166 = vadd.f32 %v3162, %v3165
        %vm3167 = vweird.f32 %v3161
        %vm3168 = vweird.f32 %v3162
        %vm3169 = vmor %vm3167, %vm3168
        %v3170 = vsel %vm3169, %v3162, %v3166
        %v3171 = vand.u32 2147483647, %v3161
        %vm3172 = vcmp.eq.f32.partialorder %v3171, 8.507059e+37
        %v3173 = vand.u32 %v3161, 2147483648
        %v3174 = vor.u32 1.1754944e-38, %v3173
        %v3175 = vsel %vm3172, %v3174, %v3170
        %v3176 = vmul.f32 1.0, %v3175
        %v3177 = vmul.f32 %v3152, %v3030
        %v3178 = vmul.f32 %v3130, %v3155
        %v3179 = vadd.f32 %v3177, %v3178
        %v3180 = vtanh.pop %v3179
        %v3181 = vmul.f32 %v3176, %v3180
        %v3182 = vmul.f32 %v3181, %v1845
        %v3183 = vsel %vm2359, %v3182, 0.0
        %3184 = vadd.xlane.f32.xlu0 %v3183
        %v3185 = vpop.xlane.xlu0 %3184
        %v3186 = vadd.f32 %v3185, %v1846
        %vm3187 = vcmp.eq.s32.totalorder %v1373, 5
        %3189 = vset.pattern.permute.xlu0 0
        %3190 = vperm.xlu0 %3189, %v3186
        %v3191 = vpop.permute.xlu0 %3190
        %v3193 = vsel %vm3187, %v3191, %v3044
        %s3194 = scalar_lea.vmem [#allocation3], 6
        %v3195 = vld [vmem:[%s3194] ss:$8 sm:$0xf]
        %v3196 = vpack.c.bf16 %v3181, %v3181
        %3197 = vmatpush.bf16.msra.mxu0 %v2264
        %3198 = vmatpush.bf16.msra.mxu0 %v2260
        %3199 = vmatpush.bf16.msra.mxu0 %v2256
        %3200 = vmatpush.bf16.msra.mxu0 %v2252
        %3201 = vmatpush.bf16.msra.mxu0 %v2248
        %3202 = vmatpush.bf16.msra.mxu0 %v2244
        %3203 = vmatpush.bf16.msra.mxu0 %v2240
        %3204 = vmatpush.bf16.msra.mxu0 %v2236
        %3205 = vmatmul.bf16.gmra.mxu0 %v3196
        %v3206 = vpop.f32.mrf.mxu0
        %v3207 = vadd.f32 0.0, %v3206
        %v3208 = vpop.f32.mrf.mxu0
        %3209 = vdwg.mxu0
        %3210 = vmatpush.bf16.msra.mxu0 %v2265
        %3211 = vmatpush.bf16.msra.mxu0 %v2261
        %3212 = vmatpush.bf16.msra.mxu0 %v2257
        %3213 = vmatpush.bf16.msra.mxu0 %v2253
        %3214 = vmatpush.bf16.msra.mxu0 %v2249
        %3215 = vmatpush.bf16.msra.mxu0 %v2245
        %3216 = vmatpush.bf16.msra.mxu0 %v2241
        %3217 = vmatpush.bf16.msra.mxu0 %v2237
        %3218 = vmatmul.bf16.gmra.mxu0 %v3196
        %v3219 = vpop.f32.mrf.mxu0
        %v3220 = vadd.f32 0.0, %v3219
        %v3221 = vpop.f32.mrf.mxu0
        %3222 = vdwg.mxu0
        %3223 = vmatpush.bf16.msra.mxu0 %v2266
        %3224 = vmatpush.bf16.msra.mxu0 %v2262
        %3225 = vmatpush.bf16.msra.mxu0 %v2258
        %3226 = vmatpush.bf16.msra.mxu0 %v2254
        %3227 = vmatpush.bf16.msra.mxu0 %v2250
        %3228 = vmatpush.bf16.msra.mxu0 %v2246
        %3229 = vmatpush.bf16.msra.mxu0 %v2242
        %3230 = vmatpush.bf16.msra.mxu0 %v2238
        %3231 = vmatmul.bf16.gmra.mxu0 %v3196
        %v3232 = vpop.f32.mrf.mxu0
        %v3233 = vadd.f32 0.0, %v3232
        %v3234 = vpop.f32.mrf.mxu0
        %3235 = vdwg.mxu0
        %3236 = vmatpush.bf16.msra.mxu0 %v2267
        %3237 = vmatpush.bf16.msra.mxu0 %v2263
        %3238 = vmatpush.bf16.msra.mxu0 %v2259
        %3239 = vmatpush.bf16.msra.mxu0 %v2255
        %3240 = vmatpush.bf16.msra.mxu0 %v2251
        %3241 = vmatpush.bf16.msra.mxu0 %v2247
        %3242 = vmatpush.bf16.msra.mxu0 %v2243
        %3243 = vmatpush.bf16.msra.mxu0 %v2239
        %3244 = vmatmul.bf16.gmra.mxu0 %v3196
        %v3245 = vpop.f32.mrf.mxu0
        %v3246 = vadd.f32 0.0, %v3245
        %v3247 = vpop.f32.mrf.mxu0
        %3248 = vdwg.mxu0
        %v3253 = vrot.slane %v3220, 7
        %v3254 = vrot.slane %v3233, 6
        %v3255 = vrot.slane %v3246, 5
        %v3256 = vsel %vm2359, %v3207, %v3253
        %v3257 = vsel %vm2361, %v3254, %v3255
        %v3258 = vsel %vm2363, %v3256, %v3257
        %v3260 = vadd.f32 %v3195, %v3258
        %v3261 = vxor.u32 %v3260, 2147483648
        %v3262 = vmul.f32 %v3261, 1.442695
        %v3263 = vpow.pop %v3262
        %v3264 = vadd.f32 %v3263, 1.0
        %v3265 = vrcp.pop %v3264
        %v3266 = vmul.f32 %v3264, %v3265
        %v3267 = vsub.f32 1.0, %v3266
        %v3268 = vmul.f32 %v3265, %v3267
        %v3269 = vadd.f32 %v3265, %v3268
        %vm3270 = vweird.f32 %v3264
        %vm3271 = vweird.f32 %v3265
        %vm3272 = vmor %vm3270, %vm3271
        %v3273 = vsel %vm3272, %v3265, %v3269
        %v3274 = vand.u32 2147483647, %v3264
        %vm3275 = vcmp.eq.f32.partialorder %v3274, 8.507059e+37
        %v3276 = vand.u32 %v3264, 2147483648
        %v3277 = vor.u32 1.1754944e-38, %v3276
        %v3278 = vsel %vm3275, %v3277, %v3273
        %v3279 = vmul.f32 1.0, %v3278
        %v3281 = vrot.slane %v3260, 1
        %v3283 = vxor.u32 %v3281, 2147483648
        %v3284 = vmul.f32 %v3283, 1.442695
        %v3285 = vpow.pop %v3284
        %v3286 = vadd.f32 %v3285, 1.0
        %v3287 = vrcp.pop %v3286
        %v3288 = vmul.f32 %v3286, %v3287
        %v3289 = vsub.f32 1.0, %v3288
        %v3290 = vmul.f32 %v3287, %v3289
        %v3291 = vadd.f32 %v3287, %v3290
        %vm3292 = vweird.f32 %v3286
        %vm3293 = vweird.f32 %v3287
        %vm3294 = vmor %vm3292, %vm3293
        %v3295 = vsel %vm3294, %v3287, %v3291
        %v3296 = vand.u32 2147483647, %v3286
        %vm3297 = vcmp.eq.f32.partialorder %v3296, 8.507059e+37
        %v3298 = vand.u32 %v3286, 2147483648
        %v3299 = vor.u32 1.1754944e-38, %v3298
        %v3300 = vsel %vm3297, %v3299, %v3295
        %v3301 = vmul.f32 1.0, %v3300
        %v3302 = vrot.slane %v3260, 2
        %v3304 = vtanh.pop %v3302
        %v3305 = vrot.slane %v3260, 3
        %v3307 = vxor.u32 %v3305, 2147483648
        %v3308 = vmul.f32 %v3307, 1.442695
        %v3309 = vpow.pop %v3308
        %v3310 = vadd.f32 %v3309, 1.0
        %v3311 = vrcp.pop %v3310
        %v3312 = vmul.f32 %v3310, %v3311
        %v3313 = vsub.f32 1.0, %v3312
        %v3314 = vmul.f32 %v3311, %v3313
        %v3315 = vadd.f32 %v3311, %v3314
        %vm3316 = vweird.f32 %v3310
        %vm3317 = vweird.f32 %v3311
        %vm3318 = vmor %vm3316, %vm3317
        %v3319 = vsel %vm3318, %v3311, %v3315
        %v3320 = vand.u32 2147483647, %v3310
        %vm3321 = vcmp.eq.f32.partialorder %v3320, 8.507059e+37
        %v3322 = vand.u32 %v3310, 2147483648
        %v3323 = vor.u32 1.1754944e-38, %v3322
        %v3324 = vsel %vm3321, %v3323, %v3319
        %v3325 = vmul.f32 1.0, %v3324
        %v3326 = vmul.f32 %v3301, %v3179
        %v3327 = vmul.f32 %v3279, %v3304
        %v3328 = vadd.f32 %v3326, %v3327
        %v3329 = vtanh.pop %v3328
        %v3330 = vmul.f32 %v3325, %v3329
        %v3331 = vmul.f32 %v3330, %v1845
        %v3332 = vsel %vm2359, %v3331, 0.0
        %3333 = vadd.xlane.f32.xlu0 %v3332
        %v3334 = vpop.xlane.xlu0 %3333
        %v3335 = vadd.f32 %v3334, %v1846
        %vm3336 = vcmp.eq.s32.totalorder %v1373, 6
        %3338 = vset.pattern.permute.xlu0 0
        %3339 = vperm.xlu0 %3338, %v3335
        %v3340 = vpop.permute.xlu0 %3339
        %v3342 = vsel %vm3336, %v3340, %v3193
        %s3343 = scalar_lea.vmem [#allocation3], 7
        %v3344 = vld [vmem:[%s3343] ss:$8 sm:$0xf]
        %v3345 = vpack.c.bf16 %v3330, %v3330
        %3346 = vmatpush.bf16.msra.mxu0 %v2264
        %3347 = vmatpush.bf16.msra.mxu0 %v2260
        %3348 = vmatpush.bf16.msra.mxu0 %v2256
        %3349 = vmatpush.bf16.msra.mxu0 %v2252
        %3350 = vmatpush.bf16.msra.mxu0 %v2248
        %3351 = vmatpush.bf16.msra.mxu0 %v2244
        %3352 = vmatpush.bf16.msra.mxu0 %v2240
        %3353 = vmatpush.bf16.msra.mxu0 %v2236
        %3354 = vmatmul.bf16.gmra.mxu0 %v3345
        %v3355 = vpop.f32.mrf.mxu0
        %v3356 = vadd.f32 0.0, %v3355
        %v3357 = vpop.f32.mrf.mxu0
        %3358 = vdwg.mxu0
        %3359 = vmatpush.bf16.msra.mxu0 %v2265
        %3360 = vmatpush.bf16.msra.mxu0 %v2261
        %3361 = vmatpush.bf16.msra.mxu0 %v2257
        %3362 = vmatpush.bf16.msra.mxu0 %v2253
        %3363 = vmatpush.bf16.msra.mxu0 %v2249
        %3364 = vmatpush.bf16.msra.mxu0 %v2245
        %3365 = vmatpush.bf16.msra.mxu0 %v2241
        %3366 = vmatpush.bf16.msra.mxu0 %v2237
        %3367 = vmatmul.bf16.gmra.mxu0 %v3345
        %v3368 = vpop.f32.mrf.mxu0
        %v3369 = vadd.f32 0.0, %v3368
        %v3370 = vpop.f32.mrf.mxu0
        %3371 = vdwg.mxu0
        %3372 = vmatpush.bf16.msra.mxu0 %v2266
        %3373 = vmatpush.bf16.msra.mxu0 %v2262
        %3374 = vmatpush.bf16.msra.mxu0 %v2258
        %3375 = vmatpush.bf16.msra.mxu0 %v2254
        %3376 = vmatpush.bf16.msra.mxu0 %v2250
        %3377 = vmatpush.bf16.msra.mxu0 %v2246
        %3378 = vmatpush.bf16.msra.mxu0 %v2242
        %3379 = vmatpush.bf16.msra.mxu0 %v2238
        %3380 = vmatmul.bf16.gmra.mxu0 %v3345
        %v3381 = vpop.f32.mrf.mxu0
        %v3382 = vadd.f32 0.0, %v3381
        %v3383 = vpop.f32.mrf.mxu0
        %3384 = vdwg.mxu0
        %3385 = vmatpush.bf16.msra.mxu0 %v2267
        %3386 = vmatpush.bf16.msra.mxu0 %v2263
        %3387 = vmatpush.bf16.msra.mxu0 %v2259
        %3388 = vmatpush.bf16.msra.mxu0 %v2255
        %3389 = vmatpush.bf16.msra.mxu0 %v2251
        %3390 = vmatpush.bf16.msra.mxu0 %v2247
        %3391 = vmatpush.bf16.msra.mxu0 %v2243
        %3392 = vmatpush.bf16.msra.mxu0 %v2239
        %3393 = vmatmul.bf16.gmra.mxu0 %v3345
        %v3394 = vpop.f32.mrf.mxu0
        %v3395 = vadd.f32 0.0, %v3394
        %v3396 = vpop.f32.mrf.mxu0
        %3397 = vdwg.mxu0
        %v3402 = vrot.slane %v3369, 7
        %v3403 = vrot.slane %v3382, 6
        %v3404 = vrot.slane %v3395, 5
        %v3405 = vsel %vm2359, %v3356, %v3402
        %v3406 = vsel %vm2361, %v3403, %v3404
        %v3407 = vsel %vm2363, %v3405, %v3406
        %v3409 = vadd.f32 %v3344, %v3407
        %v3410 = vxor.u32 %v3409, 2147483648
        %v3411 = vmul.f32 %v3410, 1.442695
        %v3412 = vpow.pop %v3411
        %v3413 = vadd.f32 %v3412, 1.0
        %v3414 = vrcp.pop %v3413
        %v3415 = vmul.f32 %v3413, %v3414
        %v3416 = vsub.f32 1.0, %v3415
        %v3417 = vmul.f32 %v3414, %v3416
        %v3418 = vadd.f32 %v3414, %v3417
        %vm3419 = vweird.f32 %v3413
        %vm3420 = vweird.f32 %v3414
        %vm3421 = vmor %vm3419, %vm3420
        %v3422 = vsel %vm3421, %v3414, %v3418
        %v3423 = vand.u32 2147483647, %v3413
        %vm3424 = vcmp.eq.f32.partialorder %v3423, 8.507059e+37
        %v3425 = vand.u32 %v3413, 2147483648
        %v3426 = vor.u32 1.1754944e-38, %v3425
        %v3427 = vsel %vm3424, %v3426, %v3422
        %v3428 = vmul.f32 1.0, %v3427
        %v3430 = vrot.slane %v3409, 1
        %v3432 = vxor.u32 %v3430, 2147483648
        %v3433 = vmul.f32 %v3432, 1.442695
        %v3434 = vpow.pop %v3433
        %v3435 = vadd.f32 %v3434, 1.0
        %v3436 = vrcp.pop %v3435
        %v3437 = vmul.f32 %v3435, %v3436
        %v3438 = vsub.f32 1.0, %v3437
        %v3439 = vmul.f32 %v3436, %v3438
        %v3440 = vadd.f32 %v3436, %v3439
        %vm3441 = vweird.f32 %v3435
        %vm3442 = vweird.f32 %v3436
        %vm3443 = vmor %vm3441, %vm3442
        %v3444 = vsel %vm3443, %v3436, %v3440
        %v3445 = vand.u32 2147483647, %v3435
        %vm3446 = vcmp.eq.f32.partialorder %v3445, 8.507059e+37
        %v3447 = vand.u32 %v3435, 2147483648
        %v3448 = vor.u32 1.1754944e-38, %v3447
        %v3449 = vsel %vm3446, %v3448, %v3444
        %v3450 = vmul.f32 1.0, %v3449
        %v3451 = vrot.slane %v3409, 2
        %v3453 = vtanh.pop %v3451
        %v3454 = vrot.slane %v3409, 3
        %v3456 = vxor.u32 %v3454, 2147483648
        %v3457 = vmul.f32 %v3456, 1.442695
        %v3458 = vpow.pop %v3457
        %v3459 = vadd.f32 %v3458, 1.0
        %v3460 = vrcp.pop %v3459
        %v3461 = vmul.f32 %v3459, %v3460
        %v3462 = vsub.f32 1.0, %v3461
        %v3463 = vmul.f32 %v3460, %v3462
        %v3464 = vadd.f32 %v3460, %v3463
        %vm3465 = vweird.f32 %v3459
        %vm3466 = vweird.f32 %v3460
        %vm3467 = vmor %vm3465, %vm3466
        %v3468 = vsel %vm3467, %v3460, %v3464
        %v3469 = vand.u32 2147483647, %v3459
        %vm3470 = vcmp.eq.f32.partialorder %v3469, 8.507059e+37
        %v3471 = vand.u32 %v3459, 2147483648
        %v3472 = vor.u32 1.1754944e-38, %v3471
        %v3473 = vsel %vm3470, %v3472, %v3468
        %v3474 = vmul.f32 1.0, %v3473
        %v3475 = vmul.f32 %v3450, %v3328
        %v3476 = vmul.f32 %v3428, %v3453
        %v3477 = vadd.f32 %v3475, %v3476
        %v3478 = vtanh.pop %v3477
        %v3479 = vmul.f32 %v3474, %v3478
        %v3480 = vmul.f32 %v3479, %v1845
        %v3481 = vsel %vm2359, %v3480, 0.0
        %3482 = vadd.xlane.f32.xlu0 %v3481
        %v3483 = vpop.xlane.xlu0 %3482
        %v3484 = vadd.f32 %v3483, %v1846
        %vm3485 = vcmp.eq.s32.totalorder %v1373, 7
        %3487 = vset.pattern.permute.xlu0 0
        %3488 = vperm.xlu0 %3487, %v3484
        %v3489 = vpop.permute.xlu0 %3488
        %v3491 = vsel %vm3485, %v3489, %v3342
        %v3492 = vxor.u32 %v3491, 2147483648
        %v3493 = vmul.f32 %v3492, 1.442695
        %v3494 = vpow.pop %v3493
        %v3495 = vadd.f32 %v3494, 1.0
        %v3496 = vrcp.pop %v3495
        %v3497 = vmul.f32 %v3495, %v3496
        %v3498 = vsub.f32 1.0, %v3497
        %v3499 = vmul.f32 %v3496, %v3498
        %v3500 = vadd.f32 %v3496, %v3499
        %vm3501 = vweird.f32 %v3495
        %vm3502 = vweird.f32 %v3496
        %vm3503 = vmor %vm3501, %vm3502
        %v3504 = vsel %vm3503, %v3496, %v3500
        %v3505 = vand.u32 2147483647, %v3495
        %vm3506 = vcmp.eq.f32.partialorder %v3505, 8.507059e+37
        %v3507 = vand.u32 %v3495, 2147483648
        %v3508 = vor.u32 1.1754944e-38, %v3507
        %v3509 = vsel %vm3506, %v3508, %v3504
        %v3510 = vmul.f32 1.0, %v3509
        %vm3511 = vcmask 57344
        %3512 = vst.msk [vmem:[%s1107] sm:$0x1] %vm3511, %v3510
        %s3513 = sand.u32 %s667, 1
        %s3514 = scalar_lea.sflag [#allocation7], %s3513
        %s3515 = sand.u32 %s667, 1
        %s3516 = scalar_lea.vmem [#allocation29], %s3515
        // Predicated region
        $region193: #{tpu_custom_call.1} parent=131 // pred_check
          %p3517 = pneg %p677
        $region194: #{tpu_custom_call.1} parent=131 // pred_check_branch
          %3519 = sbr.rel (%p3517) target = $region196
        $region195: #{tpu_custom_call.1} parent=131 // pred_region
          %3521 = vsyncadd %s3514, 0
          %s3522 = scalar_lea.hbm %s28, %s56
          %s3524 = sshll.u32 %s3516, 4
          %s3525 = int_to_ptr.vmem [resolvable:$true] %s3524
          %s3526 = sshll.u32 %s3522, 4
          %s3527 = int_to_ptr.hbm [resolvable:$true] %s3526
          %3529 = dma.vmem_to_hbm [thread:$0]  %s3525, 16, %s3527, %s3514
        $region196: #{tpu_custom_call.1} parent=131 // pred_fallthru
          _
      $region132: #{tpu_custom_call.1} parent=5 // pred_fallthru
        _
      %p3530 = scmp.le.s32.totalorder 2, %s51
      // Predicated region
      $region197: #{tpu_custom_call.1} parent=5 // pred_check
        %p3531 = pneg %p3530
      $region198: #{tpu_custom_call.1} parent=5 // pred_check_branch
        %3533 = sbr.rel (%p3531) target = $region200
      $region199: #{tpu_custom_call.1} parent=5 // pred_region
        %s3534 = ssub.s32 %s51, 2
        // Predicated region
        $region201: #{tpu_custom_call.1} parent=199 // pred_check
          %p3535 = pneg %p683
        $region202: #{tpu_custom_call.1} parent=199 // pred_check_branch
          %3537 = sbr.rel (%p3535) target = $region204
        $region203: #{tpu_custom_call.1} parent=199 // pred_region
          %s3538 = sand.u32 %s668, 1
          %s3539 = scalar_lea.sflag [#allocation7], %s3538
          %s3540 = sand.u32 %s668, 1
          %s3541 = scalar_lea.vmem [#allocation29], %s3540
          %3543 = dma.done %s3539, 16
        $region204: #{tpu_custom_call.1} parent=199 // pred_fallthru
          _
      $region200: #{tpu_custom_call.1} parent=5 // pred_fallthru
        _
    $region6: #{tpu_custom_call.1} parent=1 // loop_footer
      %s55 = sadd.s32 1, %s51
    $region7: #{tpu_custom_call.1} parent=1 // loop_footer_branch
      %50 = sbr.rel target = $region3
    $region8: #{tpu_custom_call.1} parent=1 // loop_exit
      _
    %3544 = vsyncpa [#allocation6], 1
    %s3545 = scalar_lea.sflag [#allocation6], 1
    %3546 = vsyncpa %s3545, 1
    %3547 = vsyncpa [#allocation9], 1
    %s3548 = scalar_lea.sflag [#allocation9], 1
    %3549 = vsyncpa %s3548, 1
    %3550 = vsyncpa [#allocation12], 1
    %3551 = vsyncpa [#allocation15], 1
    %3552 = vsyncpa [#allocation18], 1
    %3553 = vsyncpa [#allocation21], 1
    %3554 = vsyncpa [#allocation24], 1
    %3555 = vsyncpa [#allocation27], 1
    %3556 = vsyncpa [#allocation7], 1
    %s3557 = scalar_lea.sflag [#allocation7], 1
    %3558 = vsyncpa %s3557, 1

</llo_original>
